<compile_context>
chip_gen: v7x
topology: tpu7x:2x2x1
jax: 0.10.0
libtpu: 0.0.40
codegen_flags: <defaults>
</compile_context>

<pallas_src>
import jax
import jax.numpy as jnp
from jax.experimental import pallas as pl
from jax.experimental.pallas import tpu as pltpu


def _make_kernel(W, lanes, cmax):
    """W: image width; lanes: lane width per grid step (G*H*W); cmax: max Cin."""
    taps = [(t // 3 - 1, t % 3 - 1) for t in range(9)]   # (dh, dw), t = kh*3+kw

    def kernel(x_ref, f_ref, mask_ref,
               w1_ref, b1_ref, a1_ref,
               w2_ref, b2_ref, a2_ref,
               w3_ref, b3_ref,
               out_ref):
        # Hoist the per-tap mask sublane-broadcasts once; reused by all 3 convs.
        masks = [jnp.broadcast_to(mask_ref[t:t + 1, :], (cmax, lanes))
                 for t in range(9)]

        def conv3x3(act, w_ref, b_ref):
            """act: (Cin, lanes) f32; w_ref: (9, Cout, Cin); b_ref: (Cout, 1)."""
            cin = act.shape[0]
            acc = None
            for t, (dh, dw) in enumerate(taps):
                off = dh * W + dw
                if dh == 0 and dw == 0:
                    tap = act                               # center tap: no shift/mask
                else:
                    # shifted[:, p] = act[:, (p + off) mod lanes] (XLU lane rotation);
                    # wrapped / out-of-image lanes are zeroed by the tap mask.
                    shifted = pltpu.roll(act, shift=(-off) % lanes, axis=1)
                    tap = shifted * masks[t][:cin, :]
                d = jnp.dot(w_ref[t], tap, preferred_element_type=jnp.float32)
                acc = d if acc is None else acc + d
            return acc + b_ref[...]                         # (Cout,1) bcast over lanes

        # conv1 + PReLU
        y = conv3x3(x_ref[...], w1_ref, b1_ref)
        a1 = a1_ref[0, 0]
        y = jnp.where(y >= 0.0, y, a1 * y)
        # conv2 + PReLU
        y = conv3x3(y, w2_ref, b2_ref)
        a2 = a2_ref[0, 0]
        y = jnp.where(y >= 0.0, y, a2 * y)
        # conv3 + residual
        y = conv3x3(y, w3_ref, b3_ref)
        out_ref[...] = (f_ref[...] + y).astype(out_ref.dtype)

    return kernel


def make_params(key, cin, cout):
    """Deterministic init matching the PyTorch module's shapes.
    Conv weights stored as (9, Cin, Cout), tap index t = kh*3 + kw."""
    ks = jax.random.split(key, 6)

    def conv_init(k, fan_in, shape):
        bound = 1.0 / jnp.sqrt(jnp.float32(fan_in))
        return jax.random.uniform(k, shape, jnp.float32, -bound, bound)

    w1 = conv_init(ks[0], cin * 9, (9, cin, 32))
    b1 = conv_init(ks[1], cin * 9, (1, 32))
    w2 = conv_init(ks[2], 32 * 9, (9, 32, 32))
    b2 = conv_init(ks[3], 32 * 9, (1, 32))
    w3 = conv_init(ks[4], 32 * 9, (9, 32, cout))
    b3 = conv_init(ks[5], 32 * 9, (1, cout))
    a1 = jnp.full((1, 1), 0.25, jnp.float32)   # nn.PReLU() default init
    a2 = jnp.full((1, 1), 0.25, jnp.float32)
    return dict(w1=w1, b1=b1, a1=a1, w2=w2, b2=b2, a2=a2, w3=w3, b3=b3)


def primal_network(f, h_eval, p):
    """f, h_eval: NCHW float32. Returns NCHW float32 (same as PyTorch)."""
    B, Cf, H, W = f.shape
    Ch = h_eval.shape[1]
    Cin = Cf + Ch
    HW = H * W

    # ---- fold the batch onto the lane axis, grid over image groups ---------
    # Keep >=2 grid steps when B allows (both v7x TCs busy); otherwise fall
    # back to one image per step, or a single full-extent step.
    if B % 2 == 0 and B >= 2 and ((B // 2) * HW) % 128 == 0:
        num_groups = 2
    elif HW % 128 == 0:
        num_groups = B
    else:
        num_groups = 1                      # lane block = full extent, always legal
    G = B // num_groups
    lanes = G * HW

    # NCHW -> (C, B*HW): one B<->C transpose in XLA, then free reshapes.
    x = jnp.concatenate([f, h_eval], axis=1)
    x_l = jnp.transpose(x, (1, 0, 2, 3)).reshape(Cin, B * HW)
    f_l = jnp.transpose(f, (1, 0, 2, 3)).reshape(Cf, B * HW)

    # Per-tap weight matrices: (9, Cout, Cin).
    def to_tap(w9):
        return jnp.transpose(w9, (0, 2, 1))

    w1, w2, w3 = to_tap(p["w1"]), to_tap(p["w2"]), to_tap(p["w3"])
    b1 = p["b1"].reshape(32, 1)
    b2 = p["b2"].reshape(32, 1)
    b3 = p["b3"].reshape(Cf, 1)

    # Per-image boundary masks over flattened H*W lanes, tiled across the G
    # images of a group.  They zero out-of-image taps AND every cross-image /
    # group-edge wraparound lane produced by the lane roll.
    rows = jnp.arange(H).reshape(H, 1)
    cols = jnp.arange(W).reshape(1, W)
    masks = []
    for t in range(9):
        dh, dw = t // 3 - 1, t % 3 - 1
        m = ((rows + dh >= 0) & (rows + dh < H) &
             (cols + dw >= 0) & (cols + dw < W))
        masks.append(m.reshape(HW))
    mask_img = jnp.stack(masks, axis=0).astype(jnp.float32)      # (9, HW)
    mask_arr = jnp.tile(mask_img, (1, G))                        # (9, G*HW)

    cmax = max(Cin, 32)
    kernel = _make_kernel(W, lanes, cmax)

    smem_scalar = pl.BlockSpec((1, 1), lambda g: (0, 0),
                               memory_space=pltpu.MemorySpace.SMEM)

    out_l = pl.pallas_call(
        kernel,
        out_shape=jax.ShapeDtypeStruct((Cf, B * HW), jnp.float32),
        grid_spec=pltpu.PrefetchScalarGridSpec(
            num_scalar_prefetch=0,
            grid=(num_groups,),
            in_specs=[
                pl.BlockSpec((Cin, lanes), lambda g: (0, g)),      # x (lane groups)
                pl.BlockSpec((Cf, lanes), lambda g: (0, g)),       # f (residual)
                pl.BlockSpec((9, lanes), lambda g: (0, 0)),        # tap masks
                pl.BlockSpec((9, 32, Cin), lambda g: (0, 0, 0)),   # w1
                pl.BlockSpec((32, 1), lambda g: (0, 0)),           # b1
                smem_scalar,                                       # a1 (PReLU)
                pl.BlockSpec((9, 32, 32), lambda g: (0, 0, 0)),    # w2
                pl.BlockSpec((32, 1), lambda g: (0, 0)),           # b2
                smem_scalar,                                       # a2 (PReLU)
                pl.BlockSpec((9, Cf, 32), lambda g: (0, 0, 0)),    # w3
                pl.BlockSpec((Cf, 1), lambda g: (0, 0)),           # b3
            ],
            out_specs=pl.BlockSpec((Cf, lanes), lambda g: (0, g)),
        ),
        compiler_params=pltpu.CompilerParams(
            dimension_semantics=("parallel",)),
    )(x_l, f_l, mask_arr, w1, b1, p["a1"], w2, b2, p["a2"], w3, b3)

    # (Cf, B*HW) -> NCHW (one transpose in XLA).
    return jnp.transpose(out_l.reshape(Cf, B, H, W), (1, 0, 2, 3))


def reference(f, h_eval, p):
    """Pure-JAX reference (NCHW, cross-correlation, same as PyTorch)."""
    def conv(x, w9, b):
        w = w9.reshape(3, 3, w9.shape[1], w9.shape[2])     # HWIO
        y = jax.lax.conv_general_dilated(
            x, w, (1, 1), ((1, 1), (1, 1)),
            dimension_numbers=("NCHW", "HWIO", "NCHW"),
            precision=jax.lax.Precision.HIGHEST)
        return y + b.reshape(1, -1, 1, 1)

    def prelu(x, a):
        return jnp.where(x >= 0, x, a[0, 0] * x)

    x = jnp.concatenate([f, h_eval], axis=1)
    y = prelu(conv(x, p["w1"], p["b1"]), p["a1"])
    y = prelu(conv(y, p["w2"], p["b2"]), p["a2"])
    y = conv(y, p["w3"], p["b3"])
    return f + y


if __name__ == "__main__":
    key = jax.random.PRNGKey(0)
    kf, kh, kp = jax.random.split(key, 3)

    # small shapes: first_input = Cf + Ch = 8, final_output = Cf = 4
    B, Cf, Ch, H, W = 2, 4, 4, 16, 16
    f = jax.random.normal(kf, (B, Cf, H, W), jnp.float32)
    h_eval = jax.random.normal(kh, (B, Ch, H, W), jnp.float32)
    params = make_params(kp, Cf + Ch, Cf)

    out = primal_network(f, h_eval, params)
    out = jax.block_until_ready(out)
    assert out.shape == (B, Cf, H, W), out.shape

    ref = reference(f, h_eval, params)
    max_err = float(jnp.max(jnp.abs(out - ref)))
    assert jnp.allclose(out, ref, atol=1e-3, rtol=1e-3), max_err

    print("KERNEL_OK")
</pallas_src>

<mosaic_0001>
module attributes {stable_mosaic.version = 11 : i64} {
  func.func @kernel(%arg0: i32, %arg1: memref<8x256xf32, #tpu.memory_space<vmem>>, %arg2: memref<4x256xf32, #tpu.memory_space<vmem>>, %arg3: memref<9x256xf32, #tpu.memory_space<vmem>>, %arg4: memref<9x32x8xf32, #tpu.memory_space<vmem>>, %arg5: memref<32x1xf32, #tpu.memory_space<vmem>>, %arg6: memref<1x1xf32, #tpu.memory_space<smem>>, %arg7: memref<9x32x32xf32, #tpu.memory_space<vmem>>, %arg8: memref<32x1xf32, #tpu.memory_space<vmem>>, %arg9: memref<1x1xf32, #tpu.memory_space<smem>>, %arg10: memref<9x4x32xf32, #tpu.memory_space<vmem>>, %arg11: memref<4x1xf32, #tpu.memory_space<vmem>>, %arg12: memref<4x256xf32, #tpu.memory_space<vmem>>) attributes {dimension_semantics = [#tpu.dimension_semantics<parallel>], iteration_bounds = array<i64: 2>, scalar_prefetch = 0 : i64, scratch_operands = 0 : i64, tpu.core_type = #tpu.core_type<tc>, window_params = [{transform_indices = @transform_0, window_bounds = array<i64: 8, 256>}, {transform_indices = @transform_1, window_bounds = array<i64: 4, 256>}, {pipeline_mode = #tpu.pipeline_mode<synchronous>, transform_indices = @transform_2, window_bounds = array<i64: 9, 256>}, {pipeline_mode = #tpu.pipeline_mode<synchronous>, transform_indices = @transform_3, window_bounds = array<i64: 9, 32, 8>}, {pipeline_mode = #tpu.pipeline_mode<synchronous>, transform_indices = @transform_4, window_bounds = array<i64: 32, 1>}, {transform_indices = @transform_5, window_bounds = array<i64: 1, 1>}, {pipeline_mode = #tpu.pipeline_mode<synchronous>, transform_indices = @transform_6, window_bounds = array<i64: 9, 32, 32>}, {pipeline_mode = #tpu.pipeline_mode<synchronous>, transform_indices = @transform_7, window_bounds = array<i64: 32, 1>}, {transform_indices = @transform_8, window_bounds = array<i64: 1, 1>}, {pipeline_mode = #tpu.pipeline_mode<synchronous>, transform_indices = @transform_9, window_bounds = array<i64: 9, 4, 32>}, {pipeline_mode = #tpu.pipeline_mode<synchronous>, transform_indices = @transform_10, window_bounds = array<i64: 4, 1>}, {transform_indices = @transform_11, window_bounds = array<i64: 4, 256>}]} {
    %c0 = arith.constant 0 : index
    %c0_0 = arith.constant 0 : index
    %0 = vector.load %arg3[%c0, %c0_0] : memref<9x256xf32, #tpu.memory_space<vmem>>, vector<1x256xf32>
    %1 = vector.shape_cast %0 : vector<1x256xf32> to vector<1x256xf32>
    %2 = vector.broadcast %1 : vector<1x256xf32> to vector<32x256xf32>
    %c1 = arith.constant 1 : index
    %c0_1 = arith.constant 0 : index
    %3 = vector.load %arg3[%c1, %c0_1] : memref<9x256xf32, #tpu.memory_space<vmem>>, vector<1x256xf32>
    %4 = vector.shape_cast %3 : vector<1x256xf32> to vector<1x256xf32>
    %5 = vector.broadcast %4 : vector<1x256xf32> to vector<32x256xf32>
    %c2 = arith.constant 2 : index
    %c0_2 = arith.constant 0 : index
    %6 = vector.load %arg3[%c2, %c0_2] : memref<9x256xf32, #tpu.memory_space<vmem>>, vector<1x256xf32>
    %7 = vector.shape_cast %6 : vector<1x256xf32> to vector<1x256xf32>
    %8 = vector.broadcast %7 : vector<1x256xf32> to vector<32x256xf32>
    %c3 = arith.constant 3 : index
    %c0_3 = arith.constant 0 : index
    %9 = vector.load %arg3[%c3, %c0_3] : memref<9x256xf32, #tpu.memory_space<vmem>>, vector<1x256xf32>
    %10 = vector.shape_cast %9 : vector<1x256xf32> to vector<1x256xf32>
    %11 = vector.broadcast %10 : vector<1x256xf32> to vector<32x256xf32>
    %c5 = arith.constant 5 : index
    %c0_4 = arith.constant 0 : index
    %12 = vector.load %arg3[%c5, %c0_4] : memref<9x256xf32, #tpu.memory_space<vmem>>, vector<1x256xf32>
    %13 = vector.shape_cast %12 : vector<1x256xf32> to vector<1x256xf32>
    %14 = vector.broadcast %13 : vector<1x256xf32> to vector<32x256xf32>
    %c6 = arith.constant 6 : index
    %c0_5 = arith.constant 0 : index
    %15 = vector.load %arg3[%c6, %c0_5] : memref<9x256xf32, #tpu.memory_space<vmem>>, vector<1x256xf32>
    %16 = vector.shape_cast %15 : vector<1x256xf32> to vector<1x256xf32>
    %17 = vector.broadcast %16 : vector<1x256xf32> to vector<32x256xf32>
    %c7 = arith.constant 7 : index
    %c0_6 = arith.constant 0 : index
    %18 = vector.load %arg3[%c7, %c0_6] : memref<9x256xf32, #tpu.memory_space<vmem>>, vector<1x256xf32>
    %19 = vector.shape_cast %18 : vector<1x256xf32> to vector<1x256xf32>
    %20 = vector.broadcast %19 : vector<1x256xf32> to vector<32x256xf32>
    %c8 = arith.constant 8 : index
    %c0_7 = arith.constant 0 : index
    %21 = vector.load %arg3[%c8, %c0_7] : memref<9x256xf32, #tpu.memory_space<vmem>>, vector<1x256xf32>
    %22 = vector.shape_cast %21 : vector<1x256xf32> to vector<1x256xf32>
    %23 = vector.broadcast %22 : vector<1x256xf32> to vector<32x256xf32>
    %c0_8 = arith.constant 0 : index
    %c0_9 = arith.constant 0 : index
    %24 = vector.load %arg1[%c0_8, %c0_9] : memref<8x256xf32, #tpu.memory_space<vmem>>, vector<8x256xf32>
    %c17_i32 = arith.constant 17 : i32
    %25 = tpu.dynamic_rotate %24 by %c17_i32 dim 1 : vector<8x256xf32>, i32 -> vector<8x256xf32>
    %26 = vector.extract_strided_slice %2 {offsets = [0, 0], sizes = [8, 256], strides = [1, 1]} : vector<32x256xf32> to vector<8x256xf32>
    %27 = arith.mulf %25, %26 : vector<8x256xf32>
    %c0_10 = arith.constant 0 : index
    %c0_11 = arith.constant 0 : index
    %c0_12 = arith.constant 0 : index
    %28 = vector.load %arg4[%c0_10, %c0_11, %c0_12] : memref<9x32x8xf32, #tpu.memory_space<vmem>>, vector<1x32x8xf32>
    %29 = vector.shape_cast %28 : vector<1x32x8xf32> to vector<32x8xf32>
    %cst = arith.constant dense<0.000000e+00> : vector<32x256xf32>
    %30 = tpu.matmul %29, %27, %cst {dimension_numbers = #tpu.dot_dimension_numbers<[1], [0], [0], [1], [0, 0, 1, 1], [], []>} : vector<32x8xf32>, vector<8x256xf32>, vector<32x256xf32> -> vector<32x256xf32>
    %c16_i32 = arith.constant 16 : i32
    %31 = tpu.dynamic_rotate %24 by %c16_i32 dim 1 : vector<8x256xf32>, i32 -> vector<8x256xf32>
    %32 = vector.extract_strided_slice %5 {offsets = [0, 0], sizes = [8, 256], strides = [1, 1]} : vector<32x256xf32> to vector<8x256xf32>
    %33 = arith.mulf %31, %32 : vector<8x256xf32>
    %c1_13 = arith.constant 1 : index
    %c0_14 = arith.constant 0 : index
    %c0_15 = arith.constant 0 : index
    %34 = vector.load %arg4[%c1_13, %c0_14, %c0_15] : memref<9x32x8xf32, #tpu.memory_space<vmem>>, vector<1x32x8xf32>
    %35 = vector.shape_cast %34 : vector<1x32x8xf32> to vector<32x8xf32>
    %cst_16 = arith.constant dense<0.000000e+00> : vector<32x256xf32>
    %36 = tpu.matmul %35, %33, %cst_16 {dimension_numbers = #tpu.dot_dimension_numbers<[1], [0], [0], [1], [0, 0, 1, 1], [], []>} : vector<32x8xf32>, vector<8x256xf32>, vector<32x256xf32> -> vector<32x256xf32>
    %37 = arith.addf %30, %36 : vector<32x256xf32>
    %c15_i32 = arith.constant 15 : i32
    %38 = tpu.dynamic_rotate %24 by %c15_i32 dim 1 : vector<8x256xf32>, i32 -> vector<8x256xf32>
    %39 = vector.extract_strided_slice %8 {offsets = [0, 0], sizes = [8, 256], strides = [1, 1]} : vector<32x256xf32> to vector<8x256xf32>
    %40 = arith.mulf %38, %39 : vector<8x256xf32>
    %c2_17 = arith.constant 2 : index
    %c0_18 = arith.constant 0 : index
    %c0_19 = arith.constant 0 : index
    %41 = vector.load %arg4[%c2_17, %c0_18, %c0_19] : memref<9x32x8xf32, #tpu.memory_space<vmem>>, vector<1x32x8xf32>
    %42 = vector.shape_cast %41 : vector<1x32x8xf32> to vector<32x8xf32>
    %cst_20 = arith.constant dense<0.000000e+00> : vector<32x256xf32>
    %43 = tpu.matmul %42, %40, %cst_20 {dimension_numbers = #tpu.dot_dimension_numbers<[1], [0], [0], [1], [0, 0, 1, 1], [], []>} : vector<32x8xf32>, vector<8x256xf32>, vector<32x256xf32> -> vector<32x256xf32>
    %44 = arith.addf %37, %43 : vector<32x256xf32>
    %c1_i32 = arith.constant 1 : i32
    %45 = tpu.dynamic_rotate %24 by %c1_i32 dim 1 : vector<8x256xf32>, i32 -> vector<8x256xf32>
    %46 = vector.extract_strided_slice %11 {offsets = [0, 0], sizes = [8, 256], strides = [1, 1]} : vector<32x256xf32> to vector<8x256xf32>
    %47 = arith.mulf %45, %46 : vector<8x256xf32>
    %c3_21 = arith.constant 3 : index
    %c0_22 = arith.constant 0 : index
    %c0_23 = arith.constant 0 : index
    %48 = vector.load %arg4[%c3_21, %c0_22, %c0_23] : memref<9x32x8xf32, #tpu.memory_space<vmem>>, vector<1x32x8xf32>
    %49 = vector.shape_cast %48 : vector<1x32x8xf32> to vector<32x8xf32>
    %cst_24 = arith.constant dense<0.000000e+00> : vector<32x256xf32>
    %50 = tpu.matmul %49, %47, %cst_24 {dimension_numbers = #tpu.dot_dimension_numbers<[1], [0], [0], [1], [0, 0, 1, 1], [], []>} : vector<32x8xf32>, vector<8x256xf32>, vector<32x256xf32> -> vector<32x256xf32>
    %51 = arith.addf %44, %50 : vector<32x256xf32>
    %c4 = arith.constant 4 : index
    %c0_25 = arith.constant 0 : index
    %c0_26 = arith.constant 0 : index
    %52 = vector.load %arg4[%c4, %c0_25, %c0_26] : memref<9x32x8xf32, #tpu.memory_space<vmem>>, vector<1x32x8xf32>
    %53 = vector.shape_cast %52 : vector<1x32x8xf32> to vector<32x8xf32>
    %cst_27 = arith.constant dense<0.000000e+00> : vector<32x256xf32>
    %54 = tpu.matmul %53, %24, %cst_27 {dimension_numbers = #tpu.dot_dimension_numbers<[1], [0], [0], [1], [0, 0, 1, 1], [], []>} : vector<32x8xf32>, vector<8x256xf32>, vector<32x256xf32> -> vector<32x256xf32>
    %55 = arith.addf %51, %54 : vector<32x256xf32>
    %c255_i32 = arith.constant 255 : i32
    %56 = tpu.dynamic_rotate %24 by %c255_i32 dim 1 : vector<8x256xf32>, i32 -> vector<8x256xf32>
    %57 = vector.extract_strided_slice %14 {offsets = [0, 0], sizes = [8, 256], strides = [1, 1]} : vector<32x256xf32> to vector<8x256xf32>
    %58 = arith.mulf %56, %57 : vector<8x256xf32>
    %c5_28 = arith.constant 5 : index
    %c0_29 = arith.constant 0 : index
    %c0_30 = arith.constant 0 : index
    %59 = vector.load %arg4[%c5_28, %c0_29, %c0_30] : memref<9x32x8xf32, #tpu.memory_space<vmem>>, vector<1x32x8xf32>
    %60 = vector.shape_cast %59 : vector<1x32x8xf32> to vector<32x8xf32>
    %cst_31 = arith.constant dense<0.000000e+00> : vector<32x256xf32>
    %61 = tpu.matmul %60, %58, %cst_31 {dimension_numbers = #tpu.dot_dimension_numbers<[1], [0], [0], [1], [0, 0, 1, 1], [], []>} : vector<32x8xf32>, vector<8x256xf32>, vector<32x256xf32> -> vector<32x256xf32>
    %62 = arith.addf %55, %61 : vector<32x256xf32>
    %c241_i32 = arith.constant 241 : i32
    %63 = tpu.dynamic_rotate %24 by %c241_i32 dim 1 : vector<8x256xf32>, i32 -> vector<8x256xf32>
    %64 = vector.extract_strided_slice %17 {offsets = [0, 0], sizes = [8, 256], strides = [1, 1]} : vector<32x256xf32> to vector<8x256xf32>
    %65 = arith.mulf %63, %64 : vector<8x256xf32>
    %c6_32 = arith.constant 6 : index
    %c0_33 = arith.constant 0 : index
    %c0_34 = arith.constant 0 : index
    %66 = vector.load %arg4[%c6_32, %c0_33, %c0_34] : memref<9x32x8xf32, #tpu.memory_space<vmem>>, vector<1x32x8xf32>
    %67 = vector.shape_cast %66 : vector<1x32x8xf32> to vector<32x8xf32>
    %cst_35 = arith.constant dense<0.000000e+00> : vector<32x256xf32>
    %68 = tpu.matmul %67, %65, %cst_35 {dimension_numbers = #tpu.dot_dimension_numbers<[1], [0], [0], [1], [0, 0, 1, 1], [], []>} : vector<32x8xf32>, vector<8x256xf32>, vector<32x256xf32> -> vector<32x256xf32>
    %69 = arith.addf %62, %68 : vector<32x256xf32>
    %c240_i32 = arith.constant 240 : i32
    %70 = tpu.dynamic_rotate %24 by %c240_i32 dim 1 : vector<8x256xf32>, i32 -> vector<8x256xf32>
    %71 = vector.extract_strided_slice %20 {offsets = [0, 0], sizes = [8, 256], strides = [1, 1]} : vector<32x256xf32> to vector<8x256xf32>
    %72 = arith.mulf %70, %71 : vector<8x256xf32>
    %c7_36 = arith.constant 7 : index
    %c0_37 = arith.constant 0 : index
    %c0_38 = arith.constant 0 : index
    %73 = vector.load %arg4[%c7_36, %c0_37, %c0_38] : memref<9x32x8xf32, #tpu.memory_space<vmem>>, vector<1x32x8xf32>
    %74 = vector.shape_cast %73 : vector<1x32x8xf32> to vector<32x8xf32>
    %cst_39 = arith.constant dense<0.000000e+00> : vector<32x256xf32>
    %75 = tpu.matmul %74, %72, %cst_39 {dimension_numbers = #tpu.dot_dimension_numbers<[1], [0], [0], [1], [0, 0, 1, 1], [], []>} : vector<32x8xf32>, vector<8x256xf32>, vector<32x256xf32> -> vector<32x256xf32>
    %76 = arith.addf %69, %75 : vector<32x256xf32>
    %c239_i32 = arith.constant 239 : i32
    %77 = tpu.dynamic_rotate %24 by %c239_i32 dim 1 : vector<8x256xf32>, i32 -> vector<8x256xf32>
    %78 = vector.extract_strided_slice %23 {offsets = [0, 0], sizes = [8, 256], strides = [1, 1]} : vector<32x256xf32> to vector<8x256xf32>
    %79 = arith.mulf %77, %78 : vector<8x256xf32>
    %c8_40 = arith.constant 8 : index
    %c0_41 = arith.constant 0 : index
    %c0_42 = arith.constant 0 : index
    %80 = vector.load %arg4[%c8_40, %c0_41, %c0_42] : memref<9x32x8xf32, #tpu.memory_space<vmem>>, vector<1x32x8xf32>
    %81 = vector.shape_cast %80 : vector<1x32x8xf32> to vector<32x8xf32>
    %cst_43 = arith.constant dense<0.000000e+00> : vector<32x256xf32>
    %82 = tpu.matmul %81, %79, %cst_43 {dimension_numbers = #tpu.dot_dimension_numbers<[1], [0], [0], [1], [0, 0, 1, 1], [], []>} : vector<32x8xf32>, vector<8x256xf32>, vector<32x256xf32> -> vector<32x256xf32>
    %83 = arith.addf %76, %82 : vector<32x256xf32>
    %c0_44 = arith.constant 0 : index
    %c0_45 = arith.constant 0 : index
    %84 = vector.load %arg5[%c0_44, %c0_45] : memref<32x1xf32, #tpu.memory_space<vmem>>, vector<32x1xf32>
    %85 = vector.broadcast %84 : vector<32x1xf32> to vector<32x256xf32>
    %86 = arith.addf %83, %85 : vector<32x256xf32>
    %c0_46 = arith.constant 0 : index
    %c0_47 = arith.constant 0 : index
    %87 = memref.load %arg6[%c0_46, %c0_47] : memref<1x1xf32, #tpu.memory_space<smem>>
    %cst_48 = arith.constant 0.000000e+00 : f32
    %88 = vector.broadcast %cst_48 : f32 to vector<32x256xf32>
    %89 = arith.cmpf oge, %86, %88 : vector<32x256xf32>
    %90 = vector.broadcast %87 : f32 to vector<32x256xf32>
    %91 = arith.mulf %90, %86 : vector<32x256xf32>
    %92 = arith.select %89, %86, %91 : vector<32x256xi1>, vector<32x256xf32>
    %c17_i32_49 = arith.constant 17 : i32
    %93 = tpu.dynamic_rotate %92 by %c17_i32_49 dim 1 : vector<32x256xf32>, i32 -> vector<32x256xf32>
    %94 = arith.mulf %93, %2 : vector<32x256xf32>
    %c0_50 = arith.constant 0 : index
    %c0_51 = arith.constant 0 : index
    %c0_52 = arith.constant 0 : index
    %95 = vector.load %arg7[%c0_50, %c0_51, %c0_52] : memref<9x32x32xf32, #tpu.memory_space<vmem>>, vector<1x32x32xf32>
    %96 = vector.shape_cast %95 : vector<1x32x32xf32> to vector<32x32xf32>
    %cst_53 = arith.constant dense<0.000000e+00> : vector<32x256xf32>
    %97 = tpu.matmul %96, %94, %cst_53 {dimension_numbers = #tpu.dot_dimension_numbers<[1], [0], [0], [1], [0, 0, 1, 1], [], []>} : vector<32x32xf32>, vector<32x256xf32>, vector<32x256xf32> -> vector<32x256xf32>
    %c16_i32_54 = arith.constant 16 : i32
    %98 = tpu.dynamic_rotate %92 by %c16_i32_54 dim 1 : vector<32x256xf32>, i32 -> vector<32x256xf32>
    %99 = arith.mulf %98, %5 : vector<32x256xf32>
    %c1_55 = arith.constant 1 : index
    %c0_56 = arith.constant 0 : index
    %c0_57 = arith.constant 0 : index
    %100 = vector.load %arg7[%c1_55, %c0_56, %c0_57] : memref<9x32x32xf32, #tpu.memory_space<vmem>>, vector<1x32x32xf32>
    %101 = vector.shape_cast %100 : vector<1x32x32xf32> to vector<32x32xf32>
    %cst_58 = arith.constant dense<0.000000e+00> : vector<32x256xf32>
    %102 = tpu.matmul %101, %99, %cst_58 {dimension_numbers = #tpu.dot_dimension_numbers<[1], [0], [0], [1], [0, 0, 1, 1], [], []>} : vector<32x32xf32>, vector<32x256xf32>, vector<32x256xf32> -> vector<32x256xf32>
    %103 = arith.addf %97, %102 : vector<32x256xf32>
    %c15_i32_59 = arith.constant 15 : i32
    %104 = tpu.dynamic_rotate %92 by %c15_i32_59 dim 1 : vector<32x256xf32>, i32 -> vector<32x256xf32>
    %105 = arith.mulf %104, %8 : vector<32x256xf32>
    %c2_60 = arith.constant 2 : index
    %c0_61 = arith.constant 0 : index
    %c0_62 = arith.constant 0 : index
    %106 = vector.load %arg7[%c2_60, %c0_61, %c0_62] : memref<9x32x32xf32, #tpu.memory_space<vmem>>, vector<1x32x32xf32>
    %107 = vector.shape_cast %106 : vector<1x32x32xf32> to vector<32x32xf32>
    %cst_63 = arith.constant dense<0.000000e+00> : vector<32x256xf32>
    %108 = tpu.matmul %107, %105, %cst_63 {dimension_numbers = #tpu.dot_dimension_numbers<[1], [0], [0], [1], [0, 0, 1, 1], [], []>} : vector<32x32xf32>, vector<32x256xf32>, vector<32x256xf32> -> vector<32x256xf32>
    %109 = arith.addf %103, %108 : vector<32x256xf32>
    %c1_i32_64 = arith.constant 1 : i32
    %110 = tpu.dynamic_rotate %92 by %c1_i32_64 dim 1 : vector<32x256xf32>, i32 -> vector<32x256xf32>
    %111 = arith.mulf %110, %11 : vector<32x256xf32>
    %c3_65 = arith.constant 3 : index
    %c0_66 = arith.constant 0 : index
    %c0_67 = arith.constant 0 : index
    %112 = vector.load %arg7[%c3_65, %c0_66, %c0_67] : memref<9x32x32xf32, #tpu.memory_space<vmem>>, vector<1x32x32xf32>
    %113 = vector.shape_cast %112 : vector<1x32x32xf32> to vector<32x32xf32>
    %cst_68 = arith.constant dense<0.000000e+00> : vector<32x256xf32>
    %114 = tpu.matmul %113, %111, %cst_68 {dimension_numbers = #tpu.dot_dimension_numbers<[1], [0], [0], [1], [0, 0, 1, 1], [], []>} : vector<32x32xf32>, vector<32x256xf32>, vector<32x256xf32> -> vector<32x256xf32>
    %115 = arith.addf %109, %114 : vector<32x256xf32>
    %c4_69 = arith.constant 4 : index
    %c0_70 = arith.constant 0 : index
    %c0_71 = arith.constant 0 : index
    %116 = vector.load %arg7[%c4_69, %c0_70, %c0_71] : memref<9x32x32xf32, #tpu.memory_space<vmem>>, vector<1x32x32xf32>
    %117 = vector.shape_cast %116 : vector<1x32x32xf32> to vector<32x32xf32>
    %cst_72 = arith.constant dense<0.000000e+00> : vector<32x256xf32>
    %118 = tpu.matmul %117, %92, %cst_72 {dimension_numbers = #tpu.dot_dimension_numbers<[1], [0], [0], [1], [0, 0, 1, 1], [], []>} : vector<32x32xf32>, vector<32x256xf32>, vector<32x256xf32> -> vector<32x256xf32>
    %119 = arith.addf %115, %118 : vector<32x256xf32>
    %c255_i32_73 = arith.constant 255 : i32
    %120 = tpu.dynamic_rotate %92 by %c255_i32_73 dim 1 : vector<32x256xf32>, i32 -> vector<32x256xf32>
    %121 = arith.mulf %120, %14 : vector<32x256xf32>
    %c5_74 = arith.constant 5 : index
    %c0_75 = arith.constant 0 : index
    %c0_76 = arith.constant 0 : index
    %122 = vector.load %arg7[%c5_74, %c0_75, %c0_76] : memref<9x32x32xf32, #tpu.memory_space<vmem>>, vector<1x32x32xf32>
    %123 = vector.shape_cast %122 : vector<1x32x32xf32> to vector<32x32xf32>
    %cst_77 = arith.constant dense<0.000000e+00> : vector<32x256xf32>
    %124 = tpu.matmul %123, %121, %cst_77 {dimension_numbers = #tpu.dot_dimension_numbers<[1], [0], [0], [1], [0, 0, 1, 1], [], []>} : vector<32x32xf32>, vector<32x256xf32>, vector<32x256xf32> -> vector<32x256xf32>
    %125 = arith.addf %119, %124 : vector<32x256xf32>
    %c241_i32_78 = arith.constant 241 : i32
    %126 = tpu.dynamic_rotate %92 by %c241_i32_78 dim 1 : vector<32x256xf32>, i32 -> vector<32x256xf32>
    %127 = arith.mulf %126, %17 : vector<32x256xf32>
    %c6_79 = arith.constant 6 : index
    %c0_80 = arith.constant 0 : index
    %c0_81 = arith.constant 0 : index
    %128 = vector.load %arg7[%c6_79, %c0_80, %c0_81] : memref<9x32x32xf32, #tpu.memory_space<vmem>>, vector<1x32x32xf32>
    %129 = vector.shape_cast %128 : vector<1x32x32xf32> to vector<32x32xf32>
    %cst_82 = arith.constant dense<0.000000e+00> : vector<32x256xf32>
    %130 = tpu.matmul %129, %127, %cst_82 {dimension_numbers = #tpu.dot_dimension_numbers<[1], [0], [0], [1], [0, 0, 1, 1], [], []>} : vector<32x32xf32>, vector<32x256xf32>, vector<32x256xf32> -> vector<32x256xf32>
    %131 = arith.addf %125, %130 : vector<32x256xf32>
    %c240_i32_83 = arith.constant 240 : i32
    %132 = tpu.dynamic_rotate %92 by %c240_i32_83 dim 1 : vector<32x256xf32>, i32 -> vector<32x256xf32>
    %133 = arith.mulf %132, %20 : vector<32x256xf32>
    %c7_84 = arith.constant 7 : index
    %c0_85 = arith.constant 0 : index
    %c0_86 = arith.constant 0 : index
    %134 = vector.load %arg7[%c7_84, %c0_85, %c0_86] : memref<9x32x32xf32, #tpu.memory_space<vmem>>, vector<1x32x32xf32>
    %135 = vector.shape_cast %134 : vector<1x32x32xf32> to vector<32x32xf32>
    %cst_87 = arith.constant dense<0.000000e+00> : vector<32x256xf32>
    %136 = tpu.matmul %135, %133, %cst_87 {dimension_numbers = #tpu.dot_dimension_numbers<[1], [0], [0], [1], [0, 0, 1, 1], [], []>} : vector<32x32xf32>, vector<32x256xf32>, vector<32x256xf32> -> vector<32x256xf32>
    %137 = arith.addf %131, %136 : vector<32x256xf32>
    %c239_i32_88 = arith.constant 239 : i32
    %138 = tpu.dynamic_rotate %92 by %c239_i32_88 dim 1 : vector<32x256xf32>, i32 -> vector<32x256xf32>
    %139 = arith.mulf %138, %23 : vector<32x256xf32>
    %c8_89 = arith.constant 8 : index
    %c0_90 = arith.constant 0 : index
    %c0_91 = arith.constant 0 : index
    %140 = vector.load %arg7[%c8_89, %c0_90, %c0_91] : memref<9x32x32xf32, #tpu.memory_space<vmem>>, vector<1x32x32xf32>
    %141 = vector.shape_cast %140 : vector<1x32x32xf32> to vector<32x32xf32>
    %cst_92 = arith.constant dense<0.000000e+00> : vector<32x256xf32>
    %142 = tpu.matmul %141, %139, %cst_92 {dimension_numbers = #tpu.dot_dimension_numbers<[1], [0], [0], [1], [0, 0, 1, 1], [], []>} : vector<32x32xf32>, vector<32x256xf32>, vector<32x256xf32> -> vector<32x256xf32>
    %143 = arith.addf %137, %142 : vector<32x256xf32>
    %c0_93 = arith.constant 0 : index
    %c0_94 = arith.constant 0 : index
    %144 = vector.load %arg8[%c0_93, %c0_94] : memref<32x1xf32, #tpu.memory_space<vmem>>, vector<32x1xf32>
    %145 = vector.broadcast %144 : vector<32x1xf32> to vector<32x256xf32>
    %146 = arith.addf %143, %145 : vector<32x256xf32>
    %c0_95 = arith.constant 0 : index
    %c0_96 = arith.constant 0 : index
    %147 = memref.load %arg9[%c0_95, %c0_96] : memref<1x1xf32, #tpu.memory_space<smem>>
    %cst_97 = arith.constant 0.000000e+00 : f32
    %148 = vector.broadcast %cst_97 : f32 to vector<32x256xf32>
    %149 = arith.cmpf oge, %146, %148 : vector<32x256xf32>
    %150 = vector.broadcast %147 : f32 to vector<32x256xf32>
    %151 = arith.mulf %150, %146 : vector<32x256xf32>
    %152 = arith.select %149, %146, %151 : vector<32x256xi1>, vector<32x256xf32>
    %c17_i32_98 = arith.constant 17 : i32
    %153 = tpu.dynamic_rotate %152 by %c17_i32_98 dim 1 : vector<32x256xf32>, i32 -> vector<32x256xf32>
    %154 = arith.mulf %153, %2 : vector<32x256xf32>
    %c0_99 = arith.constant 0 : index
    %c0_100 = arith.constant 0 : index
    %c0_101 = arith.constant 0 : index
    %155 = vector.load %arg10[%c0_99, %c0_100, %c0_101] : memref<9x4x32xf32, #tpu.memory_space<vmem>>, vector<1x4x32xf32>
    %156 = vector.shape_cast %155 : vector<1x4x32xf32> to vector<4x32xf32>
    %cst_102 = arith.constant dense<0.000000e+00> : vector<4x256xf32>
    %157 = tpu.matmul %156, %154, %cst_102 {dimension_numbers = #tpu.dot_dimension_numbers<[1], [0], [0], [1], [0, 0, 1, 1], [], []>} : vector<4x32xf32>, vector<32x256xf32>, vector<4x256xf32> -> vector<4x256xf32>
    %c16_i32_103 = arith.constant 16 : i32
    %158 = tpu.dynamic_rotate %152 by %c16_i32_103 dim 1 : vector<32x256xf32>, i32 -> vector<32x256xf32>
    %159 = arith.mulf %158, %5 : vector<32x256xf32>
    %c1_104 = arith.constant 1 : index
    %c0_105 = arith.constant 0 : index
    %c0_106 = arith.constant 0 : index
    %160 = vector.load %arg10[%c1_104, %c0_105, %c0_106] : memref<9x4x32xf32, #tpu.memory_space<vmem>>, vector<1x4x32xf32>
    %161 = vector.shape_cast %160 : vector<1x4x32xf32> to vector<4x32xf32>
    %cst_107 = arith.constant dense<0.000000e+00> : vector<4x256xf32>
    %162 = tpu.matmul %161, %159, %cst_107 {dimension_numbers = #tpu.dot_dimension_numbers<[1], [0], [0], [1], [0, 0, 1, 1], [], []>} : vector<4x32xf32>, vector<32x256xf32>, vector<4x256xf32> -> vector<4x256xf32>
    %163 = arith.addf %157, %162 : vector<4x256xf32>
    %c15_i32_108 = arith.constant 15 : i32
    %164 = tpu.dynamic_rotate %152 by %c15_i32_108 dim 1 : vector<32x256xf32>, i32 -> vector<32x256xf32>
    %165 = arith.mulf %164, %8 : vector<32x256xf32>
    %c2_109 = arith.constant 2 : index
    %c0_110 = arith.constant 0 : index
    %c0_111 = arith.constant 0 : index
    %166 = vector.load %arg10[%c2_109, %c0_110, %c0_111] : memref<9x4x32xf32, #tpu.memory_space<vmem>>, vector<1x4x32xf32>
    %167 = vector.shape_cast %166 : vector<1x4x32xf32> to vector<4x32xf32>
    %cst_112 = arith.constant dense<0.000000e+00> : vector<4x256xf32>
    %168 = tpu.matmul %167, %165, %cst_112 {dimension_numbers = #tpu.dot_dimension_numbers<[1], [0], [0], [1], [0, 0, 1, 1], [], []>} : vector<4x32xf32>, vector<32x256xf32>, vector<4x256xf32> -> vector<4x256xf32>
    %169 = arith.addf %163, %168 : vector<4x256xf32>
    %c1_i32_113 = arith.constant 1 : i32
    %170 = tpu.dynamic_rotate %152 by %c1_i32_113 dim 1 : vector<32x256xf32>, i32 -> vector<32x256xf32>
    %171 = arith.mulf %170, %11 : vector<32x256xf32>
    %c3_114 = arith.constant 3 : index
    %c0_115 = arith.constant 0 : index
    %c0_116 = arith.constant 0 : index
    %172 = vector.load %arg10[%c3_114, %c0_115, %c0_116] : memref<9x4x32xf32, #tpu.memory_space<vmem>>, vector<1x4x32xf32>
    %173 = vector.shape_cast %172 : vector<1x4x32xf32> to vector<4x32xf32>
    %cst_117 = arith.constant dense<0.000000e+00> : vector<4x256xf32>
    %174 = tpu.matmul %173, %171, %cst_117 {dimension_numbers = #tpu.dot_dimension_numbers<[1], [0], [0], [1], [0, 0, 1, 1], [], []>} : vector<4x32xf32>, vector<32x256xf32>, vector<4x256xf32> -> vector<4x256xf32>
    %175 = arith.addf %169, %174 : vector<4x256xf32>
    %c4_118 = arith.constant 4 : index
    %c0_119 = arith.constant 0 : index
    %c0_120 = arith.constant 0 : index
    %176 = vector.load %arg10[%c4_118, %c0_119, %c0_120] : memref<9x4x32xf32, #tpu.memory_space<vmem>>, vector<1x4x32xf32>
    %177 = vector.shape_cast %176 : vector<1x4x32xf32> to vector<4x32xf32>
    %cst_121 = arith.constant dense<0.000000e+00> : vector<4x256xf32>
    %178 = tpu.matmul %177, %152, %cst_121 {dimension_numbers = #tpu.dot_dimension_numbers<[1], [0], [0], [1], [0, 0, 1, 1], [], []>} : vector<4x32xf32>, vector<32x256xf32>, vector<4x256xf32> -> vector<4x256xf32>
    %179 = arith.addf %175, %178 : vector<4x256xf32>
    %c255_i32_122 = arith.constant 255 : i32
    %180 = tpu.dynamic_rotate %152 by %c255_i32_122 dim 1 : vector<32x256xf32>, i32 -> vector<32x256xf32>
    %181 = arith.mulf %180, %14 : vector<32x256xf32>
    %c5_123 = arith.constant 5 : index
    %c0_124 = arith.constant 0 : index
    %c0_125 = arith.constant 0 : index
    %182 = vector.load %arg10[%c5_123, %c0_124, %c0_125] : memref<9x4x32xf32, #tpu.memory_space<vmem>>, vector<1x4x32xf32>
    %183 = vector.shape_cast %182 : vector<1x4x32xf32> to vector<4x32xf32>
    %cst_126 = arith.constant dense<0.000000e+00> : vector<4x256xf32>
    %184 = tpu.matmul %183, %181, %cst_126 {dimension_numbers = #tpu.dot_dimension_numbers<[1], [0], [0], [1], [0, 0, 1, 1], [], []>} : vector<4x32xf32>, vector<32x256xf32>, vector<4x256xf32> -> vector<4x256xf32>
    %185 = arith.addf %179, %184 : vector<4x256xf32>
    %c241_i32_127 = arith.constant 241 : i32
    %186 = tpu.dynamic_rotate %152 by %c241_i32_127 dim 1 : vector<32x256xf32>, i32 -> vector<32x256xf32>
    %187 = arith.mulf %186, %17 : vector<32x256xf32>
    %c6_128 = arith.constant 6 : index
    %c0_129 = arith.constant 0 : index
    %c0_130 = arith.constant 0 : index
    %188 = vector.load %arg10[%c6_128, %c0_129, %c0_130] : memref<9x4x32xf32, #tpu.memory_space<vmem>>, vector<1x4x32xf32>
    %189 = vector.shape_cast %188 : vector<1x4x32xf32> to vector<4x32xf32>
    %cst_131 = arith.constant dense<0.000000e+00> : vector<4x256xf32>
    %190 = tpu.matmul %189, %187, %cst_131 {dimension_numbers = #tpu.dot_dimension_numbers<[1], [0], [0], [1], [0, 0, 1, 1], [], []>} : vector<4x32xf32>, vector<32x256xf32>, vector<4x256xf32> -> vector<4x256xf32>
    %191 = arith.addf %185, %190 : vector<4x256xf32>
    %c240_i32_132 = arith.constant 240 : i32
    %192 = tpu.dynamic_rotate %152 by %c240_i32_132 dim 1 : vector<32x256xf32>, i32 -> vector<32x256xf32>
    %193 = arith.mulf %192, %20 : vector<32x256xf32>
    %c7_133 = arith.constant 7 : index
    %c0_134 = arith.constant 0 : index
    %c0_135 = arith.constant 0 : index
    %194 = vector.load %arg10[%c7_133, %c0_134, %c0_135] : memref<9x4x32xf32, #tpu.memory_space<vmem>>, vector<1x4x32xf32>
    %195 = vector.shape_cast %194 : vector<1x4x32xf32> to vector<4x32xf32>
    %cst_136 = arith.constant dense<0.000000e+00> : vector<4x256xf32>
    %196 = tpu.matmul %195, %193, %cst_136 {dimension_numbers = #tpu.dot_dimension_numbers<[1], [0], [0], [1], [0, 0, 1, 1], [], []>} : vector<4x32xf32>, vector<32x256xf32>, vector<4x256xf32> -> vector<4x256xf32>
    %197 = arith.addf %191, %196 : vector<4x256xf32>
    %c239_i32_137 = arith.constant 239 : i32
    %198 = tpu.dynamic_rotate %152 by %c239_i32_137 dim 1 : vector<32x256xf32>, i32 -> vector<32x256xf32>
    %199 = arith.mulf %198, %23 : vector<32x256xf32>
    %c8_138 = arith.constant 8 : index
    %c0_139 = arith.constant 0 : index
    %c0_140 = arith.constant 0 : index
    %200 = vector.load %arg10[%c8_138, %c0_139, %c0_140] : memref<9x4x32xf32, #tpu.memory_space<vmem>>, vector<1x4x32xf32>
    %201 = vector.shape_cast %200 : vector<1x4x32xf32> to vector<4x32xf32>
    %cst_141 = arith.constant dense<0.000000e+00> : vector<4x256xf32>
    %202 = tpu.matmul %201, %199, %cst_141 {dimension_numbers = #tpu.dot_dimension_numbers<[1], [0], [0], [1], [0, 0, 1, 1], [], []>} : vector<4x32xf32>, vector<32x256xf32>, vector<4x256xf32> -> vector<4x256xf32>
    %203 = arith.addf %197, %202 : vector<4x256xf32>
    %c0_142 = arith.constant 0 : index
    %c0_143 = arith.constant 0 : index
    %204 = vector.load %arg11[%c0_142, %c0_143] : memref<4x1xf32, #tpu.memory_space<vmem>>, vector<4x1xf32>
    %205 = vector.broadcast %204 : vector<4x1xf32> to vector<4x256xf32>
    %206 = arith.addf %203, %205 : vector<4x256xf32>
    %c0_144 = arith.constant 0 : index
    %c0_145 = arith.constant 0 : index
    %207 = vector.load %arg2[%c0_144, %c0_145] : memref<4x256xf32, #tpu.memory_space<vmem>>, vector<4x256xf32>
    %208 = arith.addf %207, %206 : vector<4x256xf32>
    %c0_146 = arith.constant 0 : index
    %c0_147 = arith.constant 0 : index
    %209 = vector.load %arg12[%c0_146, %c0_147] : memref<4x256xf32, #tpu.memory_space<vmem>>, vector<4x256xf32>
    tpu.vector_store %arg12[%c0_146, %c0_147], %208 {strides = array<i32>} : memref<4x256xf32, #tpu.memory_space<vmem>>, vector<4x256xf32>,
    return
  }
  func.func @transform_0(%arg0: i32) -> (i32, i32) {
    %c0_i32 = arith.constant 0 : i32
    %c0_i32_0 = arith.constant 0 : i32
    return %c0_i32, %arg0 : i32, i32
  }
  func.func @transform_1(%arg0: i32) -> (i32, i32) {
    %c0_i32 = arith.constant 0 : i32
    %c0_i32_0 = arith.constant 0 : i32
    return %c0_i32, %arg0 : i32, i32
  }
  func.func @transform_2(%arg0: i32) -> (i32, i32) {
    %c0_i32 = arith.constant 0 : i32
    %c0_i32_0 = arith.constant 0 : i32
    %c0_i32_1 = arith.constant 0 : i32
    return %c0_i32, %c0_i32_0 : i32, i32
  }
  func.func @transform_3(%arg0: i32) -> (i32, i32, i32) {
    %c0_i32 = arith.constant 0 : i32
    %c0_i32_0 = arith.constant 0 : i32
    %c0_i32_1 = arith.constant 0 : i32
    %c0_i32_2 = arith.constant 0 : i32
    return %c0_i32, %c0_i32_0, %c0_i32_1 : i32, i32, i32
  }
  func.func @transform_4(%arg0: i32) -> (i32, i32) {
    %c0_i32 = arith.constant 0 : i32
    %c0_i32_0 = arith.constant 0 : i32
    %c0_i32_1 = arith.constant 0 : i32
    return %c0_i32, %c0_i32_0 : i32, i32
  }
  func.func @transform_5(%arg0: i32) -> (i32, i32) {
    %c0_i32 = arith.constant 0 : i32
    %c0_i32_0 = arith.constant 0 : i32
    %c0_i32_1 = arith.constant 0 : i32
    return %c0_i32, %c0_i32_0 : i32, i32
  }
  func.func @transform_6(%arg0: i32) -> (i32, i32, i32) {
    %c0_i32 = arith.constant 0 : i32
    %c0_i32_0 = arith.constant 0 : i32
    %c0_i32_1 = arith.constant 0 : i32
    %c0_i32_2 = arith.constant 0 : i32
    return %c0_i32, %c0_i32_0, %c0_i32_1 : i32, i32, i32
  }
  func.func @transform_7(%arg0: i32) -> (i32, i32) {
    %c0_i32 = arith.constant 0 : i32
    %c0_i32_0 = arith.constant 0 : i32
    %c0_i32_1 = arith.constant 0 : i32
    return %c0_i32, %c0_i32_0 : i32, i32
  }
  func.func @transform_8(%arg0: i32) -> (i32, i32) {
    %c0_i32 = arith.constant 0 : i32
    %c0_i32_0 = arith.constant 0 : i32
    %c0_i32_1 = arith.constant 0 : i32
    return %c0_i32, %c0_i32_0 : i32, i32
  }
  func.func @transform_9(%arg0: i32) -> (i32, i32, i32) {
    %c0_i32 = arith.constant 0 : i32
    %c0_i32_0 = arith.constant 0 : i32
    %c0_i32_1 = arith.constant 0 : i32
    %c0_i32_2 = arith.constant 0 : i32
    return %c0_i32, %c0_i32_0, %c0_i32_1 : i32, i32, i32
  }
  func.func @transform_10(%arg0: i32) -> (i32, i32) {
    %c0_i32 = arith.constant 0 : i32
    %c0_i32_0 = arith.constant 0 : i32
    %c0_i32_1 = arith.constant 0 : i32
    return %c0_i32, %c0_i32_0 : i32, i32
  }
  func.func @transform_11(%arg0: i32) -> (i32, i32) {
    %c0_i32 = arith.constant 0 : i32
    %c0_i32_0 = arith.constant 0 : i32
    return %c0_i32, %arg0 : i32, i32
  }
}

</mosaic_0001>

<llo_original>
// kernel: tpu_custom_call.1
$region0: #{tpu_custom_call.1}
  #allocation0 [shape = 'u32[]', space=smem, size = 0x4, offset = 0x4, fixed_abs, tag = 'smem constant byte address 0x4 - core index']
  #allocation1 [shape = 'u32[144,128]{1,0:T(1,128)}', space=vmem, size = 0x12000, scoped, tag = 'internal scratch']
  #allocation2 [shape = 'f32[1,1]{1,0:T(1,128)S(6)}', space=smem, size = 0x200, scoped, tag = 'scoped memory for tpu_custom_call.1']
  #allocation3 [shape = 'f32[1,1]{1,0:T(1,128)S(6)}', space=smem, size = 0x200, scoped, tag = 'scoped memory for tpu_custom_call.1']
  %s0 = inlined_call_operand.vmem [shape: f32[8,512], index: 0, kind: input, shape index: {}]
  %s1 = inlined_call_operand.vmem [shape: f32[4,512], index: 1, kind: input, shape index: {}]
  %s2 = inlined_call_operand.vmem [shape: f32[9,256], index: 2, kind: input, shape index: {}]
  %s3 = inlined_call_operand.vmem [shape: f32[9,32,8], index: 3, kind: input, shape index: {}]
  %s4 = inlined_call_operand.vmem [shape: f32[32,1], index: 4, kind: input, shape index: {}]
  %s5 = inlined_call_operand.<no memory space> [shape: f32[1,1], index: 5, kind: input, shape index: {}]
  %s6 = inlined_call_operand.vmem [shape: f32[9,32,32], index: 6, kind: input, shape index: {}]
  %s7 = inlined_call_operand.vmem [shape: f32[32,1], index: 7, kind: input, shape index: {}]
  %s8 = inlined_call_operand.<no memory space> [shape: f32[1,1], index: 8, kind: input, shape index: {}]
  %s9 = inlined_call_operand.vmem [shape: f32[9,4,32], index: 9, kind: input, shape index: {}]
  %s10 = inlined_call_operand.vmem [shape: f32[4,1], index: 10, kind: input, shape index: {}]
  %s11 = inlined_call_operand.hbm [shape: f32[4,512], index: 11, kind: output, shape index: {}]
  %s12 = sld [smem:[#allocation0]]
  $region77: #{tpu_custom_call.1} parent=0
    _
  %s14 = ssub.s32 1, %s12
  %s15 = scalar_select 0, %s14, %s12
  %16 = sst [smem:[#allocation2]] %s5
  %17 = sst [smem:[#allocation3]] %s8
  $region1: #{tpu_custom_call.1} parent=0
    #allocation4 [shape = 'u8[8192]{0}', space=vmem, size = 0x2000, scoped, tag = 'output window, operand 0']
    #allocation5 [shape = 's32[2]{0}', space=sflag, size = 0x8, scoped, tag = 'scoped memory for tpu_custom_call.1']
    %18 = vsyncpa [#allocation5], 0
    %s19 = scalar_lea.sflag [#allocation5], 1
    %20 = vsyncpa %s19, 0
    loop: start=0, step=1, limit=4
    $region2: #{tpu_custom_call.1} parent=1 // loop_pre_header
      _
    $region3: #{tpu_custom_call.1} parent=1 // loop_header
      %s22 = sphi 0, %s26
      %p23 = scmp.ge.s32.totalorder %s22, 4
      %s32 = sphi 0, %s34
      %s35 = sphi 0, %s32
      %s36 = sphi 0, %s35
      %s52 = sphi 0, %s36
      %s58 = sphi 0, %s60
      %s61 = sphi 0, %s58
      %s62 = sphi 0, %s61
      %s78 = sphi 0, %s62
      %s82 = sphi 0, %s82
      %s84 = sphi 0, %s82
      %s85 = sphi 0, %s84
      %s99 = sphi 0, %s85
      %s103 = sphi 0, %s103
      %s105 = sphi 0, %s103
      %s106 = sphi 0, %s105
      %s120 = sphi 0, %s106
      %s124 = sphi 0, %s124
      %s126 = sphi 0, %s124
      %s127 = sphi 0, %s126
      %s141 = sphi 0, %s127
      %s145 = sphi 0, %s145
      %s147 = sphi 0, %s145
      %s148 = sphi 0, %s147
      %s162 = sphi 0, %s148
      %s166 = sphi 0, %s166
      %s168 = sphi 0, %s166
      %s169 = sphi 0, %s168
      %s183 = sphi 0, %s169
      %s187 = sphi 0, %s187
      %s189 = sphi 0, %s187
      %s190 = sphi 0, %s189
      %s204 = sphi 0, %s190
      %s208 = sphi 0, %s208
      %s210 = sphi 0, %s208
      %s211 = sphi 0, %s210
      %s225 = sphi 0, %s211
      %s229 = sphi 0, %s229
      %s231 = sphi 0, %s229
      %s232 = sphi 0, %s231
      %s246 = sphi 0, %s232
      %s250 = sphi 0, %s250
      %s252 = sphi 0, %s250
      %s253 = sphi 0, %s252
      %s267 = sphi 0, %s253
      %s273 = sphi 0, %s275
      %s276 = sphi 0, %s273
      %s277 = sphi 0, %s276
      %s293 = sphi 0, %s277
    $region4: #{tpu_custom_call.1} parent=1 // loop_header_branch
      %25 = sbr.rel (%p23) target = $region8
    $region5: #{tpu_custom_call.1} parent=1 // loop_body
      %s27 = ssub.s32 %s22, 1
      %s28 = ssub.s32 %s22, 2
      %s29 = sadd.s32 %s22, 1
      %s30 = ssub.s32 %s22, %s29
      %p31 = scmp.eq.s32.totalorder %s30, 0
      %s33 = sadd.s32 %s32, 1
      %s34 = scalar_select %p31, %s32, %s33
      %p37 = pneg %p31
      %p38 = scmp.eq.s32.totalorder %s22, 1
      %p39 = por %p37, %p38
      %p40 = scmp.ne.s32.totalorder %s32, %s35
      %p41 = scmp.eq.s32.totalorder %s22, 0
      %p42 = por %p40, %p41
      %p43 = scmp.ne.s32.totalorder %s32, %s35
      %p44 = scmp.eq.s32.totalorder %s27, 1
      %p45 = por %p43, %p44
      %p46 = scmp.ne.s32.totalorder %s35, %s36
      %p47 = scmp.eq.s32.totalorder %s27, 0
      %p48 = por %p46, %p47
      %p49 = scmp.ne.s32.totalorder %s35, %s36
      %p50 = scmp.eq.s32.totalorder %s28, 1
      %p51 = por %p49, %p50
      %p53 = scmp.ne.s32.totalorder %s36, %s52
      %p54 = scmp.eq.s32.totalorder %s28, 0
      %p55 = por %p53, %p54
      %s56 = ssub.s32 %s22, %s29
      %p57 = scmp.eq.s32.totalorder %s56, 0
      %s59 = sadd.s32 %s58, 1
      %s60 = scalar_select %p57, %s58, %s59
      %p63 = pneg %p57
      %p64 = scmp.eq.s32.totalorder %s22, 1
      %p65 = por %p63, %p64
      %p66 = scmp.ne.s32.totalorder %s58, %s61
      %p67 = scmp.eq.s32.totalorder %s22, 0
      %p68 = por %p66, %p67
      %p69 = scmp.ne.s32.totalorder %s58, %s61
      %p70 = scmp.eq.s32.totalorder %s27, 1
      %p71 = por %p69, %p70
      %p72 = scmp.ne.s32.totalorder %s61, %s62
      %p73 = scmp.eq.s32.totalorder %s27, 0
      %p74 = por %p72, %p73
      %p75 = scmp.ne.s32.totalorder %s61, %s62
      %p76 = scmp.eq.s32.totalorder %s28, 1
      %p77 = por %p75, %p76
      %p79 = scmp.ne.s32.totalorder %s62, %s78
      %p80 = scmp.eq.s32.totalorder %s28, 0
      %p81 = por %p79, %p80
      %s83 = sadd.s32 %s82, 1
      %p86 = scmp.eq.s32.totalorder %s22, 1
      %p87 = scmp.ne.s32.totalorder %s82, %s84
      %p88 = scmp.eq.s32.totalorder %s22, 0
      %p89 = por %p87, %p88
      %p90 = scmp.ne.s32.totalorder %s82, %s84
      %p91 = scmp.eq.s32.totalorder %s27, 1
      %p92 = por %p90, %p91
      %p93 = scmp.ne.s32.totalorder %s84, %s85
      %p94 = scmp.eq.s32.totalorder %s27, 0
      %p95 = por %p93, %p94
      %p96 = scmp.ne.s32.totalorder %s84, %s85
      %p97 = scmp.eq.s32.totalorder %s28, 1
      %p98 = por %p96, %p97
      %p100 = scmp.ne.s32.totalorder %s85, %s99
      %p101 = scmp.eq.s32.totalorder %s28, 0
      %p102 = por %p100, %p101
      %s104 = sadd.s32 %s103, 1
      %p107 = scmp.eq.s32.totalorder %s22, 1
      %p108 = scmp.ne.s32.totalorder %s103, %s105
      %p109 = scmp.eq.s32.totalorder %s22, 0
      %p110 = por %p108, %p109
      %p111 = scmp.ne.s32.totalorder %s103, %s105
      %p112 = scmp.eq.s32.totalorder %s27, 1
      %p113 = por %p111, %p112
      %p114 = scmp.ne.s32.totalorder %s105, %s106
      %p115 = scmp.eq.s32.totalorder %s27, 0
      %p116 = por %p114, %p115
      %p117 = scmp.ne.s32.totalorder %s105, %s106
      %p118 = scmp.eq.s32.totalorder %s28, 1
      %p119 = por %p117, %p118
      %p121 = scmp.ne.s32.totalorder %s106, %s120
      %p122 = scmp.eq.s32.totalorder %s28, 0
      %p123 = por %p121, %p122
      %s125 = sadd.s32 %s124, 1
      %p128 = scmp.eq.s32.totalorder %s22, 1
      %p129 = scmp.ne.s32.totalorder %s124, %s126
      %p130 = scmp.eq.s32.totalorder %s22, 0
      %p131 = por %p129, %p130
      %p132 = scmp.ne.s32.totalorder %s124, %s126
      %p133 = scmp.eq.s32.totalorder %s27, 1
      %p134 = por %p132, %p133
      %p135 = scmp.ne.s32.totalorder %s126, %s127
      %p136 = scmp.eq.s32.totalorder %s27, 0
      %p137 = por %p135, %p136
      %p138 = scmp.ne.s32.totalorder %s126, %s127
      %p139 = scmp.eq.s32.totalorder %s28, 1
      %p140 = por %p138, %p139
      %p142 = scmp.ne.s32.totalorder %s127, %s141
      %p143 = scmp.eq.s32.totalorder %s28, 0
      %p144 = por %p142, %p143
      %s146 = sadd.s32 %s145, 1
      %p149 = scmp.eq.s32.totalorder %s22, 1
      %p150 = scmp.ne.s32.totalorder %s145, %s147
      %p151 = scmp.eq.s32.totalorder %s22, 0
      %p152 = por %p150, %p151
      %p153 = scmp.ne.s32.totalorder %s145, %s147
      %p154 = scmp.eq.s32.totalorder %s27, 1
      %p155 = por %p153, %p154
      %p156 = scmp.ne.s32.totalorder %s147, %s148
      %p157 = scmp.eq.s32.totalorder %s27, 0
      %p158 = por %p156, %p157
      %p159 = scmp.ne.s32.totalorder %s147, %s148
      %p160 = scmp.eq.s32.totalorder %s28, 1
      %p161 = por %p159, %p160
      %p163 = scmp.ne.s32.totalorder %s148, %s162
      %p164 = scmp.eq.s32.totalorder %s28, 0
      %p165 = por %p163, %p164
      %s167 = sadd.s32 %s166, 1
      %p170 = scmp.eq.s32.totalorder %s22, 1
      %p171 = scmp.ne.s32.totalorder %s166, %s168
      %p172 = scmp.eq.s32.totalorder %s22, 0
      %p173 = por %p171, %p172
      %p174 = scmp.ne.s32.totalorder %s166, %s168
      %p175 = scmp.eq.s32.totalorder %s27, 1
      %p176 = por %p174, %p175
      %p177 = scmp.ne.s32.totalorder %s168, %s169
      %p178 = scmp.eq.s32.totalorder %s27, 0
      %p179 = por %p177, %p178
      %p180 = scmp.ne.s32.totalorder %s168, %s169
      %p181 = scmp.eq.s32.totalorder %s28, 1
      %p182 = por %p180, %p181
      %p184 = scmp.ne.s32.totalorder %s169, %s183
      %p185 = scmp.eq.s32.totalorder %s28, 0
      %p186 = por %p184, %p185
      %s188 = sadd.s32 %s187, 1
      %p191 = scmp.eq.s32.totalorder %s22, 1
      %p192 = scmp.ne.s32.totalorder %s187, %s189
      %p193 = scmp.eq.s32.totalorder %s22, 0
      %p194 = por %p192, %p193
      %p195 = scmp.ne.s32.totalorder %s187, %s189
      %p196 = scmp.eq.s32.totalorder %s27, 1
      %p197 = por %p195, %p196
      %p198 = scmp.ne.s32.totalorder %s189, %s190
      %p199 = scmp.eq.s32.totalorder %s27, 0
      %p200 = por %p198, %p199
      %p201 = scmp.ne.s32.totalorder %s189, %s190
      %p202 = scmp.eq.s32.totalorder %s28, 1
      %p203 = por %p201, %p202
      %p205 = scmp.ne.s32.totalorder %s190, %s204
      %p206 = scmp.eq.s32.totalorder %s28, 0
      %p207 = por %p205, %p206
      %s209 = sadd.s32 %s208, 1
      %p212 = scmp.eq.s32.totalorder %s22, 1
      %p213 = scmp.ne.s32.totalorder %s208, %s210
      %p214 = scmp.eq.s32.totalorder %s22, 0
      %p215 = por %p213, %p214
      %p216 = scmp.ne.s32.totalorder %s208, %s210
      %p217 = scmp.eq.s32.totalorder %s27, 1
      %p218 = por %p216, %p217
      %p219 = scmp.ne.s32.totalorder %s210, %s211
      %p220 = scmp.eq.s32.totalorder %s27, 0
      %p221 = por %p219, %p220
      %p222 = scmp.ne.s32.totalorder %s210, %s211
      %p223 = scmp.eq.s32.totalorder %s28, 1
      %p224 = por %p222, %p223
      %p226 = scmp.ne.s32.totalorder %s211, %s225
      %p227 = scmp.eq.s32.totalorder %s28, 0
      %p228 = por %p226, %p227
      %s230 = sadd.s32 %s229, 1
      %p233 = scmp.eq.s32.totalorder %s22, 1
      %p234 = scmp.ne.s32.totalorder %s229, %s231
      %p235 = scmp.eq.s32.totalorder %s22, 0
      %p236 = por %p234, %p235
      %p237 = scmp.ne.s32.totalorder %s229, %s231
      %p238 = scmp.eq.s32.totalorder %s27, 1
      %p239 = por %p237, %p238
      %p240 = scmp.ne.s32.totalorder %s231, %s232
      %p241 = scmp.eq.s32.totalorder %s27, 0
      %p242 = por %p240, %p241
      %p243 = scmp.ne.s32.totalorder %s231, %s232
      %p244 = scmp.eq.s32.totalorder %s28, 1
      %p245 = por %p243, %p244
      %p247 = scmp.ne.s32.totalorder %s232, %s246
      %p248 = scmp.eq.s32.totalorder %s28, 0
      %p249 = por %p247, %p248
      %s251 = sadd.s32 %s250, 1
      %p254 = scmp.eq.s32.totalorder %s22, 1
      %p255 = scmp.ne.s32.totalorder %s250, %s252
      %p256 = scmp.eq.s32.totalorder %s22, 0
      %p257 = por %p255, %p256
      %p258 = scmp.ne.s32.totalorder %s250, %s252
      %p259 = scmp.eq.s32.totalorder %s27, 1
      %p260 = por %p258, %p259
      %p261 = scmp.ne.s32.totalorder %s252, %s253
      %p262 = scmp.eq.s32.totalorder %s27, 0
      %p263 = por %p261, %p262
      %p264 = scmp.ne.s32.totalorder %s252, %s253
      %p265 = scmp.eq.s32.totalorder %s28, 1
      %p266 = por %p264, %p265
      %p268 = scmp.ne.s32.totalorder %s253, %s267
      %p269 = scmp.eq.s32.totalorder %s28, 0
      %p270 = por %p268, %p269
      %s271 = ssub.s32 %s22, %s29
      %p272 = scmp.eq.s32.totalorder %s271, 0
      %s274 = sadd.s32 %s273, 1
      %s275 = scalar_select %p272, %s273, %s274
      %p278 = pneg %p272
      %p279 = scmp.eq.s32.totalorder %s22, 1
      %p280 = por %p278, %p279
      %p281 = scmp.ne.s32.totalorder %s273, %s276
      %p282 = scmp.eq.s32.totalorder %s22, 0
      %p283 = por %p281, %p282
      %p284 = scmp.ne.s32.totalorder %s273, %s276
      %p285 = scmp.eq.s32.totalorder %s27, 1
      %p286 = por %p284, %p285
      %p287 = scmp.ne.s32.totalorder %s276, %s277
      %p288 = scmp.eq.s32.totalorder %s27, 0
      %p289 = por %p287, %p288
      %p290 = scmp.ne.s32.totalorder %s276, %s277
      %p291 = scmp.eq.s32.totalorder %s28, 1
      %p292 = por %p290, %p291
      %p294 = scmp.ne.s32.totalorder %s277, %s293
      %p295 = scmp.eq.s32.totalorder %s28, 0
      %p296 = por %p294, %p295
      %p297 = scmp.le.s32.totalorder 1, %s22
      %p298 = scmp.lt.s32.totalorder %s22, 3
      %p299 = pnand %p297, %p298
      %p300 = pneg %p299
      // Predicated region
      $region9: #{tpu_custom_call.1} parent=5 // pred_check
        _
      $region10: #{tpu_custom_call.1} parent=5 // pred_check_branch
        %302 = sbr.rel (%p299) target = $region12
      $region11: #{tpu_custom_call.1} parent=5 // pred_region
        %s303 = ssub.s32 %s22, 1
        // Predicated region
        $region13: #{tpu_custom_call.1} parent=11 // pred_check
          %p304 = pneg %p95
        $region14: #{tpu_custom_call.1} parent=11 // pred_check_branch
          %306 = sbr.rel (%p304) target = $region16
        $region15: #{tpu_custom_call.1} parent=11 // pred_region
          _
        $region16: #{tpu_custom_call.1} parent=11 // pred_fallthru
          _
        // Predicated region
        $region17: #{tpu_custom_call.1} parent=11 // pred_check
          %p307 = pneg %p116
        $region18: #{tpu_custom_call.1} parent=11 // pred_check_branch
          %309 = sbr.rel (%p307) target = $region20
        $region19: #{tpu_custom_call.1} parent=11 // pred_region
          _
        $region20: #{tpu_custom_call.1} parent=11 // pred_fallthru
          _
        // Predicated region
        $region21: #{tpu_custom_call.1} parent=11 // pred_check
          %p310 = pneg %p137
        $region22: #{tpu_custom_call.1} parent=11 // pred_check_branch
          %312 = sbr.rel (%p310) target = $region24
        $region23: #{tpu_custom_call.1} parent=11 // pred_region
          _
        $region24: #{tpu_custom_call.1} parent=11 // pred_fallthru
          _
        // Predicated region
        $region25: #{tpu_custom_call.1} parent=11 // pred_check
          %p313 = pneg %p158
        $region26: #{tpu_custom_call.1} parent=11 // pred_check_branch
          %315 = sbr.rel (%p313) target = $region28
        $region27: #{tpu_custom_call.1} parent=11 // pred_region
          _
        $region28: #{tpu_custom_call.1} parent=11 // pred_fallthru
          _
        // Predicated region
        $region29: #{tpu_custom_call.1} parent=11 // pred_check
          %p316 = pneg %p179
        $region30: #{tpu_custom_call.1} parent=11 // pred_check_branch
          %318 = sbr.rel (%p316) target = $region32
        $region31: #{tpu_custom_call.1} parent=11 // pred_region
          _
        $region32: #{tpu_custom_call.1} parent=11 // pred_fallthru
          _
        // Predicated region
        $region33: #{tpu_custom_call.1} parent=11 // pred_check
          %p319 = pneg %p200
        $region34: #{tpu_custom_call.1} parent=11 // pred_check_branch
          %321 = sbr.rel (%p319) target = $region36
        $region35: #{tpu_custom_call.1} parent=11 // pred_region
          _
        $region36: #{tpu_custom_call.1} parent=11 // pred_fallthru
          _
        // Predicated region
        $region37: #{tpu_custom_call.1} parent=11 // pred_check
          %p322 = pneg %p221
        $region38: #{tpu_custom_call.1} parent=11 // pred_check_branch
          %324 = sbr.rel (%p322) target = $region40
        $region39: #{tpu_custom_call.1} parent=11 // pred_region
          _
        $region40: #{tpu_custom_call.1} parent=11 // pred_fallthru
          _
        // Predicated region
        $region41: #{tpu_custom_call.1} parent=11 // pred_check
          %p325 = pneg %p242
        $region42: #{tpu_custom_call.1} parent=11 // pred_check_branch
          %327 = sbr.rel (%p325) target = $region44
        $region43: #{tpu_custom_call.1} parent=11 // pred_region
          _
        $region44: #{tpu_custom_call.1} parent=11 // pred_fallthru
          _
        // Predicated region
        $region45: #{tpu_custom_call.1} parent=11 // pred_check
          %p328 = pneg %p263
        $region46: #{tpu_custom_call.1} parent=11 // pred_check_branch
          %330 = sbr.rel (%p328) target = $region48
        $region47: #{tpu_custom_call.1} parent=11 // pred_region
          _
        $region48: #{tpu_custom_call.1} parent=11 // pred_fallthru
          _
      $region12: #{tpu_custom_call.1} parent=5 // pred_fallthru
        _
      %p331 = scmp.lt.s32.totalorder %s22, 2
      // Predicated region
      $region49: #{tpu_custom_call.1} parent=5 // pred_check
        %p332 = pneg %p331
      $region50: #{tpu_custom_call.1} parent=5 // pred_check_branch
        %334 = sbr.rel (%p332) target = $region52
      $region51: #{tpu_custom_call.1} parent=5 // pred_region
        // Predicated region
        $region53: #{tpu_custom_call.1} parent=51 // pred_check
          %p335 = pneg %p42
        $region54: #{tpu_custom_call.1} parent=51 // pred_check_branch
          %337 = sbr.rel (%p335) target = $region56
        $region55: #{tpu_custom_call.1} parent=51 // pred_region
          %s338 = smul.u32 2, %s22
          %p339 = scmp.lt.s32.totalorder %s338, 3
          %s340 = scalar_select %p339, %s338, 3
          %s341 = smul.addr %s340, 8
          %s342 = scalar_lea.vmem %s0, %s341
          %s343 = smul.u32 2, %s22
        $region56: #{tpu_custom_call.1} parent=51 // pred_fallthru
          _
        // Predicated region
        $region57: #{tpu_custom_call.1} parent=51 // pred_check
          %p344 = pneg %p68
        $region58: #{tpu_custom_call.1} parent=51 // pred_check_branch
          %346 = sbr.rel (%p344) target = $region60
        $region59: #{tpu_custom_call.1} parent=51 // pred_region
          %s347 = smul.u32 2, %s22
          %p348 = scmp.lt.s32.totalorder %s347, 3
          %s349 = scalar_select %p348, %s347, 3
          %s350 = smul.addr %s349, 4
          %s351 = scalar_lea.vmem %s1, %s350
          %s352 = smul.u32 2, %s22
        $region60: #{tpu_custom_call.1} parent=51 // pred_fallthru
          _
      $region52: #{tpu_custom_call.1} parent=5 // pred_fallthru
        _
      %p353 = scmp.le.s32.totalorder 1, %s22
      %p354 = scmp.lt.s32.totalorder %s22, 3
      %p355 = pnand %p353, %p354
      %p356 = pneg %p355
      // Predicated region
      $region61: #{tpu_custom_call.1} parent=5 // pred_check
        _
      $region62: #{tpu_custom_call.1} parent=5 // pred_check_branch
        %358 = sbr.rel (%p355) target = $region64
      $region63: #{tpu_custom_call.1} parent=5 // pred_region
        %s359 = ssub.s32 %s22, 1
        %s360 = smul.u32 2, %s27
        %p361 = scmp.lt.s32.totalorder %s360, 3
        %s362 = scalar_select %p361, %s360, 3
        %s363 = smul.addr %s362, 8
        %s364 = scalar_lea.vmem %s0, %s363
        %p365 = pneg %p48
        %p366 = pneg %p45
        %s367 = smul.u32 2, %s27
        %p368 = scmp.lt.s32.totalorder %s367, 3
        %s369 = scalar_select %p368, %s367, 3
        %s370 = smul.addr %s369, 4
        %s371 = scalar_lea.vmem %s1, %s370
        %p372 = pneg %p74
        %p373 = pneg %p71
        %p374 = pneg %p95
        %p375 = pneg %p92
        %p376 = pneg %p116
        %p377 = pneg %p113
        %p378 = pneg %p137
        %p379 = pneg %p134
        %p380 = pneg %p158
        %p381 = pneg %p155
        %p382 = pneg %p179
        %p383 = pneg %p176
        %p384 = pneg %p200
        %p385 = pneg %p197
        %p386 = pneg %p221
        %p387 = pneg %p218
        %p388 = pneg %p242
        %p389 = pneg %p239
        %p390 = pneg %p263
        %p391 = pneg %p260
        %p392 = pneg %p289
        %p393 = pneg %p286
        %s394 = sand.u32 %s276, 1
        %s395 = scalar_lea.sflag [#allocation5], %s394
        %s396 = sand.u32 %s276, 1
        %s397 = smul.addr %s396, 8
        %s398 = scalar_lea.vmem [#allocation4], %s397
        %s399 = smul.u32 2, %s27
        %p400 = scmp.lt.s32.totalorder %s399, 3
        %s401 = scalar_select %p400, %s399, 3
        %s402 = smul.addr %s401, 8
        %s403 = scalar_lea.vmem %s0, %s402
        %s404 = smul.u32 2, %s27
        %s405 = smul.u32 2, %s27
        %p406 = scmp.lt.s32.totalorder %s405, 3
        %s407 = scalar_select %p406, %s405, 3
        %s408 = smul.addr %s407, 4
        %s409 = scalar_lea.vmem %s1, %s408
        %s410 = smul.u32 2, %s27
        %s411 = smul.u32 2, %s27
        %v412 = vld [vmem:[%s2] ss:$8 sm:$0x3]
        %v414 = vlaneseq
        %v415 = vshrl.u32 %v414, 7
        %v416 = vsub.s32 0, %v415
        %v417 = vrot.slane %v412, %v416
        %v418 = vlaneseq
        %v419 = vshrl.u32 %v418, 7
        %v420 = vsub.s32 1, %v419
        %v421 = vrot.slane %v412, %v420
        %s424 = scalar_lea.vmem %s2, 1
        %v425 = vld [vmem:[%s424] ss:$8 sm:$0x3]
        %v427 = vlaneseq
        %v428 = vshrl.u32 %v427, 7
        %v429 = vsub.s32 0, %v428
        %v430 = vrot.slane %v425, %v429
        %v431 = vlaneseq
        %v432 = vshrl.u32 %v431, 7
        %v433 = vsub.s32 1, %v432
        %v434 = vrot.slane %v425, %v433
        %s437 = scalar_lea.vmem %s2, 2
        %v438 = vld [vmem:[%s437] ss:$8 sm:$0x3]
        %v440 = vlaneseq
        %v441 = vshrl.u32 %v440, 7
        %v442 = vsub.s32 0, %v441
        %v443 = vrot.slane %v438, %v442
        %v444 = vlaneseq
        %v445 = vshrl.u32 %v444, 7
        %v446 = vsub.s32 1, %v445
        %v447 = vrot.slane %v438, %v446
        %s450 = scalar_lea.vmem %s2, 3
        %v451 = vld [vmem:[%s450] ss:$8 sm:$0x3]
        %v453 = vlaneseq
        %v454 = vshrl.u32 %v453, 7
        %v455 = vsub.s32 0, %v454
        %v456 = vrot.slane %v451, %v455
        %v457 = vlaneseq
        %v458 = vshrl.u32 %v457, 7
        %v459 = vsub.s32 1, %v458
        %v460 = vrot.slane %v451, %v459
        %s463 = scalar_lea.vmem %s2, 5
        %v464 = vld [vmem:[%s463] ss:$8 sm:$0x3]
        %v466 = vlaneseq
        %v467 = vshrl.u32 %v466, 7
        %v468 = vsub.s32 0, %v467
        %v469 = vrot.slane %v464, %v468
        %v470 = vlaneseq
        %v471 = vshrl.u32 %v470, 7
        %v472 = vsub.s32 1, %v471
        %v473 = vrot.slane %v464, %v472
        %s476 = scalar_lea.vmem %s2, 6
        %v477 = vld [vmem:[%s476] ss:$8 sm:$0x3]
        %v479 = vlaneseq
        %v480 = vshrl.u32 %v479, 7
        %v481 = vsub.s32 0, %v480
        %v482 = vrot.slane %v477, %v481
        %v483 = vlaneseq
        %v484 = vshrl.u32 %v483, 7
        %v485 = vsub.s32 1, %v484
        %v486 = vrot.slane %v477, %v485
        %s489 = scalar_lea.vmem %s2, 7
        %v490 = vld [vmem:[%s489] ss:$8 sm:$0x3]
        %v492 = vlaneseq
        %v493 = vshrl.u32 %v492, 7
        %v494 = vsub.s32 0, %v493
        %v495 = vrot.slane %v490, %v494
        %v496 = vlaneseq
        %v497 = vshrl.u32 %v496, 7
        %v498 = vsub.s32 1, %v497
        %v499 = vrot.slane %v490, %v498
        %s502 = scalar_lea.vmem %s2, 16
        %v503 = vld [vmem:[%s502] ss:$8 sm:$0x3]
        %v505 = vlaneseq
        %v506 = vshrl.u32 %v505, 7
        %v507 = vsub.s32 0, %v506
        %v508 = vrot.slane %v503, %v507
        %v509 = vlaneseq
        %v510 = vshrl.u32 %v509, 7
        %v511 = vsub.s32 1, %v510
        %v512 = vrot.slane %v503, %v511
        %v515 = vld [vmem:[%s403] sm:$0xff]
        %v516 = vld [vmem:[%s403 + $0x8] sm:$0xff]
        %517 = vrot.lane.b32.xlu0 %v515, 17
        %v518 = vpop.permute.xlu0 %517
        %519 = vrot.lane.b32.xlu0 %v516, 17
        %v520 = vpop.permute.xlu0 %519
        %v521 = vlaneseq
        %v522 = vand.u32 %v521, 127
        %vm523 = vcmp.lt.s32.totalorder %v522, 17
        %v524 = vsel %vm523, %v518, %v520
        %v525 = vsel %vm523, %v520, %v518
        %v526 = vmul.f32 %v525, %v417
        %v527 = vmul.f32 %v524, %v421
        %v528 = vld [vmem:[%s3] sm:$0xff]
        %v529 = vld [vmem:[%s3 + $0x8] sm:$0xff]
        %v530 = vld [vmem:[%s3 + $0x10] sm:$0xff]
        %v531 = vld [vmem:[%s3 + $0x18] sm:$0xff]
        %532 = vrot.lane.b32.xlu0 %v515, 16
        %v533 = vpop.permute.xlu0 %532
        %534 = vrot.lane.b32.xlu0 %v516, 16
        %v535 = vpop.permute.xlu0 %534
        %vm536 = vcmp.lt.s32.totalorder %v522, 16
        %v537 = vsel %vm536, %v533, %v535
        %v538 = vsel %vm536, %v535, %v533
        %v539 = vmul.f32 %v538, %v430
        %v540 = vmul.f32 %v537, %v434
        %s541 = scalar_lea.vmem %s3, 32
        %v542 = vld [vmem:[%s541] sm:$0xff]
        %v543 = vld [vmem:[%s541 + $0x8] sm:$0xff]
        %v544 = vld [vmem:[%s541 + $0x10] sm:$0xff]
        %v545 = vld [vmem:[%s541 + $0x18] sm:$0xff]
        %vm546 = vcmask 64512
        %v548 = vsel %vm546, %v542, 0
        %v551 = vsel %vm546, %v543, 0
        %v554 = vsel %vm546, %v544, 0
        %v557 = vsel %vm546, %v545, 0
        %559 = vmatprep.subr.mxu0 %v540
        %560 = vmatpush1.msra.mxu0 %v539
        %561 = vmatprep.subr.mxu0 0.0
        %562 = vmatpush1.msra.mxu0 0.0
        %563 = vmatprep.subr.mxu0 0.0
        %564 = vmatpush1.msra.mxu0 0.0
        %565 = vmatprep.subr.mxu0 0.0
        %566 = vmatpush1.msra.mxu0 0.0
        %567 = vmatprep.subr.mxu0 0.0
        %568 = vmatpush1.msra.mxu0 0.0
        %569 = vmatprep.subr.mxu0 0.0
        %570 = vmatpush1.msra.mxu0 0.0
        %571 = vmatprep.subr.mxu0 0.0
        %572 = vmatpush1.msra.mxu0 0.0
        %573 = vmatprep.subr.mxu0 0.0
        %574 = vmatpush1.msra.mxu0 0.0
        %575 = vmatprep.subr.mxu0 0.0
        %576 = vmatpush1.msra.mxu0 0.0
        %577 = vmatprep.subr.mxu0 0.0
        %578 = vmatpush1.msra.mxu0 0.0
        %579 = vmatprep.subr.mxu0 0.0
        %580 = vmatpush1.msra.mxu0 0.0
        %581 = vmatprep.subr.mxu0 0.0
        %582 = vmatpush1.msra.mxu0 0.0
        %583 = vmatprep.subr.mxu0 0.0
        %584 = vmatpush1.msra.mxu0 0.0
        %585 = vmatprep.subr.mxu0 0.0
        %586 = vmatpush1.msra.mxu0 0.0
        %587 = vmatprep.subr.mxu0 0.0
        %588 = vmatpush1.msra.mxu0 0.0
        %589 = vmatprep.subr.mxu0 0.0
        %590 = vmatpush1.msra.mxu0 0.0
        %591 = vmatprep.subr.mxu0 0.0
        %592 = vmatpush1.msra.mxu0 0.0
        %593 = vmatprep.subr.mxu0 0.0
        %594 = vmatpush1.msra.mxu0 0.0
        %595 = vmatprep.subr.mxu0 0.0
        %596 = vmatpush1.msra.mxu0 0.0
        %597 = vmatprep.subr.mxu0 0.0
        %598 = vmatpush1.msra.mxu0 0.0
        %599 = vmatprep.subr.mxu0 0.0
        %600 = vmatpush1.msra.mxu0 0.0
        %601 = vmatprep.subr.mxu0 0.0
        %602 = vmatpush1.msra.mxu0 0.0
        %603 = vmatprep.subr.mxu0 0.0
        %604 = vmatpush1.msra.mxu0 0.0
        %605 = vmatprep.subr.mxu0 0.0
        %606 = vmatpush1.msra.mxu0 0.0
        %607 = vmatprep.subr.mxu0 0.0
        %608 = vmatpush1.msra.mxu0 0.0
        %609 = vmatprep.subr.mxu0 0.0
        %610 = vmatpush1.msra.mxu0 0.0
        %611 = vmatprep.subr.mxu0 0.0
        %612 = vmatpush1.msra.mxu0 0.0
        %613 = vmatprep.subr.mxu0 0.0
        %614 = vmatpush1.msra.mxu0 0.0
        %615 = vmatprep.subr.mxu0 0.0
        %616 = vmatpush1.msra.mxu0 0.0
        %617 = vmatprep.subr.mxu0 0.0
        %618 = vmatpush1.msra.mxu0 0.0
        %619 = vmatprep.subr.mxu0 0.0
        %620 = vmatpush1.msra.mxu0 0.0
        %621 = vmatprep.subr.mxu0 0.0
        %622 = vmatpush1.msra.mxu0 0.0
        %623 = vmatprep.mubr.f32.mxu0 0.0
        %624 = vmatmul.mubr.f32.gmra.mrb[0].mxu0 %v548
        %v625 = vpop.f32.mrb[0].mxu0
        %v626 = vadd.f32 0.0, %v625
        %v627 = vpop.f32.mrb[0].mxu0
        %v628 = vadd.f32 0.0, %v627
        %629 = vmatprep.mubr.f32.mxu0 0.0
        %630 = vmatmul.mubr.f32.gmra.mrb[0].mxu0 %v551
        %v631 = vpop.f32.mrb[0].mxu0
        %v632 = vadd.f32 0.0, %v631
        %v633 = vpop.f32.mrb[0].mxu0
        %v634 = vadd.f32 0.0, %v633
        %635 = vmatprep.mubr.f32.mxu0 0.0
        %636 = vmatmul.mubr.f32.gmra.mrb[0].mxu0 %v554
        %v637 = vpop.f32.mrb[0].mxu0
        %v638 = vadd.f32 0.0, %v637
        %v639 = vpop.f32.mrb[0].mxu0
        %v640 = vadd.f32 0.0, %v639
        %641 = vmatprep.mubr.f32.mxu0 0.0
        %642 = vmatmul.mubr.f32.gmra.mrb[0].mxu0 %v557
        %v643 = vpop.f32.mrb[0].mxu0
        %v644 = vadd.f32 0.0, %v643
        %v645 = vpop.f32.mrb[0].mxu0
        %v646 = vadd.f32 0.0, %v645
        %647 = vdwg.mxu0
        %v649 = vsel %vm546, %v528, 0
        %v652 = vsel %vm546, %v529, 0
        %v655 = vsel %vm546, %v530, 0
        %v658 = vsel %vm546, %v531, 0
        %660 = vmatprep.subr.mxu0 %v527
        %661 = vmatpush1.msra.mxu0 %v526
        %662 = vmatprep.subr.mxu0 0.0
        %663 = vmatpush1.msra.mxu0 0.0
        %664 = vmatprep.subr.mxu0 0.0
        %665 = vmatpush1.msra.mxu0 0.0
        %666 = vmatprep.subr.mxu0 0.0
        %667 = vmatpush1.msra.mxu0 0.0
        %668 = vmatprep.subr.mxu0 0.0
        %669 = vmatpush1.msra.mxu0 0.0
        %670 = vmatprep.subr.mxu0 0.0
        %671 = vmatpush1.msra.mxu0 0.0
        %672 = vmatprep.subr.mxu0 0.0
        %673 = vmatpush1.msra.mxu0 0.0
        %674 = vmatprep.subr.mxu0 0.0
        %675 = vmatpush1.msra.mxu0 0.0
        %676 = vmatprep.subr.mxu0 0.0
        %677 = vmatpush1.msra.mxu0 0.0
        %678 = vmatprep.subr.mxu0 0.0
        %679 = vmatpush1.msra.mxu0 0.0
        %680 = vmatprep.subr.mxu0 0.0
        %681 = vmatpush1.msra.mxu0 0.0
        %682 = vmatprep.subr.mxu0 0.0
        %683 = vmatpush1.msra.mxu0 0.0
        %684 = vmatprep.subr.mxu0 0.0
        %685 = vmatpush1.msra.mxu0 0.0
        %686 = vmatprep.subr.mxu0 0.0
        %687 = vmatpush1.msra.mxu0 0.0
        %688 = vmatprep.subr.mxu0 0.0
        %689 = vmatpush1.msra.mxu0 0.0
        %690 = vmatprep.subr.mxu0 0.0
        %691 = vmatpush1.msra.mxu0 0.0
        %692 = vmatprep.subr.mxu0 0.0
        %693 = vmatpush1.msra.mxu0 0.0
        %694 = vmatprep.subr.mxu0 0.0
        %695 = vmatpush1.msra.mxu0 0.0
        %696 = vmatprep.subr.mxu0 0.0
        %697 = vmatpush1.msra.mxu0 0.0
        %698 = vmatprep.subr.mxu0 0.0
        %699 = vmatpush1.msra.mxu0 0.0
        %700 = vmatprep.subr.mxu0 0.0
        %701 = vmatpush1.msra.mxu0 0.0
        %702 = vmatprep.subr.mxu0 0.0
        %703 = vmatpush1.msra.mxu0 0.0
        %704 = vmatprep.subr.mxu0 0.0
        %705 = vmatpush1.msra.mxu0 0.0
        %706 = vmatprep.subr.mxu0 0.0
        %707 = vmatpush1.msra.mxu0 0.0
        %708 = vmatprep.subr.mxu0 0.0
        %709 = vmatpush1.msra.mxu0 0.0
        %710 = vmatprep.subr.mxu0 0.0
        %711 = vmatpush1.msra.mxu0 0.0
        %712 = vmatprep.subr.mxu0 0.0
        %713 = vmatpush1.msra.mxu0 0.0
        %714 = vmatprep.subr.mxu0 0.0
        %715 = vmatpush1.msra.mxu0 0.0
        %716 = vmatprep.subr.mxu0 0.0
        %717 = vmatpush1.msra.mxu0 0.0
        %718 = vmatprep.subr.mxu0 0.0
        %719 = vmatpush1.msra.mxu0 0.0
        %720 = vmatprep.subr.mxu0 0.0
        %721 = vmatpush1.msra.mxu0 0.0
        %722 = vmatprep.subr.mxu0 0.0
        %723 = vmatpush1.msra.mxu0 0.0
        %724 = vmatprep.mubr.f32.mxu0 0.0
        %725 = vmatmul.mubr.f32.gmra.mrb[0].mxu0 %v649
        %v726 = vpop.f32.mrb[0].mxu0
        %v727 = vadd.f32 %v626, %v726
        %v728 = vpop.f32.mrb[0].mxu0
        %v729 = vadd.f32 %v628, %v728
        %730 = vmatprep.mubr.f32.mxu0 0.0
        %731 = vmatmul.mubr.f32.gmra.mrb[0].mxu0 %v652
        %v732 = vpop.f32.mrb[0].mxu0
        %v733 = vadd.f32 %v632, %v732
        %v734 = vpop.f32.mrb[0].mxu0
        %v735 = vadd.f32 %v634, %v734
        %736 = vmatprep.mubr.f32.mxu0 0.0
        %737 = vmatmul.mubr.f32.gmra.mrb[0].mxu0 %v655
        %v738 = vpop.f32.mrb[0].mxu0
        %v739 = vadd.f32 %v638, %v738
        %v740 = vpop.f32.mrb[0].mxu0
        %v741 = vadd.f32 %v640, %v740
        %742 = vmatprep.mubr.f32.mxu0 0.0
        %743 = vmatmul.mubr.f32.gmra.mrb[0].mxu0 %v658
        %v744 = vpop.f32.mrb[0].mxu0
        %v745 = vadd.f32 %v644, %v744
        %v746 = vpop.f32.mrb[0].mxu0
        %v747 = vadd.f32 %v646, %v746
        %748 = vdwg.mxu0
        %749 = vrot.lane.b32.xlu0 %v515, 15
        %v750 = vpop.permute.xlu0 %749
        %751 = vrot.lane.b32.xlu0 %v516, 15
        %v752 = vpop.permute.xlu0 %751
        %vm753 = vcmp.lt.s32.totalorder %v522, 15
        %v754 = vsel %vm753, %v750, %v752
        %v755 = vsel %vm753, %v752, %v750
        %v756 = vmul.f32 %v755, %v443
        %v757 = vmul.f32 %v754, %v447
        %s758 = scalar_lea.vmem %s3, 64
        %v759 = vld [vmem:[%s758] sm:$0xff]
        %v760 = vld [vmem:[%s758 + $0x8] sm:$0xff]
        %v761 = vld [vmem:[%s758 + $0x10] sm:$0xff]
        %v762 = vld [vmem:[%s758 + $0x18] sm:$0xff]
        %v764 = vsel %vm546, %v759, 0
        %v767 = vsel %vm546, %v760, 0
        %v770 = vsel %vm546, %v761, 0
        %v773 = vsel %vm546, %v762, 0
        %775 = vmatprep.subr.mxu0 %v757
        %776 = vmatpush1.msra.mxu0 %v756
        %777 = vmatprep.subr.mxu0 0.0
        %778 = vmatpush1.msra.mxu0 0.0
        %779 = vmatprep.subr.mxu0 0.0
        %780 = vmatpush1.msra.mxu0 0.0
        %781 = vmatprep.subr.mxu0 0.0
        %782 = vmatpush1.msra.mxu0 0.0
        %783 = vmatprep.subr.mxu0 0.0
        %784 = vmatpush1.msra.mxu0 0.0
        %785 = vmatprep.subr.mxu0 0.0
        %786 = vmatpush1.msra.mxu0 0.0
        %787 = vmatprep.subr.mxu0 0.0
        %788 = vmatpush1.msra.mxu0 0.0
        %789 = vmatprep.subr.mxu0 0.0
        %790 = vmatpush1.msra.mxu0 0.0
        %791 = vmatprep.subr.mxu0 0.0
        %792 = vmatpush1.msra.mxu0 0.0
        %793 = vmatprep.subr.mxu0 0.0
        %794 = vmatpush1.msra.mxu0 0.0
        %795 = vmatprep.subr.mxu0 0.0
        %796 = vmatpush1.msra.mxu0 0.0
        %797 = vmatprep.subr.mxu0 0.0
        %798 = vmatpush1.msra.mxu0 0.0
        %799 = vmatprep.subr.mxu0 0.0
        %800 = vmatpush1.msra.mxu0 0.0
        %801 = vmatprep.subr.mxu0 0.0
        %802 = vmatpush1.msra.mxu0 0.0
        %803 = vmatprep.subr.mxu0 0.0
        %804 = vmatpush1.msra.mxu0 0.0
        %805 = vmatprep.subr.mxu0 0.0
        %806 = vmatpush1.msra.mxu0 0.0
        %807 = vmatprep.subr.mxu0 0.0
        %808 = vmatpush1.msra.mxu0 0.0
        %809 = vmatprep.subr.mxu0 0.0
        %810 = vmatpush1.msra.mxu0 0.0
        %811 = vmatprep.subr.mxu0 0.0
        %812 = vmatpush1.msra.mxu0 0.0
        %813 = vmatprep.subr.mxu0 0.0
        %814 = vmatpush1.msra.mxu0 0.0
        %815 = vmatprep.subr.mxu0 0.0
        %816 = vmatpush1.msra.mxu0 0.0
        %817 = vmatprep.subr.mxu0 0.0
        %818 = vmatpush1.msra.mxu0 0.0
        %819 = vmatprep.subr.mxu0 0.0
        %820 = vmatpush1.msra.mxu0 0.0
        %821 = vmatprep.subr.mxu0 0.0
        %822 = vmatpush1.msra.mxu0 0.0
        %823 = vmatprep.subr.mxu0 0.0
        %824 = vmatpush1.msra.mxu0 0.0
        %825 = vmatprep.subr.mxu0 0.0
        %826 = vmatpush1.msra.mxu0 0.0
        %827 = vmatprep.subr.mxu0 0.0
        %828 = vmatpush1.msra.mxu0 0.0
        %829 = vmatprep.subr.mxu0 0.0
        %830 = vmatpush1.msra.mxu0 0.0
        %831 = vmatprep.subr.mxu0 0.0
        %832 = vmatpush1.msra.mxu0 0.0
        %833 = vmatprep.subr.mxu0 0.0
        %834 = vmatpush1.msra.mxu0 0.0
        %835 = vmatprep.subr.mxu0 0.0
        %836 = vmatpush1.msra.mxu0 0.0
        %837 = vmatprep.subr.mxu0 0.0
        %838 = vmatpush1.msra.mxu0 0.0
        %839 = vmatprep.mubr.f32.mxu0 0.0
        %840 = vmatmul.mubr.f32.gmra.mrb[0].mxu0 %v764
        %v841 = vpop.f32.mrb[0].mxu0
        %v842 = vadd.f32 0.0, %v841
        %v843 = vpop.f32.mrb[0].mxu0
        %v844 = vadd.f32 0.0, %v843
        %845 = vmatprep.mubr.f32.mxu0 0.0
        %846 = vmatmul.mubr.f32.gmra.mrb[0].mxu0 %v767
        %v847 = vpop.f32.mrb[0].mxu0
        %v848 = vadd.f32 0.0, %v847
        %v849 = vpop.f32.mrb[0].mxu0
        %v850 = vadd.f32 0.0, %v849
        %851 = vmatprep.mubr.f32.mxu0 0.0
        %852 = vmatmul.mubr.f32.gmra.mrb[0].mxu0 %v770
        %v853 = vpop.f32.mrb[0].mxu0
        %v854 = vadd.f32 0.0, %v853
        %v855 = vpop.f32.mrb[0].mxu0
        %v856 = vadd.f32 0.0, %v855
        %857 = vmatprep.mubr.f32.mxu0 0.0
        %858 = vmatmul.mubr.f32.gmra.mrb[0].mxu0 %v773
        %v859 = vpop.f32.mrb[0].mxu0
        %v860 = vadd.f32 0.0, %v859
        %v861 = vpop.f32.mrb[0].mxu0
        %v862 = vadd.f32 0.0, %v861
        %863 = vdwg.mxu0
        %v864 = vadd.f32 %v727, %v842
        %v865 = vadd.f32 %v729, %v844
        %v866 = vadd.f32 %v733, %v848
        %v867 = vadd.f32 %v735, %v850
        %v868 = vadd.f32 %v739, %v854
        %v869 = vadd.f32 %v741, %v856
        %v870 = vadd.f32 %v745, %v860
        %v871 = vadd.f32 %v747, %v862
        %872 = vrot.lane.b32.xlu0 %v515, 1
        %v873 = vpop.permute.xlu0 %872
        %874 = vrot.lane.b32.xlu0 %v516, 1
        %v875 = vpop.permute.xlu0 %874
        %vm876 = vcmp.lt.s32.totalorder %v522, 1
        %v877 = vsel %vm876, %v873, %v875
        %v878 = vsel %vm876, %v875, %v873
        %v879 = vmul.f32 %v878, %v456
        %v880 = vmul.f32 %v877, %v460
        %s881 = scalar_lea.vmem %s3, 96
        %v882 = vld [vmem:[%s881] sm:$0xff]
        %v883 = vld [vmem:[%s881 + $0x8] sm:$0xff]
        %v884 = vld [vmem:[%s881 + $0x10] sm:$0xff]
        %v885 = vld [vmem:[%s881 + $0x18] sm:$0xff]
        %v887 = vsel %vm546, %v882, 0
        %v890 = vsel %vm546, %v883, 0
        %v893 = vsel %vm546, %v884, 0
        %v896 = vsel %vm546, %v885, 0
        %898 = vmatprep.subr.mxu0 %v880
        %899 = vmatpush1.msra.mxu0 %v879
        %900 = vmatprep.subr.mxu0 0.0
        %901 = vmatpush1.msra.mxu0 0.0
        %902 = vmatprep.subr.mxu0 0.0
        %903 = vmatpush1.msra.mxu0 0.0
        %904 = vmatprep.subr.mxu0 0.0
        %905 = vmatpush1.msra.mxu0 0.0
        %906 = vmatprep.subr.mxu0 0.0
        %907 = vmatpush1.msra.mxu0 0.0
        %908 = vmatprep.subr.mxu0 0.0
        %909 = vmatpush1.msra.mxu0 0.0
        %910 = vmatprep.subr.mxu0 0.0
        %911 = vmatpush1.msra.mxu0 0.0
        %912 = vmatprep.subr.mxu0 0.0
        %913 = vmatpush1.msra.mxu0 0.0
        %914 = vmatprep.subr.mxu0 0.0
        %915 = vmatpush1.msra.mxu0 0.0
        %916 = vmatprep.subr.mxu0 0.0
        %917 = vmatpush1.msra.mxu0 0.0
        %918 = vmatprep.subr.mxu0 0.0
        %919 = vmatpush1.msra.mxu0 0.0
        %920 = vmatprep.subr.mxu0 0.0
        %921 = vmatpush1.msra.mxu0 0.0
        %922 = vmatprep.subr.mxu0 0.0
        %923 = vmatpush1.msra.mxu0 0.0
        %924 = vmatprep.subr.mxu0 0.0
        %925 = vmatpush1.msra.mxu0 0.0
        %926 = vmatprep.subr.mxu0 0.0
        %927 = vmatpush1.msra.mxu0 0.0
        %928 = vmatprep.subr.mxu0 0.0
        %929 = vmatpush1.msra.mxu0 0.0
        %930 = vmatprep.subr.mxu0 0.0
        %931 = vmatpush1.msra.mxu0 0.0
        %932 = vmatprep.subr.mxu0 0.0
        %933 = vmatpush1.msra.mxu0 0.0
        %934 = vmatprep.subr.mxu0 0.0
        %935 = vmatpush1.msra.mxu0 0.0
        %936 = vmatprep.subr.mxu0 0.0
        %937 = vmatpush1.msra.mxu0 0.0
        %938 = vmatprep.subr.mxu0 0.0
        %939 = vmatpush1.msra.mxu0 0.0
        %940 = vmatprep.subr.mxu0 0.0
        %941 = vmatpush1.msra.mxu0 0.0
        %942 = vmatprep.subr.mxu0 0.0
        %943 = vmatpush1.msra.mxu0 0.0
        %944 = vmatprep.subr.mxu0 0.0
        %945 = vmatpush1.msra.mxu0 0.0
        %946 = vmatprep.subr.mxu0 0.0
        %947 = vmatpush1.msra.mxu0 0.0
        %948 = vmatprep.subr.mxu0 0.0
        %949 = vmatpush1.msra.mxu0 0.0
        %950 = vmatprep.subr.mxu0 0.0
        %951 = vmatpush1.msra.mxu0 0.0
        %952 = vmatprep.subr.mxu0 0.0
        %953 = vmatpush1.msra.mxu0 0.0
        %954 = vmatprep.subr.mxu0 0.0
        %955 = vmatpush1.msra.mxu0 0.0
        %956 = vmatprep.subr.mxu0 0.0
        %957 = vmatpush1.msra.mxu0 0.0
        %958 = vmatprep.subr.mxu0 0.0
        %959 = vmatpush1.msra.mxu0 0.0
        %960 = vmatprep.subr.mxu0 0.0
        %961 = vmatpush1.msra.mxu0 0.0
        %962 = vmatprep.mubr.f32.mxu0 0.0
        %963 = vmatmul.mubr.f32.gmra.mrb[0].mxu0 %v887
        %v964 = vpop.f32.mrb[0].mxu0
        %v965 = vadd.f32 0.0, %v964
        %v966 = vpop.f32.mrb[0].mxu0
        %v967 = vadd.f32 0.0, %v966
        %968 = vmatprep.mubr.f32.mxu0 0.0
        %969 = vmatmul.mubr.f32.gmra.mrb[0].mxu0 %v890
        %v970 = vpop.f32.mrb[0].mxu0
        %v971 = vadd.f32 0.0, %v970
        %v972 = vpop.f32.mrb[0].mxu0
        %v973 = vadd.f32 0.0, %v972
        %974 = vmatprep.mubr.f32.mxu0 0.0
        %975 = vmatmul.mubr.f32.gmra.mrb[0].mxu0 %v893
        %v976 = vpop.f32.mrb[0].mxu0
        %v977 = vadd.f32 0.0, %v976
        %v978 = vpop.f32.mrb[0].mxu0
        %v979 = vadd.f32 0.0, %v978
        %980 = vmatprep.mubr.f32.mxu0 0.0
        %981 = vmatmul.mubr.f32.gmra.mrb[0].mxu0 %v896
        %v982 = vpop.f32.mrb[0].mxu0
        %v983 = vadd.f32 0.0, %v982
        %v984 = vpop.f32.mrb[0].mxu0
        %v985 = vadd.f32 0.0, %v984
        %986 = vdwg.mxu0
        %v987 = vadd.f32 %v864, %v965
        %v988 = vadd.f32 %v865, %v967
        %v989 = vadd.f32 %v866, %v971
        %v990 = vadd.f32 %v867, %v973
        %v991 = vadd.f32 %v868, %v977
        %v992 = vadd.f32 %v869, %v979
        %v993 = vadd.f32 %v870, %v983
        %v994 = vadd.f32 %v871, %v985
        %s995 = scalar_lea.vmem %s3, 128
        %v996 = vld [vmem:[%s995] sm:$0xff]
        %v997 = vld [vmem:[%s995 + $0x8] sm:$0xff]
        %v998 = vld [vmem:[%s995 + $0x10] sm:$0xff]
        %v999 = vld [vmem:[%s995 + $0x18] sm:$0xff]
        %v1001 = vsel %vm546, %v996, 0
        %v1004 = vsel %vm546, %v997, 0
        %v1007 = vsel %vm546, %v998, 0
        %v1010 = vsel %vm546, %v999, 0
        %1012 = vmatprep.subr.mxu0 %v516
        %1013 = vmatpush1.msra.mxu0 %v515
        %1014 = vmatprep.subr.mxu0 0.0
        %1015 = vmatpush1.msra.mxu0 0.0
        %1016 = vmatprep.subr.mxu0 0.0
        %1017 = vmatpush1.msra.mxu0 0.0
        %1018 = vmatprep.subr.mxu0 0.0
        %1019 = vmatpush1.msra.mxu0 0.0
        %1020 = vmatprep.subr.mxu0 0.0
        %1021 = vmatpush1.msra.mxu0 0.0
        %1022 = vmatprep.subr.mxu0 0.0
        %1023 = vmatpush1.msra.mxu0 0.0
        %1024 = vmatprep.subr.mxu0 0.0
        %1025 = vmatpush1.msra.mxu0 0.0
        %1026 = vmatprep.subr.mxu0 0.0
        %1027 = vmatpush1.msra.mxu0 0.0
        %1028 = vmatprep.subr.mxu0 0.0
        %1029 = vmatpush1.msra.mxu0 0.0
        %1030 = vmatprep.subr.mxu0 0.0
        %1031 = vmatpush1.msra.mxu0 0.0
        %1032 = vmatprep.subr.mxu0 0.0
        %1033 = vmatpush1.msra.mxu0 0.0
        %1034 = vmatprep.subr.mxu0 0.0
        %1035 = vmatpush1.msra.mxu0 0.0
        %1036 = vmatprep.subr.mxu0 0.0
        %1037 = vmatpush1.msra.mxu0 0.0
        %1038 = vmatprep.subr.mxu0 0.0
        %1039 = vmatpush1.msra.mxu0 0.0
        %1040 = vmatprep.subr.mxu0 0.0
        %1041 = vmatpush1.msra.mxu0 0.0
        %1042 = vmatprep.subr.mxu0 0.0
        %1043 = vmatpush1.msra.mxu0 0.0
        %1044 = vmatprep.subr.mxu0 0.0
        %1045 = vmatpush1.msra.mxu0 0.0
        %1046 = vmatprep.subr.mxu0 0.0
        %1047 = vmatpush1.msra.mxu0 0.0
        %1048 = vmatprep.subr.mxu0 0.0
        %1049 = vmatpush1.msra.mxu0 0.0
        %1050 = vmatprep.subr.mxu0 0.0
        %1051 = vmatpush1.msra.mxu0 0.0
        %1052 = vmatprep.subr.mxu0 0.0
        %1053 = vmatpush1.msra.mxu0 0.0
        %1054 = vmatprep.subr.mxu0 0.0
        %1055 = vmatpush1.msra.mxu0 0.0
        %1056 = vmatprep.subr.mxu0 0.0
        %1057 = vmatpush1.msra.mxu0 0.0
        %1058 = vmatprep.subr.mxu0 0.0
        %1059 = vmatpush1.msra.mxu0 0.0
        %1060 = vmatprep.subr.mxu0 0.0
        %1061 = vmatpush1.msra.mxu0 0.0
        %1062 = vmatprep.subr.mxu0 0.0
        %1063 = vmatpush1.msra.mxu0 0.0
        %1064 = vmatprep.subr.mxu0 0.0
        %1065 = vmatpush1.msra.mxu0 0.0
        %1066 = vmatprep.subr.mxu0 0.0
        %1067 = vmatpush1.msra.mxu0 0.0
        %1068 = vmatprep.subr.mxu0 0.0
        %1069 = vmatpush1.msra.mxu0 0.0
        %1070 = vmatprep.subr.mxu0 0.0
        %1071 = vmatpush1.msra.mxu0 0.0
        %1072 = vmatprep.subr.mxu0 0.0
        %1073 = vmatpush1.msra.mxu0 0.0
        %1074 = vmatprep.subr.mxu0 0.0
        %1075 = vmatpush1.msra.mxu0 0.0
        %1076 = vmatprep.mubr.f32.mxu0 0.0
        %1077 = vmatmul.mubr.f32.gmra.mrb[0].mxu0 %v1001
        %v1078 = vpop.f32.mrb[0].mxu0
        %v1079 = vadd.f32 0.0, %v1078
        %v1080 = vpop.f32.mrb[0].mxu0
        %v1081 = vadd.f32 0.0, %v1080
        %1082 = vmatprep.mubr.f32.mxu0 0.0
        %1083 = vmatmul.mubr.f32.gmra.mrb[0].mxu0 %v1004
        %v1084 = vpop.f32.mrb[0].mxu0
        %v1085 = vadd.f32 0.0, %v1084
        %v1086 = vpop.f32.mrb[0].mxu0
        %v1087 = vadd.f32 0.0, %v1086
        %1088 = vmatprep.mubr.f32.mxu0 0.0
        %1089 = vmatmul.mubr.f32.gmra.mrb[0].mxu0 %v1007
        %v1090 = vpop.f32.mrb[0].mxu0
        %v1091 = vadd.f32 0.0, %v1090
        %v1092 = vpop.f32.mrb[0].mxu0
        %v1093 = vadd.f32 0.0, %v1092
        %1094 = vmatprep.mubr.f32.mxu0 0.0
        %1095 = vmatmul.mubr.f32.gmra.mrb[0].mxu0 %v1010
        %v1096 = vpop.f32.mrb[0].mxu0
        %v1097 = vadd.f32 0.0, %v1096
        %v1098 = vpop.f32.mrb[0].mxu0
        %v1099 = vadd.f32 0.0, %v1098
        %1100 = vdwg.mxu0
        %v1101 = vadd.f32 %v987, %v1079
        %v1102 = vadd.f32 %v988, %v1081
        %v1103 = vadd.f32 %v989, %v1085
        %v1104 = vadd.f32 %v990, %v1087
        %v1105 = vadd.f32 %v991, %v1091
        %v1106 = vadd.f32 %v992, %v1093
        %v1107 = vadd.f32 %v993, %v1097
        %v1108 = vadd.f32 %v994, %v1099
        %1109 = vrot.lane.b32.xlu0 %v515, 127
        %v1110 = vpop.permute.xlu0 %1109
        %1111 = vrot.lane.b32.xlu0 %v516, 127
        %v1112 = vpop.permute.xlu0 %1111
        %vm1113 = vcmp.lt.s32.totalorder %v522, 127
        %v1114 = vsel %vm1113, %v1110, %v1112
        %v1115 = vsel %vm1113, %v1112, %v1110
        %v1116 = vmul.f32 %v1114, %v469
        %v1117 = vmul.f32 %v1115, %v473
        %s1118 = scalar_lea.vmem %s3, 160
        %v1119 = vld [vmem:[%s1118] sm:$0xff]
        %v1120 = vld [vmem:[%s1118 + $0x8] sm:$0xff]
        %v1121 = vld [vmem:[%s1118 + $0x10] sm:$0xff]
        %v1122 = vld [vmem:[%s1118 + $0x18] sm:$0xff]
        %v1124 = vsel %vm546, %v1119, 0
        %v1127 = vsel %vm546, %v1120, 0
        %v1130 = vsel %vm546, %v1121, 0
        %v1133 = vsel %vm546, %v1122, 0
        %1135 = vmatprep.subr.mxu0 %v1117
        %1136 = vmatpush1.msra.mxu0 %v1116
        %1137 = vmatprep.subr.mxu0 0.0
        %1138 = vmatpush1.msra.mxu0 0.0
        %1139 = vmatprep.subr.mxu0 0.0
        %1140 = vmatpush1.msra.mxu0 0.0
        %1141 = vmatprep.subr.mxu0 0.0
        %1142 = vmatpush1.msra.mxu0 0.0
        %1143 = vmatprep.subr.mxu0 0.0
        %1144 = vmatpush1.msra.mxu0 0.0
        %1145 = vmatprep.subr.mxu0 0.0
        %1146 = vmatpush1.msra.mxu0 0.0
        %1147 = vmatprep.subr.mxu0 0.0
        %1148 = vmatpush1.msra.mxu0 0.0
        %1149 = vmatprep.subr.mxu0 0.0
        %1150 = vmatpush1.msra.mxu0 0.0
        %1151 = vmatprep.subr.mxu0 0.0
        %1152 = vmatpush1.msra.mxu0 0.0
        %1153 = vmatprep.subr.mxu0 0.0
        %1154 = vmatpush1.msra.mxu0 0.0
        %1155 = vmatprep.subr.mxu0 0.0
        %1156 = vmatpush1.msra.mxu0 0.0
        %1157 = vmatprep.subr.mxu0 0.0
        %1158 = vmatpush1.msra.mxu0 0.0
        %1159 = vmatprep.subr.mxu0 0.0
        %1160 = vmatpush1.msra.mxu0 0.0
        %1161 = vmatprep.subr.mxu0 0.0
        %1162 = vmatpush1.msra.mxu0 0.0
        %1163 = vmatprep.subr.mxu0 0.0
        %1164 = vmatpush1.msra.mxu0 0.0
        %1165 = vmatprep.subr.mxu0 0.0
        %1166 = vmatpush1.msra.mxu0 0.0
        %1167 = vmatprep.subr.mxu0 0.0
        %1168 = vmatpush1.msra.mxu0 0.0
        %1169 = vmatprep.subr.mxu0 0.0
        %1170 = vmatpush1.msra.mxu0 0.0
        %1171 = vmatprep.subr.mxu0 0.0
        %1172 = vmatpush1.msra.mxu0 0.0
        %1173 = vmatprep.subr.mxu0 0.0
        %1174 = vmatpush1.msra.mxu0 0.0
        %1175 = vmatprep.subr.mxu0 0.0
        %1176 = vmatpush1.msra.mxu0 0.0
        %1177 = vmatprep.subr.mxu0 0.0
        %1178 = vmatpush1.msra.mxu0 0.0
        %1179 = vmatprep.subr.mxu0 0.0
        %1180 = vmatpush1.msra.mxu0 0.0
        %1181 = vmatprep.subr.mxu0 0.0
        %1182 = vmatpush1.msra.mxu0 0.0
        %1183 = vmatprep.subr.mxu0 0.0
        %1184 = vmatpush1.msra.mxu0 0.0
        %1185 = vmatprep.subr.mxu0 0.0
        %1186 = vmatpush1.msra.mxu0 0.0
        %1187 = vmatprep.subr.mxu0 0.0
        %1188 = vmatpush1.msra.mxu0 0.0
        %1189 = vmatprep.subr.mxu0 0.0
        %1190 = vmatpush1.msra.mxu0 0.0
        %1191 = vmatprep.subr.mxu0 0.0
        %1192 = vmatpush1.msra.mxu0 0.0
        %1193 = vmatprep.subr.mxu0 0.0
        %1194 = vmatpush1.msra.mxu0 0.0
        %1195 = vmatprep.subr.mxu0 0.0
        %1196 = vmatpush1.msra.mxu0 0.0
        %1197 = vmatprep.subr.mxu0 0.0
        %1198 = vmatpush1.msra.mxu0 0.0
        %1199 = vmatprep.mubr.f32.mxu0 0.0
        %1200 = vmatmul.mubr.f32.gmra.mrb[0].mxu0 %v1124
        %v1201 = vpop.f32.mrb[0].mxu0
        %v1202 = vadd.f32 0.0, %v1201
        %v1203 = vpop.f32.mrb[0].mxu0
        %v1204 = vadd.f32 0.0, %v1203
        %1205 = vmatprep.mubr.f32.mxu0 0.0
        %1206 = vmatmul.mubr.f32.gmra.mrb[0].mxu0 %v1127
        %v1207 = vpop.f32.mrb[0].mxu0
        %v1208 = vadd.f32 0.0, %v1207
        %v1209 = vpop.f32.mrb[0].mxu0
        %v1210 = vadd.f32 0.0, %v1209
        %1211 = vmatprep.mubr.f32.mxu0 0.0
        %1212 = vmatmul.mubr.f32.gmra.mrb[0].mxu0 %v1130
        %v1213 = vpop.f32.mrb[0].mxu0
        %v1214 = vadd.f32 0.0, %v1213
        %v1215 = vpop.f32.mrb[0].mxu0
        %v1216 = vadd.f32 0.0, %v1215
        %1217 = vmatprep.mubr.f32.mxu0 0.0
        %1218 = vmatmul.mubr.f32.gmra.mrb[0].mxu0 %v1133
        %v1219 = vpop.f32.mrb[0].mxu0
        %v1220 = vadd.f32 0.0, %v1219
        %v1221 = vpop.f32.mrb[0].mxu0
        %v1222 = vadd.f32 0.0, %v1221
        %1223 = vdwg.mxu0
        %v1224 = vadd.f32 %v1101, %v1202
        %v1225 = vadd.f32 %v1102, %v1204
        %v1226 = vadd.f32 %v1103, %v1208
        %v1227 = vadd.f32 %v1104, %v1210
        %v1228 = vadd.f32 %v1105, %v1214
        %v1229 = vadd.f32 %v1106, %v1216
        %v1230 = vadd.f32 %v1107, %v1220
        %v1231 = vadd.f32 %v1108, %v1222
        %1232 = vrot.lane.b32.xlu0 %v515, 113
        %v1233 = vpop.permute.xlu0 %1232
        %1234 = vrot.lane.b32.xlu0 %v516, 113
        %v1235 = vpop.permute.xlu0 %1234
        %vm1236 = vcmp.lt.s32.totalorder %v522, 113
        %v1237 = vsel %vm1236, %v1233, %v1235
        %v1238 = vsel %vm1236, %v1235, %v1233
        %v1239 = vmul.f32 %v1237, %v482
        %v1240 = vmul.f32 %v1238, %v486
        %s1241 = scalar_lea.vmem %s3, 192
        %v1242 = vld [vmem:[%s1241] sm:$0xff]
        %v1243 = vld [vmem:[%s1241 + $0x8] sm:$0xff]
        %v1244 = vld [vmem:[%s1241 + $0x10] sm:$0xff]
        %v1245 = vld [vmem:[%s1241 + $0x18] sm:$0xff]
        %v1247 = vsel %vm546, %v1242, 0
        %v1250 = vsel %vm546, %v1243, 0
        %v1253 = vsel %vm546, %v1244, 0
        %v1256 = vsel %vm546, %v1245, 0
        %1258 = vmatprep.subr.mxu0 %v1240
        %1259 = vmatpush1.msra.mxu0 %v1239
        %1260 = vmatprep.subr.mxu0 0.0
        %1261 = vmatpush1.msra.mxu0 0.0
        %1262 = vmatprep.subr.mxu0 0.0
        %1263 = vmatpush1.msra.mxu0 0.0
        %1264 = vmatprep.subr.mxu0 0.0
        %1265 = vmatpush1.msra.mxu0 0.0
        %1266 = vmatprep.subr.mxu0 0.0
        %1267 = vmatpush1.msra.mxu0 0.0
        %1268 = vmatprep.subr.mxu0 0.0
        %1269 = vmatpush1.msra.mxu0 0.0
        %1270 = vmatprep.subr.mxu0 0.0
        %1271 = vmatpush1.msra.mxu0 0.0
        %1272 = vmatprep.subr.mxu0 0.0
        %1273 = vmatpush1.msra.mxu0 0.0
        %1274 = vmatprep.subr.mxu0 0.0
        %1275 = vmatpush1.msra.mxu0 0.0
        %1276 = vmatprep.subr.mxu0 0.0
        %1277 = vmatpush1.msra.mxu0 0.0
        %1278 = vmatprep.subr.mxu0 0.0
        %1279 = vmatpush1.msra.mxu0 0.0
        %1280 = vmatprep.subr.mxu0 0.0
        %1281 = vmatpush1.msra.mxu0 0.0
        %1282 = vmatprep.subr.mxu0 0.0
        %1283 = vmatpush1.msra.mxu0 0.0
        %1284 = vmatprep.subr.mxu0 0.0
        %1285 = vmatpush1.msra.mxu0 0.0
        %1286 = vmatprep.subr.mxu0 0.0
        %1287 = vmatpush1.msra.mxu0 0.0
        %1288 = vmatprep.subr.mxu0 0.0
        %1289 = vmatpush1.msra.mxu0 0.0
        %1290 = vmatprep.subr.mxu0 0.0
        %1291 = vmatpush1.msra.mxu0 0.0
        %1292 = vmatprep.subr.mxu0 0.0
        %1293 = vmatpush1.msra.mxu0 0.0
        %1294 = vmatprep.subr.mxu0 0.0
        %1295 = vmatpush1.msra.mxu0 0.0
        %1296 = vmatprep.subr.mxu0 0.0
        %1297 = vmatpush1.msra.mxu0 0.0
        %1298 = vmatprep.subr.mxu0 0.0
        %1299 = vmatpush1.msra.mxu0 0.0
        %1300 = vmatprep.subr.mxu0 0.0
        %1301 = vmatpush1.msra.mxu0 0.0
        %1302 = vmatprep.subr.mxu0 0.0
        %1303 = vmatpush1.msra.mxu0 0.0
        %1304 = vmatprep.subr.mxu0 0.0
        %1305 = vmatpush1.msra.mxu0 0.0
        %1306 = vmatprep.subr.mxu0 0.0
        %1307 = vmatpush1.msra.mxu0 0.0
        %1308 = vmatprep.subr.mxu0 0.0
        %1309 = vmatpush1.msra.mxu0 0.0
        %1310 = vmatprep.subr.mxu0 0.0
        %1311 = vmatpush1.msra.mxu0 0.0
        %1312 = vmatprep.subr.mxu0 0.0
        %1313 = vmatpush1.msra.mxu0 0.0
        %1314 = vmatprep.subr.mxu0 0.0
        %1315 = vmatpush1.msra.mxu0 0.0
        %1316 = vmatprep.subr.mxu0 0.0
        %1317 = vmatpush1.msra.mxu0 0.0
        %1318 = vmatprep.subr.mxu0 0.0
        %1319 = vmatpush1.msra.mxu0 0.0
        %1320 = vmatprep.subr.mxu0 0.0
        %1321 = vmatpush1.msra.mxu0 0.0
        %1322 = vmatprep.mubr.f32.mxu0 0.0
        %1323 = vmatmul.mubr.f32.gmra.mrb[0].mxu0 %v1247
        %v1324 = vpop.f32.mrb[0].mxu0
        %v1325 = vadd.f32 0.0, %v1324
        %v1326 = vpop.f32.mrb[0].mxu0
        %v1327 = vadd.f32 0.0, %v1326
        %1328 = vmatprep.mubr.f32.mxu0 0.0
        %1329 = vmatmul.mubr.f32.gmra.mrb[0].mxu0 %v1250
        %v1330 = vpop.f32.mrb[0].mxu0
        %v1331 = vadd.f32 0.0, %v1330
        %v1332 = vpop.f32.mrb[0].mxu0
        %v1333 = vadd.f32 0.0, %v1332
        %1334 = vmatprep.mubr.f32.mxu0 0.0
        %1335 = vmatmul.mubr.f32.gmra.mrb[0].mxu0 %v1253
        %v1336 = vpop.f32.mrb[0].mxu0
        %v1337 = vadd.f32 0.0, %v1336
        %v1338 = vpop.f32.mrb[0].mxu0
        %v1339 = vadd.f32 0.0, %v1338
        %1340 = vmatprep.mubr.f32.mxu0 0.0
        %1341 = vmatmul.mubr.f32.gmra.mrb[0].mxu0 %v1256
        %v1342 = vpop.f32.mrb[0].mxu0
        %v1343 = vadd.f32 0.0, %v1342
        %v1344 = vpop.f32.mrb[0].mxu0
        %v1345 = vadd.f32 0.0, %v1344
        %1346 = vdwg.mxu0
        %v1347 = vadd.f32 %v1224, %v1325
        %v1348 = vadd.f32 %v1225, %v1327
        %v1349 = vadd.f32 %v1226, %v1331
        %v1350 = vadd.f32 %v1227, %v1333
        %v1351 = vadd.f32 %v1228, %v1337
        %v1352 = vadd.f32 %v1229, %v1339
        %v1353 = vadd.f32 %v1230, %v1343
        %v1354 = vadd.f32 %v1231, %v1345
        %1355 = vrot.lane.b32.xlu0 %v515, 112
        %v1356 = vpop.permute.xlu0 %1355
        %1357 = vrot.lane.b32.xlu0 %v516, 112
        %v1358 = vpop.permute.xlu0 %1357
        %vm1359 = vcmp.lt.s32.totalorder %v522, 112
        %v1360 = vsel %vm1359, %v1356, %v1358
        %v1361 = vsel %vm1359, %v1358, %v1356
        %v1362 = vmul.f32 %v1360, %v495
        %v1363 = vmul.f32 %v1361, %v499
        %s1364 = scalar_lea.vmem %s3, 224
        %v1365 = vld [vmem:[%s1364] sm:$0xff]
        %v1366 = vld [vmem:[%s1364 + $0x8] sm:$0xff]
        %v1367 = vld [vmem:[%s1364 + $0x10] sm:$0xff]
        %v1368 = vld [vmem:[%s1364 + $0x18] sm:$0xff]
        %v1370 = vsel %vm546, %v1365, 0
        %v1373 = vsel %vm546, %v1366, 0
        %v1376 = vsel %vm546, %v1367, 0
        %v1379 = vsel %vm546, %v1368, 0
        %1381 = vmatprep.subr.mxu0 %v1363
        %1382 = vmatpush1.msra.mxu0 %v1362
        %1383 = vmatprep.subr.mxu0 0.0
        %1384 = vmatpush1.msra.mxu0 0.0
        %1385 = vmatprep.subr.mxu0 0.0
        %1386 = vmatpush1.msra.mxu0 0.0
        %1387 = vmatprep.subr.mxu0 0.0
        %1388 = vmatpush1.msra.mxu0 0.0
        %1389 = vmatprep.subr.mxu0 0.0
        %1390 = vmatpush1.msra.mxu0 0.0
        %1391 = vmatprep.subr.mxu0 0.0
        %1392 = vmatpush1.msra.mxu0 0.0
        %1393 = vmatprep.subr.mxu0 0.0
        %1394 = vmatpush1.msra.mxu0 0.0
        %1395 = vmatprep.subr.mxu0 0.0
        %1396 = vmatpush1.msra.mxu0 0.0
        %1397 = vmatprep.subr.mxu0 0.0
        %1398 = vmatpush1.msra.mxu0 0.0
        %1399 = vmatprep.subr.mxu0 0.0
        %1400 = vmatpush1.msra.mxu0 0.0
        %1401 = vmatprep.subr.mxu0 0.0
        %1402 = vmatpush1.msra.mxu0 0.0
        %1403 = vmatprep.subr.mxu0 0.0
        %1404 = vmatpush1.msra.mxu0 0.0
        %1405 = vmatprep.subr.mxu0 0.0
        %1406 = vmatpush1.msra.mxu0 0.0
        %1407 = vmatprep.subr.mxu0 0.0
        %1408 = vmatpush1.msra.mxu0 0.0
        %1409 = vmatprep.subr.mxu0 0.0
        %1410 = vmatpush1.msra.mxu0 0.0
        %1411 = vmatprep.subr.mxu0 0.0
        %1412 = vmatpush1.msra.mxu0 0.0
        %1413 = vmatprep.subr.mxu0 0.0
        %1414 = vmatpush1.msra.mxu0 0.0
        %1415 = vmatprep.subr.mxu0 0.0
        %1416 = vmatpush1.msra.mxu0 0.0
        %1417 = vmatprep.subr.mxu0 0.0
        %1418 = vmatpush1.msra.mxu0 0.0
        %1419 = vmatprep.subr.mxu0 0.0
        %1420 = vmatpush1.msra.mxu0 0.0
        %1421 = vmatprep.subr.mxu0 0.0
        %1422 = vmatpush1.msra.mxu0 0.0
        %1423 = vmatprep.subr.mxu0 0.0
        %1424 = vmatpush1.msra.mxu0 0.0
        %1425 = vmatprep.subr.mxu0 0.0
        %1426 = vmatpush1.msra.mxu0 0.0
        %1427 = vmatprep.subr.mxu0 0.0
        %1428 = vmatpush1.msra.mxu0 0.0
        %1429 = vmatprep.subr.mxu0 0.0
        %1430 = vmatpush1.msra.mxu0 0.0
        %1431 = vmatprep.subr.mxu0 0.0
        %1432 = vmatpush1.msra.mxu0 0.0
        %1433 = vmatprep.subr.mxu0 0.0
        %1434 = vmatpush1.msra.mxu0 0.0
        %1435 = vmatprep.subr.mxu0 0.0
        %1436 = vmatpush1.msra.mxu0 0.0
        %1437 = vmatprep.subr.mxu0 0.0
        %1438 = vmatpush1.msra.mxu0 0.0
        %1439 = vmatprep.subr.mxu0 0.0
        %1440 = vmatpush1.msra.mxu0 0.0
        %1441 = vmatprep.subr.mxu0 0.0
        %1442 = vmatpush1.msra.mxu0 0.0
        %1443 = vmatprep.subr.mxu0 0.0
        %1444 = vmatpush1.msra.mxu0 0.0
        %1445 = vmatprep.mubr.f32.mxu0 0.0
        %1446 = vmatmul.mubr.f32.gmra.mrb[0].mxu0 %v1370
        %v1447 = vpop.f32.mrb[0].mxu0
        %v1448 = vadd.f32 0.0, %v1447
        %v1449 = vpop.f32.mrb[0].mxu0
        %v1450 = vadd.f32 0.0, %v1449
        %1451 = vmatprep.mubr.f32.mxu0 0.0
        %1452 = vmatmul.mubr.f32.gmra.mrb[0].mxu0 %v1373
        %v1453 = vpop.f32.mrb[0].mxu0
        %v1454 = vadd.f32 0.0, %v1453
        %v1455 = vpop.f32.mrb[0].mxu0
        %v1456 = vadd.f32 0.0, %v1455
        %1457 = vmatprep.mubr.f32.mxu0 0.0
        %1458 = vmatmul.mubr.f32.gmra.mrb[0].mxu0 %v1376
        %v1459 = vpop.f32.mrb[0].mxu0
        %v1460 = vadd.f32 0.0, %v1459
        %v1461 = vpop.f32.mrb[0].mxu0
        %v1462 = vadd.f32 0.0, %v1461
        %1463 = vmatprep.mubr.f32.mxu0 0.0
        %1464 = vmatmul.mubr.f32.gmra.mrb[0].mxu0 %v1379
        %v1465 = vpop.f32.mrb[0].mxu0
        %v1466 = vadd.f32 0.0, %v1465
        %v1467 = vpop.f32.mrb[0].mxu0
        %v1468 = vadd.f32 0.0, %v1467
        %1469 = vdwg.mxu0
        %v1470 = vadd.f32 %v1347, %v1448
        %v1471 = vadd.f32 %v1348, %v1450
        %v1472 = vadd.f32 %v1349, %v1454
        %v1473 = vadd.f32 %v1350, %v1456
        %v1474 = vadd.f32 %v1351, %v1460
        %v1475 = vadd.f32 %v1352, %v1462
        %v1476 = vadd.f32 %v1353, %v1466
        %v1477 = vadd.f32 %v1354, %v1468
        %1478 = vrot.lane.b32.xlu0 %v515, 111
        %v1479 = vpop.permute.xlu0 %1478
        %1480 = vrot.lane.b32.xlu0 %v516, 111
        %v1481 = vpop.permute.xlu0 %1480
        %vm1482 = vcmp.lt.s32.totalorder %v522, 111
        %v1483 = vsel %vm1482, %v1479, %v1481
        %v1484 = vsel %vm1482, %v1481, %v1479
        %v1485 = vmul.f32 %v1483, %v508
        %v1486 = vmul.f32 %v1484, %v512
        %s1487 = scalar_lea.vmem %s3, 256
        %v1488 = vld [vmem:[%s1487] sm:$0xff]
        %v1489 = vld [vmem:[%s1487 + $0x8] sm:$0xff]
        %v1490 = vld [vmem:[%s1487 + $0x10] sm:$0xff]
        %v1491 = vld [vmem:[%s1487 + $0x18] sm:$0xff]
        %v1493 = vsel %vm546, %v1488, 0
        %v1496 = vsel %vm546, %v1489, 0
        %v1499 = vsel %vm546, %v1490, 0
        %v1502 = vsel %vm546, %v1491, 0
        %1504 = vmatprep.subr.mxu0 %v1486
        %1505 = vmatpush1.msra.mxu0 %v1485
        %1506 = vmatprep.subr.mxu0 0.0
        %1507 = vmatpush1.msra.mxu0 0.0
        %1508 = vmatprep.subr.mxu0 0.0
        %1509 = vmatpush1.msra.mxu0 0.0
        %1510 = vmatprep.subr.mxu0 0.0
        %1511 = vmatpush1.msra.mxu0 0.0
        %1512 = vmatprep.subr.mxu0 0.0
        %1513 = vmatpush1.msra.mxu0 0.0
        %1514 = vmatprep.subr.mxu0 0.0
        %1515 = vmatpush1.msra.mxu0 0.0
        %1516 = vmatprep.subr.mxu0 0.0
        %1517 = vmatpush1.msra.mxu0 0.0
        %1518 = vmatprep.subr.mxu0 0.0
        %1519 = vmatpush1.msra.mxu0 0.0
        %1520 = vmatprep.subr.mxu0 0.0
        %1521 = vmatpush1.msra.mxu0 0.0
        %1522 = vmatprep.subr.mxu0 0.0
        %1523 = vmatpush1.msra.mxu0 0.0
        %1524 = vmatprep.subr.mxu0 0.0
        %1525 = vmatpush1.msra.mxu0 0.0
        %1526 = vmatprep.subr.mxu0 0.0
        %1527 = vmatpush1.msra.mxu0 0.0
        %1528 = vmatprep.subr.mxu0 0.0
        %1529 = vmatpush1.msra.mxu0 0.0
        %1530 = vmatprep.subr.mxu0 0.0
        %1531 = vmatpush1.msra.mxu0 0.0
        %1532 = vmatprep.subr.mxu0 0.0
        %1533 = vmatpush1.msra.mxu0 0.0
        %1534 = vmatprep.subr.mxu0 0.0
        %1535 = vmatpush1.msra.mxu0 0.0
        %1536 = vmatprep.subr.mxu0 0.0
        %1537 = vmatpush1.msra.mxu0 0.0
        %1538 = vmatprep.subr.mxu0 0.0
        %1539 = vmatpush1.msra.mxu0 0.0
        %1540 = vmatprep.subr.mxu0 0.0
        %1541 = vmatpush1.msra.mxu0 0.0
        %1542 = vmatprep.subr.mxu0 0.0
        %1543 = vmatpush1.msra.mxu0 0.0
        %1544 = vmatprep.subr.mxu0 0.0
        %1545 = vmatpush1.msra.mxu0 0.0
        %1546 = vmatprep.subr.mxu0 0.0
        %1547 = vmatpush1.msra.mxu0 0.0
        %1548 = vmatprep.subr.mxu0 0.0
        %1549 = vmatpush1.msra.mxu0 0.0
        %1550 = vmatprep.subr.mxu0 0.0
        %1551 = vmatpush1.msra.mxu0 0.0
        %1552 = vmatprep.subr.mxu0 0.0
        %1553 = vmatpush1.msra.mxu0 0.0
        %1554 = vmatprep.subr.mxu0 0.0
        %1555 = vmatpush1.msra.mxu0 0.0
        %1556 = vmatprep.subr.mxu0 0.0
        %1557 = vmatpush1.msra.mxu0 0.0
        %1558 = vmatprep.subr.mxu0 0.0
        %1559 = vmatpush1.msra.mxu0 0.0
        %1560 = vmatprep.subr.mxu0 0.0
        %1561 = vmatpush1.msra.mxu0 0.0
        %1562 = vmatprep.subr.mxu0 0.0
        %1563 = vmatpush1.msra.mxu0 0.0
        %1564 = vmatprep.subr.mxu0 0.0
        %1565 = vmatpush1.msra.mxu0 0.0
        %1566 = vmatprep.subr.mxu0 0.0
        %1567 = vmatpush1.msra.mxu0 0.0
        %1568 = vmatprep.mubr.f32.mxu0 0.0
        %1569 = vmatmul.mubr.f32.gmra.mrb[0].mxu0 %v1493
        %v1570 = vpop.f32.mrb[0].mxu0
        %v1571 = vadd.f32 0.0, %v1570
        %v1572 = vpop.f32.mrb[0].mxu0
        %v1573 = vadd.f32 0.0, %v1572
        %1574 = vmatprep.mubr.f32.mxu0 0.0
        %1575 = vmatmul.mubr.f32.gmra.mrb[0].mxu0 %v1496
        %v1576 = vpop.f32.mrb[0].mxu0
        %v1577 = vadd.f32 0.0, %v1576
        %v1578 = vpop.f32.mrb[0].mxu0
        %v1579 = vadd.f32 0.0, %v1578
        %1580 = vmatprep.mubr.f32.mxu0 0.0
        %1581 = vmatmul.mubr.f32.gmra.mrb[0].mxu0 %v1499
        %v1582 = vpop.f32.mrb[0].mxu0
        %v1583 = vadd.f32 0.0, %v1582
        %v1584 = vpop.f32.mrb[0].mxu0
        %v1585 = vadd.f32 0.0, %v1584
        %1586 = vmatprep.mubr.f32.mxu0 0.0
        %1587 = vmatmul.mubr.f32.gmra.mrb[0].mxu0 %v1502
        %v1588 = vpop.f32.mrb[0].mxu0
        %v1589 = vadd.f32 0.0, %v1588
        %v1590 = vpop.f32.mrb[0].mxu0
        %v1591 = vadd.f32 0.0, %v1590
        %1592 = vdwg.mxu0
        %v1593 = vadd.f32 %v1470, %v1571
        %v1594 = vadd.f32 %v1471, %v1573
        %v1595 = vadd.f32 %v1472, %v1577
        %v1596 = vadd.f32 %v1473, %v1579
        %v1597 = vadd.f32 %v1474, %v1583
        %v1598 = vadd.f32 %v1475, %v1585
        %v1599 = vadd.f32 %v1476, %v1589
        %v1600 = vadd.f32 %v1477, %v1591
        %v1601 = vld [vmem:[%s4] sm:$0xff]
        %v1602 = vld [vmem:[%s4 + $0x8] sm:$0xff]
        %v1603 = vld [vmem:[%s4 + $0x10] sm:$0xff]
        %v1604 = vld [vmem:[%s4 + $0x18] sm:$0xff]
        %1606 = vset.pattern.permute.xlu0 0
        %1607 = vperm.xlu0 %1606, %v1601
        %v1608 = vpop.permute.xlu0 %1607
        %1611 = vset.pattern.permute.xlu0 0
        %1612 = vperm.xlu0 %1611, %v1602
        %v1613 = vpop.permute.xlu0 %1612
        %1616 = vset.pattern.permute.xlu0 0
        %1617 = vperm.xlu0 %1616, %v1603
        %v1618 = vpop.permute.xlu0 %1617
        %1621 = vset.pattern.permute.xlu0 0
        %1622 = vperm.xlu0 %1621, %v1604
        %v1623 = vpop.permute.xlu0 %1622
        %v1625 = vadd.f32 %v1593, %v1608
        %v1626 = vadd.f32 %v1594, %v1608
        %v1627 = vadd.f32 %v1595, %v1613
        %v1628 = vadd.f32 %v1596, %v1613
        %v1629 = vadd.f32 %v1597, %v1618
        %v1630 = vadd.f32 %v1598, %v1618
        %v1631 = vadd.f32 %v1599, %v1623
        %v1632 = vadd.f32 %v1600, %v1623
        %s1633 = sld [smem:[#allocation2]]
        %vm1634 = vcmp.ge.f32.partialorder %v1625, 0.0
        %vm1635 = vcmp.ge.f32.partialorder %v1626, 0.0
        %vm1636 = vcmp.ge.f32.partialorder %v1627, 0.0
        %vm1637 = vcmp.ge.f32.partialorder %v1628, 0.0
        %vm1638 = vcmp.ge.f32.partialorder %v1629, 0.0
        %vm1639 = vcmp.ge.f32.partialorder %v1630, 0.0
        %vm1640 = vcmp.ge.f32.partialorder %v1631, 0.0
        %vm1641 = vcmp.ge.f32.partialorder %v1632, 0.0
        %v1642 = vstv %s1633
        %v1643 = vmul.f32 %v1642, %v1625
        %v1644 = vmul.f32 %v1642, %v1626
        %v1645 = vmul.f32 %v1642, %v1627
        %v1646 = vmul.f32 %v1642, %v1628
        %v1647 = vmul.f32 %v1642, %v1629
        %v1648 = vmul.f32 %v1642, %v1630
        %v1649 = vmul.f32 %v1642, %v1631
        %v1650 = vmul.f32 %v1642, %v1632
        %v1651 = vsel %vm1634, %v1625, %v1643
        %v1652 = vsel %vm1635, %v1626, %v1644
        %v1653 = vsel %vm1636, %v1627, %v1645
        %v1654 = vsel %vm1637, %v1628, %v1646
        %v1655 = vsel %vm1638, %v1629, %v1647
        %v1656 = vsel %vm1639, %v1630, %v1648
        %v1657 = vsel %vm1640, %v1631, %v1649
        %v1658 = vsel %vm1641, %v1632, %v1650
        %1659 = vrot.lane.b32.xlu0 %v1651, 17
        %v1660 = vpop.permute.xlu0 %1659
        %1661 = vrot.lane.b32.xlu0 %v1653, 17
        %v1662 = vpop.permute.xlu0 %1661
        %1663 = vrot.lane.b32.xlu0 %v1655, 17
        %v1664 = vpop.permute.xlu0 %1663
        %1665 = vrot.lane.b32.xlu0 %v1657, 17
        %v1666 = vpop.permute.xlu0 %1665
        %1667 = vrot.lane.b32.xlu0 %v1652, 17
        %v1668 = vpop.permute.xlu0 %1667
        %1669 = vrot.lane.b32.xlu0 %v1654, 17
        %v1670 = vpop.permute.xlu0 %1669
        %1671 = vrot.lane.b32.xlu0 %v1656, 17
        %v1672 = vpop.permute.xlu0 %1671
        %1673 = vrot.lane.b32.xlu0 %v1658, 17
        %v1674 = vpop.permute.xlu0 %1673
        %v1675 = vsel %vm523, %v1660, %v1668
        %v1676 = vsel %vm523, %v1662, %v1670
        %v1677 = vsel %vm523, %v1664, %v1672
        %v1678 = vsel %vm523, %v1666, %v1674
        %v1679 = vsel %vm523, %v1668, %v1660
        %v1680 = vsel %vm523, %v1670, %v1662
        %v1681 = vsel %vm523, %v1672, %v1664
        %v1682 = vsel %vm523, %v1674, %v1666
        %v1683 = vmul.f32 %v1679, %v417
        %v1684 = vmul.f32 %v1675, %v421
        %v1685 = vmul.f32 %v1680, %v417
        %v1686 = vmul.f32 %v1676, %v421
        %v1687 = vmul.f32 %v1681, %v417
        %v1688 = vmul.f32 %v1677, %v421
        %v1689 = vmul.f32 %v1682, %v417
        %v1690 = vmul.f32 %v1678, %v421
        %v1691 = vld [vmem:[%s6] sm:$0xff]
        %v1692 = vld [vmem:[%s6 + $0x8] sm:$0xff]
        %v1693 = vld [vmem:[%s6 + $0x10] sm:$0xff]
        %v1694 = vld [vmem:[%s6 + $0x18] sm:$0xff]
        %1695 = vrot.lane.b32.xlu0 %v1651, 16
        %v1696 = vpop.permute.xlu0 %1695
        %1697 = vrot.lane.b32.xlu0 %v1653, 16
        %v1698 = vpop.permute.xlu0 %1697
        %1699 = vrot.lane.b32.xlu0 %v1655, 16
        %v1700 = vpop.permute.xlu0 %1699
        %1701 = vrot.lane.b32.xlu0 %v1657, 16
        %v1702 = vpop.permute.xlu0 %1701
        %1703 = vrot.lane.b32.xlu0 %v1652, 16
        %v1704 = vpop.permute.xlu0 %1703
        %1705 = vrot.lane.b32.xlu0 %v1654, 16
        %v1706 = vpop.permute.xlu0 %1705
        %1707 = vrot.lane.b32.xlu0 %v1656, 16
        %v1708 = vpop.permute.xlu0 %1707
        %1709 = vrot.lane.b32.xlu0 %v1658, 16
        %v1710 = vpop.permute.xlu0 %1709
        %v1711 = vsel %vm536, %v1696, %v1704
        %v1712 = vsel %vm536, %v1698, %v1706
        %v1713 = vsel %vm536, %v1700, %v1708
        %v1714 = vsel %vm536, %v1702, %v1710
        %v1715 = vsel %vm536, %v1704, %v1696
        %v1716 = vsel %vm536, %v1706, %v1698
        %v1717 = vsel %vm536, %v1708, %v1700
        %v1718 = vsel %vm536, %v1710, %v1702
        %v1719 = vmul.f32 %v1715, %v430
        %v1720 = vmul.f32 %v1711, %v434
        %v1721 = vmul.f32 %v1716, %v430
        %v1722 = vmul.f32 %v1712, %v434
        %v1723 = vmul.f32 %v1717, %v430
        %v1724 = vmul.f32 %v1713, %v434
        %v1725 = vmul.f32 %v1718, %v430
        %v1726 = vmul.f32 %v1714, %v434
        %s1727 = scalar_lea.vmem %s6, 32
        %v1728 = vld [vmem:[%s1727] sm:$0xff]
        %v1729 = vld [vmem:[%s1727 + $0x8] sm:$0xff]
        %v1730 = vld [vmem:[%s1727 + $0x10] sm:$0xff]
        %v1731 = vld [vmem:[%s1727 + $0x18] sm:$0xff]
        %vm1732 = vcmask 261120
        %v1734 = vsel %vm1732, %v1728, 0
        %v1737 = vsel %vm1732, %v1729, 0
        %v1740 = vsel %vm1732, %v1730, 0
        %v1743 = vsel %vm1732, %v1731, 0
        %1745 = vmatprep.subr.mxu0 %v1720
        %1746 = vmatpush1.msra.mxu0 %v1719
        %1747 = vmatprep.subr.mxu0 %v1722
        %1748 = vmatpush1.msra.mxu0 %v1721
        %1749 = vmatprep.subr.mxu0 %v1724
        %1750 = vmatpush1.msra.mxu0 %v1723
        %1751 = vmatprep.subr.mxu0 %v1726
        %1752 = vmatpush1.msra.mxu0 %v1725
        %1753 = vmatprep.subr.mxu0 0.0
        %1754 = vmatpush1.msra.mxu0 0.0
        %1755 = vmatprep.subr.mxu0 0.0
        %1756 = vmatpush1.msra.mxu0 0.0
        %1757 = vmatprep.subr.mxu0 0.0
        %1758 = vmatpush1.msra.mxu0 0.0
        %1759 = vmatprep.subr.mxu0 0.0
        %1760 = vmatpush1.msra.mxu0 0.0
        %1761 = vmatprep.subr.mxu0 0.0
        %1762 = vmatpush1.msra.mxu0 0.0
        %1763 = vmatprep.subr.mxu0 0.0
        %1764 = vmatpush1.msra.mxu0 0.0
        %1765 = vmatprep.subr.mxu0 0.0
        %1766 = vmatpush1.msra.mxu0 0.0
        %1767 = vmatprep.subr.mxu0 0.0
        %1768 = vmatpush1.msra.mxu0 0.0
        %1769 = vmatprep.subr.mxu0 0.0
        %1770 = vmatpush1.msra.mxu0 0.0
        %1771 = vmatprep.subr.mxu0 0.0
        %1772 = vmatpush1.msra.mxu0 0.0
        %1773 = vmatprep.subr.mxu0 0.0
        %1774 = vmatpush1.msra.mxu0 0.0
        %1775 = vmatprep.subr.mxu0 0.0
        %1776 = vmatpush1.msra.mxu0 0.0
        %1777 = vmatprep.subr.mxu0 0.0
        %1778 = vmatpush1.msra.mxu0 0.0
        %1779 = vmatprep.subr.mxu0 0.0
        %1780 = vmatpush1.msra.mxu0 0.0
        %1781 = vmatprep.subr.mxu0 0.0
        %1782 = vmatpush1.msra.mxu0 0.0
        %1783 = vmatprep.subr.mxu0 0.0
        %1784 = vmatpush1.msra.mxu0 0.0
        %1785 = vmatprep.subr.mxu0 0.0
        %1786 = vmatpush1.msra.mxu0 0.0
        %1787 = vmatprep.subr.mxu0 0.0
        %1788 = vmatpush1.msra.mxu0 0.0
        %1789 = vmatprep.subr.mxu0 0.0
        %1790 = vmatpush1.msra.mxu0 0.0
        %1791 = vmatprep.subr.mxu0 0.0
        %1792 = vmatpush1.msra.mxu0 0.0
        %1793 = vmatprep.subr.mxu0 0.0
        %1794 = vmatpush1.msra.mxu0 0.0
        %1795 = vmatprep.subr.mxu0 0.0
        %1796 = vmatpush1.msra.mxu0 0.0
        %1797 = vmatprep.subr.mxu0 0.0
        %1798 = vmatpush1.msra.mxu0 0.0
        %1799 = vmatprep.subr.mxu0 0.0
        %1800 = vmatpush1.msra.mxu0 0.0
        %1801 = vmatprep.subr.mxu0 0.0
        %1802 = vmatpush1.msra.mxu0 0.0
        %1803 = vmatprep.subr.mxu0 0.0
        %1804 = vmatpush1.msra.mxu0 0.0
        %1805 = vmatprep.subr.mxu0 0.0
        %1806 = vmatpush1.msra.mxu0 0.0
        %1807 = vmatprep.subr.mxu0 0.0
        %1808 = vmatpush1.msra.mxu0 0.0
        %1809 = vmatprep.mubr.f32.mxu0 0.0
        %1810 = vmatmul.mubr.f32.gmra.mrb[0].mxu0 %v1734
        %v1811 = vpop.f32.mrb[0].mxu0
        %v1812 = vadd.f32 0.0, %v1811
        %v1813 = vpop.f32.mrb[0].mxu0
        %v1814 = vadd.f32 0.0, %v1813
        %1815 = vmatprep.mubr.f32.mxu0 0.0
        %1816 = vmatmul.mubr.f32.gmra.mrb[0].mxu0 %v1737
        %v1817 = vpop.f32.mrb[0].mxu0
        %v1818 = vadd.f32 0.0, %v1817
        %v1819 = vpop.f32.mrb[0].mxu0
        %v1820 = vadd.f32 0.0, %v1819
        %1821 = vmatprep.mubr.f32.mxu0 0.0
        %1822 = vmatmul.mubr.f32.gmra.mrb[0].mxu0 %v1740
        %v1823 = vpop.f32.mrb[0].mxu0
        %v1824 = vadd.f32 0.0, %v1823
        %v1825 = vpop.f32.mrb[0].mxu0
        %v1826 = vadd.f32 0.0, %v1825
        %1827 = vmatprep.mubr.f32.mxu0 0.0
        %1828 = vmatmul.mubr.f32.gmra.mrb[0].mxu0 %v1743
        %v1829 = vpop.f32.mrb[0].mxu0
        %v1830 = vadd.f32 0.0, %v1829
        %v1831 = vpop.f32.mrb[0].mxu0
        %v1832 = vadd.f32 0.0, %v1831
        %1833 = vdwg.mxu0
        %v1835 = vsel %vm1732, %v1691, 0
        %v1838 = vsel %vm1732, %v1692, 0
        %v1841 = vsel %vm1732, %v1693, 0
        %v1844 = vsel %vm1732, %v1694, 0
        %1846 = vmatprep.subr.mxu0 %v1684
        %1847 = vmatpush1.msra.mxu0 %v1683
        %1848 = vmatprep.subr.mxu0 %v1686
        %1849 = vmatpush1.msra.mxu0 %v1685
        %1850 = vmatprep.subr.mxu0 %v1688
        %1851 = vmatpush1.msra.mxu0 %v1687
        %1852 = vmatprep.subr.mxu0 %v1690
        %1853 = vmatpush1.msra.mxu0 %v1689
        %1854 = vmatprep.subr.mxu0 0.0
        %1855 = vmatpush1.msra.mxu0 0.0
        %1856 = vmatprep.subr.mxu0 0.0
        %1857 = vmatpush1.msra.mxu0 0.0
        %1858 = vmatprep.subr.mxu0 0.0
        %1859 = vmatpush1.msra.mxu0 0.0
        %1860 = vmatprep.subr.mxu0 0.0
        %1861 = vmatpush1.msra.mxu0 0.0
        %1862 = vmatprep.subr.mxu0 0.0
        %1863 = vmatpush1.msra.mxu0 0.0
        %1864 = vmatprep.subr.mxu0 0.0
        %1865 = vmatpush1.msra.mxu0 0.0
        %1866 = vmatprep.subr.mxu0 0.0
        %1867 = vmatpush1.msra.mxu0 0.0
        %1868 = vmatprep.subr.mxu0 0.0
        %1869 = vmatpush1.msra.mxu0 0.0
        %1870 = vmatprep.subr.mxu0 0.0
        %1871 = vmatpush1.msra.mxu0 0.0
        %1872 = vmatprep.subr.mxu0 0.0
        %1873 = vmatpush1.msra.mxu0 0.0
        %1874 = vmatprep.subr.mxu0 0.0
        %1875 = vmatpush1.msra.mxu0 0.0
        %1876 = vmatprep.subr.mxu0 0.0
        %1877 = vmatpush1.msra.mxu0 0.0
        %1878 = vmatprep.subr.mxu0 0.0
        %1879 = vmatpush1.msra.mxu0 0.0
        %1880 = vmatprep.subr.mxu0 0.0
        %1881 = vmatpush1.msra.mxu0 0.0
        %1882 = vmatprep.subr.mxu0 0.0
        %1883 = vmatpush1.msra.mxu0 0.0
        %1884 = vmatprep.subr.mxu0 0.0
        %1885 = vmatpush1.msra.mxu0 0.0
        %1886 = vmatprep.subr.mxu0 0.0
        %1887 = vmatpush1.msra.mxu0 0.0
        %1888 = vmatprep.subr.mxu0 0.0
        %1889 = vmatpush1.msra.mxu0 0.0
        %1890 = vmatprep.subr.mxu0 0.0
        %1891 = vmatpush1.msra.mxu0 0.0
        %1892 = vmatprep.subr.mxu0 0.0
        %1893 = vmatpush1.msra.mxu0 0.0
        %1894 = vmatprep.subr.mxu0 0.0
        %1895 = vmatpush1.msra.mxu0 0.0
        %1896 = vmatprep.subr.mxu0 0.0
        %1897 = vmatpush1.msra.mxu0 0.0
        %1898 = vmatprep.subr.mxu0 0.0
        %1899 = vmatpush1.msra.mxu0 0.0
        %1900 = vmatprep.subr.mxu0 0.0
        %1901 = vmatpush1.msra.mxu0 0.0
        %1902 = vmatprep.subr.mxu0 0.0
        %1903 = vmatpush1.msra.mxu0 0.0
        %1904 = vmatprep.subr.mxu0 0.0
        %1905 = vmatpush1.msra.mxu0 0.0
        %1906 = vmatprep.subr.mxu0 0.0
        %1907 = vmatpush1.msra.mxu0 0.0
        %1908 = vmatprep.subr.mxu0 0.0
        %1909 = vmatpush1.msra.mxu0 0.0
        %1910 = vmatprep.mubr.f32.mxu0 0.0
        %1911 = vmatmul.mubr.f32.gmra.mrb[0].mxu0 %v1835
        %v1912 = vpop.f32.mrb[0].mxu0
        %v1913 = vadd.f32 %v1812, %v1912
        %v1914 = vpop.f32.mrb[0].mxu0
        %v1915 = vadd.f32 %v1814, %v1914
        %1916 = vmatprep.mubr.f32.mxu0 0.0
        %1917 = vmatmul.mubr.f32.gmra.mrb[0].mxu0 %v1838
        %v1918 = vpop.f32.mrb[0].mxu0
        %v1919 = vadd.f32 %v1818, %v1918
        %v1920 = vpop.f32.mrb[0].mxu0
        %v1921 = vadd.f32 %v1820, %v1920
        %1922 = vmatprep.mubr.f32.mxu0 0.0
        %1923 = vmatmul.mubr.f32.gmra.mrb[0].mxu0 %v1841
        %v1924 = vpop.f32.mrb[0].mxu0
        %v1925 = vadd.f32 %v1824, %v1924
        %v1926 = vpop.f32.mrb[0].mxu0
        %v1927 = vadd.f32 %v1826, %v1926
        %1928 = vmatprep.mubr.f32.mxu0 0.0
        %1929 = vmatmul.mubr.f32.gmra.mrb[0].mxu0 %v1844
        %v1930 = vpop.f32.mrb[0].mxu0
        %v1931 = vadd.f32 %v1830, %v1930
        %v1932 = vpop.f32.mrb[0].mxu0
        %v1933 = vadd.f32 %v1832, %v1932
        %1934 = vdwg.mxu0
        %1935 = vrot.lane.b32.xlu0 %v1651, 15
        %v1936 = vpop.permute.xlu0 %1935
        %1937 = vrot.lane.b32.xlu0 %v1653, 15
        %v1938 = vpop.permute.xlu0 %1937
        %1939 = vrot.lane.b32.xlu0 %v1655, 15
        %v1940 = vpop.permute.xlu0 %1939
        %1941 = vrot.lane.b32.xlu0 %v1657, 15
        %v1942 = vpop.permute.xlu0 %1941
        %1943 = vrot.lane.b32.xlu0 %v1652, 15
        %v1944 = vpop.permute.xlu0 %1943
        %1945 = vrot.lane.b32.xlu0 %v1654, 15
        %v1946 = vpop.permute.xlu0 %1945
        %1947 = vrot.lane.b32.xlu0 %v1656, 15
        %v1948 = vpop.permute.xlu0 %1947
        %1949 = vrot.lane.b32.xlu0 %v1658, 15
        %v1950 = vpop.permute.xlu0 %1949
        %v1951 = vsel %vm753, %v1936, %v1944
        %v1952 = vsel %vm753, %v1938, %v1946
        %v1953 = vsel %vm753, %v1940, %v1948
        %v1954 = vsel %vm753, %v1942, %v1950
        %v1955 = vsel %vm753, %v1944, %v1936
        %v1956 = vsel %vm753, %v1946, %v1938
        %v1957 = vsel %vm753, %v1948, %v1940
        %v1958 = vsel %vm753, %v1950, %v1942
        %v1959 = vmul.f32 %v1955, %v443
        %v1960 = vmul.f32 %v1951, %v447
        %v1961 = vmul.f32 %v1956, %v443
        %v1962 = vmul.f32 %v1952, %v447
        %v1963 = vmul.f32 %v1957, %v443
        %v1964 = vmul.f32 %v1953, %v447
        %v1965 = vmul.f32 %v1958, %v443
        %v1966 = vmul.f32 %v1954, %v447
        %s1967 = scalar_lea.vmem %s6, 64
        %v1968 = vld [vmem:[%s1967] sm:$0xff]
        %v1969 = vld [vmem:[%s1967 + $0x8] sm:$0xff]
        %v1970 = vld [vmem:[%s1967 + $0x10] sm:$0xff]
        %v1971 = vld [vmem:[%s1967 + $0x18] sm:$0xff]
        %v1973 = vsel %vm1732, %v1968, 0
        %v1976 = vsel %vm1732, %v1969, 0
        %v1979 = vsel %vm1732, %v1970, 0
        %v1982 = vsel %vm1732, %v1971, 0
        %1984 = vmatprep.subr.mxu0 %v1960
        %1985 = vmatpush1.msra.mxu0 %v1959
        %1986 = vmatprep.subr.mxu0 %v1962
        %1987 = vmatpush1.msra.mxu0 %v1961
        %1988 = vmatprep.subr.mxu0 %v1964
        %1989 = vmatpush1.msra.mxu0 %v1963
        %1990 = vmatprep.subr.mxu0 %v1966
        %1991 = vmatpush1.msra.mxu0 %v1965
        %1992 = vmatprep.subr.mxu0 0.0
        %1993 = vmatpush1.msra.mxu0 0.0
        %1994 = vmatprep.subr.mxu0 0.0
        %1995 = vmatpush1.msra.mxu0 0.0
        %1996 = vmatprep.subr.mxu0 0.0
        %1997 = vmatpush1.msra.mxu0 0.0
        %1998 = vmatprep.subr.mxu0 0.0
        %1999 = vmatpush1.msra.mxu0 0.0
        %2000 = vmatprep.subr.mxu0 0.0
        %2001 = vmatpush1.msra.mxu0 0.0
        %2002 = vmatprep.subr.mxu0 0.0
        %2003 = vmatpush1.msra.mxu0 0.0
        %2004 = vmatprep.subr.mxu0 0.0
        %2005 = vmatpush1.msra.mxu0 0.0
        %2006 = vmatprep.subr.mxu0 0.0
        %2007 = vmatpush1.msra.mxu0 0.0
        %2008 = vmatprep.subr.mxu0 0.0
        %2009 = vmatpush1.msra.mxu0 0.0
        %2010 = vmatprep.subr.mxu0 0.0
        %2011 = vmatpush1.msra.mxu0 0.0
        %2012 = vmatprep.subr.mxu0 0.0
        %2013 = vmatpush1.msra.mxu0 0.0
        %2014 = vmatprep.subr.mxu0 0.0
        %2015 = vmatpush1.msra.mxu0 0.0
        %2016 = vmatprep.subr.mxu0 0.0
        %2017 = vmatpush1.msra.mxu0 0.0
        %2018 = vmatprep.subr.mxu0 0.0
        %2019 = vmatpush1.msra.mxu0 0.0
        %2020 = vmatprep.subr.mxu0 0.0
        %2021 = vmatpush1.msra.mxu0 0.0
        %2022 = vmatprep.subr.mxu0 0.0
        %2023 = vmatpush1.msra.mxu0 0.0
        %2024 = vmatprep.subr.mxu0 0.0
        %2025 = vmatpush1.msra.mxu0 0.0
        %2026 = vmatprep.subr.mxu0 0.0
        %2027 = vmatpush1.msra.mxu0 0.0
        %2028 = vmatprep.subr.mxu0 0.0
        %2029 = vmatpush1.msra.mxu0 0.0
        %2030 = vmatprep.subr.mxu0 0.0
        %2031 = vmatpush1.msra.mxu0 0.0
        %2032 = vmatprep.subr.mxu0 0.0
        %2033 = vmatpush1.msra.mxu0 0.0
        %2034 = vmatprep.subr.mxu0 0.0
        %2035 = vmatpush1.msra.mxu0 0.0
        %2036 = vmatprep.subr.mxu0 0.0
        %2037 = vmatpush1.msra.mxu0 0.0
        %2038 = vmatprep.subr.mxu0 0.0
        %2039 = vmatpush1.msra.mxu0 0.0
        %2040 = vmatprep.subr.mxu0 0.0
        %2041 = vmatpush1.msra.mxu0 0.0
        %2042 = vmatprep.subr.mxu0 0.0
        %2043 = vmatpush1.msra.mxu0 0.0
        %2044 = vmatprep.subr.mxu0 0.0
        %2045 = vmatpush1.msra.mxu0 0.0
        %2046 = vmatprep.subr.mxu0 0.0
        %2047 = vmatpush1.msra.mxu0 0.0
        %2048 = vmatprep.mubr.f32.mxu0 0.0
        %2049 = vmatmul.mubr.f32.gmra.mrb[0].mxu0 %v1973
        %v2050 = vpop.f32.mrb[0].mxu0
        %v2051 = vadd.f32 0.0, %v2050
        %v2052 = vpop.f32.mrb[0].mxu0
        %v2053 = vadd.f32 0.0, %v2052
        %2054 = vmatprep.mubr.f32.mxu0 0.0
        %2055 = vmatmul.mubr.f32.gmra.mrb[0].mxu0 %v1976
        %v2056 = vpop.f32.mrb[0].mxu0
        %v2057 = vadd.f32 0.0, %v2056
        %v2058 = vpop.f32.mrb[0].mxu0
        %v2059 = vadd.f32 0.0, %v2058
        %2060 = vmatprep.mubr.f32.mxu0 0.0
        %2061 = vmatmul.mubr.f32.gmra.mrb[0].mxu0 %v1979
        %v2062 = vpop.f32.mrb[0].mxu0
        %v2063 = vadd.f32 0.0, %v2062
        %v2064 = vpop.f32.mrb[0].mxu0
        %v2065 = vadd.f32 0.0, %v2064
        %2066 = vmatprep.mubr.f32.mxu0 0.0
        %2067 = vmatmul.mubr.f32.gmra.mrb[0].mxu0 %v1982
        %v2068 = vpop.f32.mrb[0].mxu0
        %v2069 = vadd.f32 0.0, %v2068
        %v2070 = vpop.f32.mrb[0].mxu0
        %v2071 = vadd.f32 0.0, %v2070
        %2072 = vdwg.mxu0
        %v2073 = vadd.f32 %v1913, %v2051
        %v2074 = vadd.f32 %v1915, %v2053
        %v2075 = vadd.f32 %v1919, %v2057
        %v2076 = vadd.f32 %v1921, %v2059
        %v2077 = vadd.f32 %v1925, %v2063
        %v2078 = vadd.f32 %v1927, %v2065
        %v2079 = vadd.f32 %v1931, %v2069
        %v2080 = vadd.f32 %v1933, %v2071
        %2081 = vrot.lane.b32.xlu0 %v1651, 1
        %v2082 = vpop.permute.xlu0 %2081
        %2083 = vrot.lane.b32.xlu0 %v1653, 1
        %v2084 = vpop.permute.xlu0 %2083
        %2085 = vrot.lane.b32.xlu0 %v1655, 1
        %v2086 = vpop.permute.xlu0 %2085
        %2087 = vrot.lane.b32.xlu0 %v1657, 1
        %v2088 = vpop.permute.xlu0 %2087
        %2089 = vrot.lane.b32.xlu0 %v1652, 1
        %v2090 = vpop.permute.xlu0 %2089
        %2091 = vrot.lane.b32.xlu0 %v1654, 1
        %v2092 = vpop.permute.xlu0 %2091
        %2093 = vrot.lane.b32.xlu0 %v1656, 1
        %v2094 = vpop.permute.xlu0 %2093
        %2095 = vrot.lane.b32.xlu0 %v1658, 1
        %v2096 = vpop.permute.xlu0 %2095
        %v2097 = vsel %vm876, %v2082, %v2090
        %v2098 = vsel %vm876, %v2084, %v2092
        %v2099 = vsel %vm876, %v2086, %v2094
        %v2100 = vsel %vm876, %v2088, %v2096
        %v2101 = vsel %vm876, %v2090, %v2082
        %v2102 = vsel %vm876, %v2092, %v2084
        %v2103 = vsel %vm876, %v2094, %v2086
        %v2104 = vsel %vm876, %v2096, %v2088
        %v2105 = vmul.f32 %v2101, %v456
        %v2106 = vmul.f32 %v2097, %v460
        %v2107 = vmul.f32 %v2102, %v456
        %v2108 = vmul.f32 %v2098, %v460
        %v2109 = vmul.f32 %v2103, %v456
        %v2110 = vmul.f32 %v2099, %v460
        %v2111 = vmul.f32 %v2104, %v456
        %v2112 = vmul.f32 %v2100, %v460
        %s2113 = scalar_lea.vmem %s6, 96
        %v2114 = vld [vmem:[%s2113] sm:$0xff]
        %v2115 = vld [vmem:[%s2113 + $0x8] sm:$0xff]
        %v2116 = vld [vmem:[%s2113 + $0x10] sm:$0xff]
        %v2117 = vld [vmem:[%s2113 + $0x18] sm:$0xff]
        %v2119 = vsel %vm1732, %v2114, 0
        %v2122 = vsel %vm1732, %v2115, 0
        %v2125 = vsel %vm1732, %v2116, 0
        %v2128 = vsel %vm1732, %v2117, 0
        %2130 = vmatprep.subr.mxu0 %v2106
        %2131 = vmatpush1.msra.mxu0 %v2105
        %2132 = vmatprep.subr.mxu0 %v2108
        %2133 = vmatpush1.msra.mxu0 %v2107
        %2134 = vmatprep.subr.mxu0 %v2110
        %2135 = vmatpush1.msra.mxu0 %v2109
        %2136 = vmatprep.subr.mxu0 %v2112
        %2137 = vmatpush1.msra.mxu0 %v2111
        %2138 = vmatprep.subr.mxu0 0.0
        %2139 = vmatpush1.msra.mxu0 0.0
        %2140 = vmatprep.subr.mxu0 0.0
        %2141 = vmatpush1.msra.mxu0 0.0
        %2142 = vmatprep.subr.mxu0 0.0
        %2143 = vmatpush1.msra.mxu0 0.0
        %2144 = vmatprep.subr.mxu0 0.0
        %2145 = vmatpush1.msra.mxu0 0.0
        %2146 = vmatprep.subr.mxu0 0.0
        %2147 = vmatpush1.msra.mxu0 0.0
        %2148 = vmatprep.subr.mxu0 0.0
        %2149 = vmatpush1.msra.mxu0 0.0
        %2150 = vmatprep.subr.mxu0 0.0
        %2151 = vmatpush1.msra.mxu0 0.0
        %2152 = vmatprep.subr.mxu0 0.0
        %2153 = vmatpush1.msra.mxu0 0.0
        %2154 = vmatprep.subr.mxu0 0.0
        %2155 = vmatpush1.msra.mxu0 0.0
        %2156 = vmatprep.subr.mxu0 0.0
        %2157 = vmatpush1.msra.mxu0 0.0
        %2158 = vmatprep.subr.mxu0 0.0
        %2159 = vmatpush1.msra.mxu0 0.0
        %2160 = vmatprep.subr.mxu0 0.0
        %2161 = vmatpush1.msra.mxu0 0.0
        %2162 = vmatprep.subr.mxu0 0.0
        %2163 = vmatpush1.msra.mxu0 0.0
        %2164 = vmatprep.subr.mxu0 0.0
        %2165 = vmatpush1.msra.mxu0 0.0
        %2166 = vmatprep.subr.mxu0 0.0
        %2167 = vmatpush1.msra.mxu0 0.0
        %2168 = vmatprep.subr.mxu0 0.0
        %2169 = vmatpush1.msra.mxu0 0.0
        %2170 = vmatprep.subr.mxu0 0.0
        %2171 = vmatpush1.msra.mxu0 0.0
        %2172 = vmatprep.subr.mxu0 0.0
        %2173 = vmatpush1.msra.mxu0 0.0
        %2174 = vmatprep.subr.mxu0 0.0
        %2175 = vmatpush1.msra.mxu0 0.0
        %2176 = vmatprep.subr.mxu0 0.0
        %2177 = vmatpush1.msra.mxu0 0.0
        %2178 = vmatprep.subr.mxu0 0.0
        %2179 = vmatpush1.msra.mxu0 0.0
        %2180 = vmatprep.subr.mxu0 0.0
        %2181 = vmatpush1.msra.mxu0 0.0
        %2182 = vmatprep.subr.mxu0 0.0
        %2183 = vmatpush1.msra.mxu0 0.0
        %2184 = vmatprep.subr.mxu0 0.0
        %2185 = vmatpush1.msra.mxu0 0.0
        %2186 = vmatprep.subr.mxu0 0.0
        %2187 = vmatpush1.msra.mxu0 0.0
        %2188 = vmatprep.subr.mxu0 0.0
        %2189 = vmatpush1.msra.mxu0 0.0
        %2190 = vmatprep.subr.mxu0 0.0
        %2191 = vmatpush1.msra.mxu0 0.0
        %2192 = vmatprep.subr.mxu0 0.0
        %2193 = vmatpush1.msra.mxu0 0.0
        %2194 = vmatprep.mubr.f32.mxu0 0.0
        %2195 = vmatmul.mubr.f32.gmra.mrb[0].mxu0 %v2119
        %v2196 = vpop.f32.mrb[0].mxu0
        %v2197 = vadd.f32 0.0, %v2196
        %v2198 = vpop.f32.mrb[0].mxu0
        %v2199 = vadd.f32 0.0, %v2198
        %2200 = vmatprep.mubr.f32.mxu0 0.0
        %2201 = vmatmul.mubr.f32.gmra.mrb[0].mxu0 %v2122
        %v2202 = vpop.f32.mrb[0].mxu0
        %v2203 = vadd.f32 0.0, %v2202
        %v2204 = vpop.f32.mrb[0].mxu0
        %v2205 = vadd.f32 0.0, %v2204
        %2206 = vmatprep.mubr.f32.mxu0 0.0
        %2207 = vmatmul.mubr.f32.gmra.mrb[0].mxu0 %v2125
        %v2208 = vpop.f32.mrb[0].mxu0
        %v2209 = vadd.f32 0.0, %v2208
        %v2210 = vpop.f32.mrb[0].mxu0
        %v2211 = vadd.f32 0.0, %v2210
        %2212 = vmatprep.mubr.f32.mxu0 0.0
        %2213 = vmatmul.mubr.f32.gmra.mrb[0].mxu0 %v2128
        %v2214 = vpop.f32.mrb[0].mxu0
        %v2215 = vadd.f32 0.0, %v2214
        %v2216 = vpop.f32.mrb[0].mxu0
        %v2217 = vadd.f32 0.0, %v2216
        %2218 = vdwg.mxu0
        %v2219 = vadd.f32 %v2073, %v2197
        %v2220 = vadd.f32 %v2074, %v2199
        %v2221 = vadd.f32 %v2075, %v2203
        %v2222 = vadd.f32 %v2076, %v2205
        %v2223 = vadd.f32 %v2077, %v2209
        %v2224 = vadd.f32 %v2078, %v2211
        %v2225 = vadd.f32 %v2079, %v2215
        %v2226 = vadd.f32 %v2080, %v2217
        %s2227 = scalar_lea.vmem %s6, 128
        %v2228 = vld [vmem:[%s2227] sm:$0xff]
        %v2229 = vld [vmem:[%s2227 + $0x8] sm:$0xff]
        %v2230 = vld [vmem:[%s2227 + $0x10] sm:$0xff]
        %v2231 = vld [vmem:[%s2227 + $0x18] sm:$0xff]
        %v2233 = vsel %vm1732, %v2228, 0
        %v2236 = vsel %vm1732, %v2229, 0
        %v2239 = vsel %vm1732, %v2230, 0
        %v2242 = vsel %vm1732, %v2231, 0
        %2244 = vmatprep.subr.mxu0 %v1652
        %2245 = vmatpush1.msra.mxu0 %v1651
        %2246 = vmatprep.subr.mxu0 %v1654
        %2247 = vmatpush1.msra.mxu0 %v1653
        %2248 = vmatprep.subr.mxu0 %v1656
        %2249 = vmatpush1.msra.mxu0 %v1655
        %2250 = vmatprep.subr.mxu0 %v1658
        %2251 = vmatpush1.msra.mxu0 %v1657
        %2252 = vmatprep.subr.mxu0 0.0
        %2253 = vmatpush1.msra.mxu0 0.0
        %2254 = vmatprep.subr.mxu0 0.0
        %2255 = vmatpush1.msra.mxu0 0.0
        %2256 = vmatprep.subr.mxu0 0.0
        %2257 = vmatpush1.msra.mxu0 0.0
        %2258 = vmatprep.subr.mxu0 0.0
        %2259 = vmatpush1.msra.mxu0 0.0
        %2260 = vmatprep.subr.mxu0 0.0
        %2261 = vmatpush1.msra.mxu0 0.0
        %2262 = vmatprep.subr.mxu0 0.0
        %2263 = vmatpush1.msra.mxu0 0.0
        %2264 = vmatprep.subr.mxu0 0.0
        %2265 = vmatpush1.msra.mxu0 0.0
        %2266 = vmatprep.subr.mxu0 0.0
        %2267 = vmatpush1.msra.mxu0 0.0
        %2268 = vmatprep.subr.mxu0 0.0
        %2269 = vmatpush1.msra.mxu0 0.0
        %2270 = vmatprep.subr.mxu0 0.0
        %2271 = vmatpush1.msra.mxu0 0.0
        %2272 = vmatprep.subr.mxu0 0.0
        %2273 = vmatpush1.msra.mxu0 0.0
        %2274 = vmatprep.subr.mxu0 0.0
        %2275 = vmatpush1.msra.mxu0 0.0
        %2276 = vmatprep.subr.mxu0 0.0
        %2277 = vmatpush1.msra.mxu0 0.0
        %2278 = vmatprep.subr.mxu0 0.0
        %2279 = vmatpush1.msra.mxu0 0.0
        %2280 = vmatprep.subr.mxu0 0.0
        %2281 = vmatpush1.msra.mxu0 0.0
        %2282 = vmatprep.subr.mxu0 0.0
        %2283 = vmatpush1.msra.mxu0 0.0
        %2284 = vmatprep.subr.mxu0 0.0
        %2285 = vmatpush1.msra.mxu0 0.0
        %2286 = vmatprep.subr.mxu0 0.0
        %2287 = vmatpush1.msra.mxu0 0.0
        %2288 = vmatprep.subr.mxu0 0.0
        %2289 = vmatpush1.msra.mxu0 0.0
        %2290 = vmatprep.subr.mxu0 0.0
        %2291 = vmatpush1.msra.mxu0 0.0
        %2292 = vmatprep.subr.mxu0 0.0
        %2293 = vmatpush1.msra.mxu0 0.0
        %2294 = vmatprep.subr.mxu0 0.0
        %2295 = vmatpush1.msra.mxu0 0.0
        %2296 = vmatprep.subr.mxu0 0.0
        %2297 = vmatpush1.msra.mxu0 0.0
        %2298 = vmatprep.subr.mxu0 0.0
        %2299 = vmatpush1.msra.mxu0 0.0
        %2300 = vmatprep.subr.mxu0 0.0
        %2301 = vmatpush1.msra.mxu0 0.0
        %2302 = vmatprep.subr.mxu0 0.0
        %2303 = vmatpush1.msra.mxu0 0.0
        %2304 = vmatprep.subr.mxu0 0.0
        %2305 = vmatpush1.msra.mxu0 0.0
        %2306 = vmatprep.subr.mxu0 0.0
        %2307 = vmatpush1.msra.mxu0 0.0
        %2308 = vmatprep.mubr.f32.mxu0 0.0
        %2309 = vmatmul.mubr.f32.gmra.mrb[0].mxu0 %v2233
        %v2310 = vpop.f32.mrb[0].mxu0
        %v2311 = vadd.f32 0.0, %v2310
        %v2312 = vpop.f32.mrb[0].mxu0
        %v2313 = vadd.f32 0.0, %v2312
        %2314 = vmatprep.mubr.f32.mxu0 0.0
        %2315 = vmatmul.mubr.f32.gmra.mrb[0].mxu0 %v2236
        %v2316 = vpop.f32.mrb[0].mxu0
        %v2317 = vadd.f32 0.0, %v2316
        %v2318 = vpop.f32.mrb[0].mxu0
        %v2319 = vadd.f32 0.0, %v2318
        %2320 = vmatprep.mubr.f32.mxu0 0.0
        %2321 = vmatmul.mubr.f32.gmra.mrb[0].mxu0 %v2239
        %v2322 = vpop.f32.mrb[0].mxu0
        %v2323 = vadd.f32 0.0, %v2322
        %v2324 = vpop.f32.mrb[0].mxu0
        %v2325 = vadd.f32 0.0, %v2324
        %2326 = vmatprep.mubr.f32.mxu0 0.0
        %2327 = vmatmul.mubr.f32.gmra.mrb[0].mxu0 %v2242
        %v2328 = vpop.f32.mrb[0].mxu0
        %v2329 = vadd.f32 0.0, %v2328
        %v2330 = vpop.f32.mrb[0].mxu0
        %v2331 = vadd.f32 0.0, %v2330
        %2332 = vdwg.mxu0
        %v2333 = vadd.f32 %v2219, %v2311
        %v2334 = vadd.f32 %v2220, %v2313
        %v2335 = vadd.f32 %v2221, %v2317
        %v2336 = vadd.f32 %v2222, %v2319
        %v2337 = vadd.f32 %v2223, %v2323
        %v2338 = vadd.f32 %v2224, %v2325
        %v2339 = vadd.f32 %v2225, %v2329
        %v2340 = vadd.f32 %v2226, %v2331
        %2341 = vrot.lane.b32.xlu0 %v1651, 127
        %v2342 = vpop.permute.xlu0 %2341
        %2343 = vrot.lane.b32.xlu0 %v1653, 127
        %v2344 = vpop.permute.xlu0 %2343
        %2345 = vrot.lane.b32.xlu0 %v1655, 127
        %v2346 = vpop.permute.xlu0 %2345
        %2347 = vrot.lane.b32.xlu0 %v1657, 127
        %v2348 = vpop.permute.xlu0 %2347
        %2349 = vrot.lane.b32.xlu0 %v1652, 127
        %v2350 = vpop.permute.xlu0 %2349
        %2351 = vrot.lane.b32.xlu0 %v1654, 127
        %v2352 = vpop.permute.xlu0 %2351
        %2353 = vrot.lane.b32.xlu0 %v1656, 127
        %v2354 = vpop.permute.xlu0 %2353
        %2355 = vrot.lane.b32.xlu0 %v1658, 127
        %v2356 = vpop.permute.xlu0 %2355
        %v2357 = vsel %vm1113, %v2342, %v2350
        %v2358 = vsel %vm1113, %v2344, %v2352
        %v2359 = vsel %vm1113, %v2346, %v2354
        %v2360 = vsel %vm1113, %v2348, %v2356
        %v2361 = vsel %vm1113, %v2350, %v2342
        %v2362 = vsel %vm1113, %v2352, %v2344
        %v2363 = vsel %vm1113, %v2354, %v2346
        %v2364 = vsel %vm1113, %v2356, %v2348
        %v2365 = vmul.f32 %v2357, %v469
        %v2366 = vmul.f32 %v2361, %v473
        %v2367 = vmul.f32 %v2358, %v469
        %v2368 = vmul.f32 %v2362, %v473
        %v2369 = vmul.f32 %v2359, %v469
        %v2370 = vmul.f32 %v2363, %v473
        %v2371 = vmul.f32 %v2360, %v469
        %v2372 = vmul.f32 %v2364, %v473
        %s2373 = scalar_lea.vmem %s6, 160
        %v2374 = vld [vmem:[%s2373] sm:$0xff]
        %v2375 = vld [vmem:[%s2373 + $0x8] sm:$0xff]
        %v2376 = vld [vmem:[%s2373 + $0x10] sm:$0xff]
        %v2377 = vld [vmem:[%s2373 + $0x18] sm:$0xff]
        %v2379 = vsel %vm1732, %v2374, 0
        %v2382 = vsel %vm1732, %v2375, 0
        %v2385 = vsel %vm1732, %v2376, 0
        %v2388 = vsel %vm1732, %v2377, 0
        %2390 = vmatprep.subr.mxu0 %v2366
        %2391 = vmatpush1.msra.mxu0 %v2365
        %2392 = vmatprep.subr.mxu0 %v2368
        %2393 = vmatpush1.msra.mxu0 %v2367
        %2394 = vmatprep.subr.mxu0 %v2370
        %2395 = vmatpush1.msra.mxu0 %v2369
        %2396 = vmatprep.subr.mxu0 %v2372
        %2397 = vmatpush1.msra.mxu0 %v2371
        %2398 = vmatprep.subr.mxu0 0.0
        %2399 = vmatpush1.msra.mxu0 0.0
        %2400 = vmatprep.subr.mxu0 0.0
        %2401 = vmatpush1.msra.mxu0 0.0
        %2402 = vmatprep.subr.mxu0 0.0
        %2403 = vmatpush1.msra.mxu0 0.0
        %2404 = vmatprep.subr.mxu0 0.0
        %2405 = vmatpush1.msra.mxu0 0.0
        %2406 = vmatprep.subr.mxu0 0.0
        %2407 = vmatpush1.msra.mxu0 0.0
        %2408 = vmatprep.subr.mxu0 0.0
        %2409 = vmatpush1.msra.mxu0 0.0
        %2410 = vmatprep.subr.mxu0 0.0
        %2411 = vmatpush1.msra.mxu0 0.0
        %2412 = vmatprep.subr.mxu0 0.0
        %2413 = vmatpush1.msra.mxu0 0.0
        %2414 = vmatprep.subr.mxu0 0.0
        %2415 = vmatpush1.msra.mxu0 0.0
        %2416 = vmatprep.subr.mxu0 0.0
        %2417 = vmatpush1.msra.mxu0 0.0
        %2418 = vmatprep.subr.mxu0 0.0
        %2419 = vmatpush1.msra.mxu0 0.0
        %2420 = vmatprep.subr.mxu0 0.0
        %2421 = vmatpush1.msra.mxu0 0.0
        %2422 = vmatprep.subr.mxu0 0.0
        %2423 = vmatpush1.msra.mxu0 0.0
        %2424 = vmatprep.subr.mxu0 0.0
        %2425 = vmatpush1.msra.mxu0 0.0
        %2426 = vmatprep.subr.mxu0 0.0
        %2427 = vmatpush1.msra.mxu0 0.0
        %2428 = vmatprep.subr.mxu0 0.0
        %2429 = vmatpush1.msra.mxu0 0.0
        %2430 = vmatprep.subr.mxu0 0.0
        %2431 = vmatpush1.msra.mxu0 0.0
        %2432 = vmatprep.subr.mxu0 0.0
        %2433 = vmatpush1.msra.mxu0 0.0
        %2434 = vmatprep.subr.mxu0 0.0
        %2435 = vmatpush1.msra.mxu0 0.0
        %2436 = vmatprep.subr.mxu0 0.0
        %2437 = vmatpush1.msra.mxu0 0.0
        %2438 = vmatprep.subr.mxu0 0.0
        %2439 = vmatpush1.msra.mxu0 0.0
        %2440 = vmatprep.subr.mxu0 0.0
        %2441 = vmatpush1.msra.mxu0 0.0
        %2442 = vmatprep.subr.mxu0 0.0
        %2443 = vmatpush1.msra.mxu0 0.0
        %2444 = vmatprep.subr.mxu0 0.0
        %2445 = vmatpush1.msra.mxu0 0.0
        %2446 = vmatprep.subr.mxu0 0.0
        %2447 = vmatpush1.msra.mxu0 0.0
        %2448 = vmatprep.subr.mxu0 0.0
        %2449 = vmatpush1.msra.mxu0 0.0
        %2450 = vmatprep.subr.mxu0 0.0
        %2451 = vmatpush1.msra.mxu0 0.0
        %2452 = vmatprep.subr.mxu0 0.0
        %2453 = vmatpush1.msra.mxu0 0.0
        %2454 = vmatprep.mubr.f32.mxu0 0.0
        %2455 = vmatmul.mubr.f32.gmra.mrb[0].mxu0 %v2379
        %v2456 = vpop.f32.mrb[0].mxu0
        %v2457 = vadd.f32 0.0, %v2456
        %v2458 = vpop.f32.mrb[0].mxu0
        %v2459 = vadd.f32 0.0, %v2458
        %2460 = vmatprep.mubr.f32.mxu0 0.0
        %2461 = vmatmul.mubr.f32.gmra.mrb[0].mxu0 %v2382
        %v2462 = vpop.f32.mrb[0].mxu0
        %v2463 = vadd.f32 0.0, %v2462
        %v2464 = vpop.f32.mrb[0].mxu0
        %v2465 = vadd.f32 0.0, %v2464
        %2466 = vmatprep.mubr.f32.mxu0 0.0
        %2467 = vmatmul.mubr.f32.gmra.mrb[0].mxu0 %v2385
        %v2468 = vpop.f32.mrb[0].mxu0
        %v2469 = vadd.f32 0.0, %v2468
        %v2470 = vpop.f32.mrb[0].mxu0
        %v2471 = vadd.f32 0.0, %v2470
        %2472 = vmatprep.mubr.f32.mxu0 0.0
        %2473 = vmatmul.mubr.f32.gmra.mrb[0].mxu0 %v2388
        %v2474 = vpop.f32.mrb[0].mxu0
        %v2475 = vadd.f32 0.0, %v2474
        %v2476 = vpop.f32.mrb[0].mxu0
        %v2477 = vadd.f32 0.0, %v2476
        %2478 = vdwg.mxu0
        %v2479 = vadd.f32 %v2333, %v2457
        %v2480 = vadd.f32 %v2334, %v2459
        %v2481 = vadd.f32 %v2335, %v2463
        %v2482 = vadd.f32 %v2336, %v2465
        %v2483 = vadd.f32 %v2337, %v2469
        %v2484 = vadd.f32 %v2338, %v2471
        %v2485 = vadd.f32 %v2339, %v2475
        %v2486 = vadd.f32 %v2340, %v2477
        %2487 = vrot.lane.b32.xlu0 %v1651, 113
        %v2488 = vpop.permute.xlu0 %2487
        %2489 = vrot.lane.b32.xlu0 %v1653, 113
        %v2490 = vpop.permute.xlu0 %2489
        %2491 = vrot.lane.b32.xlu0 %v1655, 113
        %v2492 = vpop.permute.xlu0 %2491
        %2493 = vrot.lane.b32.xlu0 %v1657, 113
        %v2494 = vpop.permute.xlu0 %2493
        %2495 = vrot.lane.b32.xlu0 %v1652, 113
        %v2496 = vpop.permute.xlu0 %2495
        %2497 = vrot.lane.b32.xlu0 %v1654, 113
        %v2498 = vpop.permute.xlu0 %2497
        %2499 = vrot.lane.b32.xlu0 %v1656, 113
        %v2500 = vpop.permute.xlu0 %2499
        %2501 = vrot.lane.b32.xlu0 %v1658, 113
        %v2502 = vpop.permute.xlu0 %2501
        %v2503 = vsel %vm1236, %v2488, %v2496
        %v2504 = vsel %vm1236, %v2490, %v2498
        %v2505 = vsel %vm1236, %v2492, %v2500
        %v2506 = vsel %vm1236, %v2494, %v2502
        %v2507 = vsel %vm1236, %v2496, %v2488
        %v2508 = vsel %vm1236, %v2498, %v2490
        %v2509 = vsel %vm1236, %v2500, %v2492
        %v2510 = vsel %vm1236, %v2502, %v2494
        %v2511 = vmul.f32 %v2503, %v482
        %v2512 = vmul.f32 %v2507, %v486
        %v2513 = vmul.f32 %v2504, %v482
        %v2514 = vmul.f32 %v2508, %v486
        %v2515 = vmul.f32 %v2505, %v482
        %v2516 = vmul.f32 %v2509, %v486
        %v2517 = vmul.f32 %v2506, %v482
        %v2518 = vmul.f32 %v2510, %v486
        %s2519 = scalar_lea.vmem %s6, 192
        %v2520 = vld [vmem:[%s2519] sm:$0xff]
        %v2521 = vld [vmem:[%s2519 + $0x8] sm:$0xff]
        %v2522 = vld [vmem:[%s2519 + $0x10] sm:$0xff]
        %v2523 = vld [vmem:[%s2519 + $0x18] sm:$0xff]
        %v2525 = vsel %vm1732, %v2520, 0
        %v2528 = vsel %vm1732, %v2521, 0
        %v2531 = vsel %vm1732, %v2522, 0
        %v2534 = vsel %vm1732, %v2523, 0
        %2536 = vmatprep.subr.mxu0 %v2512
        %2537 = vmatpush1.msra.mxu0 %v2511
        %2538 = vmatprep.subr.mxu0 %v2514
        %2539 = vmatpush1.msra.mxu0 %v2513
        %2540 = vmatprep.subr.mxu0 %v2516
        %2541 = vmatpush1.msra.mxu0 %v2515
        %2542 = vmatprep.subr.mxu0 %v2518
        %2543 = vmatpush1.msra.mxu0 %v2517
        %2544 = vmatprep.subr.mxu0 0.0
        %2545 = vmatpush1.msra.mxu0 0.0
        %2546 = vmatprep.subr.mxu0 0.0
        %2547 = vmatpush1.msra.mxu0 0.0
        %2548 = vmatprep.subr.mxu0 0.0
        %2549 = vmatpush1.msra.mxu0 0.0
        %2550 = vmatprep.subr.mxu0 0.0
        %2551 = vmatpush1.msra.mxu0 0.0
        %2552 = vmatprep.subr.mxu0 0.0
        %2553 = vmatpush1.msra.mxu0 0.0
        %2554 = vmatprep.subr.mxu0 0.0
        %2555 = vmatpush1.msra.mxu0 0.0
        %2556 = vmatprep.subr.mxu0 0.0
        %2557 = vmatpush1.msra.mxu0 0.0
        %2558 = vmatprep.subr.mxu0 0.0
        %2559 = vmatpush1.msra.mxu0 0.0
        %2560 = vmatprep.subr.mxu0 0.0
        %2561 = vmatpush1.msra.mxu0 0.0
        %2562 = vmatprep.subr.mxu0 0.0
        %2563 = vmatpush1.msra.mxu0 0.0
        %2564 = vmatprep.subr.mxu0 0.0
        %2565 = vmatpush1.msra.mxu0 0.0
        %2566 = vmatprep.subr.mxu0 0.0
        %2567 = vmatpush1.msra.mxu0 0.0
        %2568 = vmatprep.subr.mxu0 0.0
        %2569 = vmatpush1.msra.mxu0 0.0
        %2570 = vmatprep.subr.mxu0 0.0
        %2571 = vmatpush1.msra.mxu0 0.0
        %2572 = vmatprep.subr.mxu0 0.0
        %2573 = vmatpush1.msra.mxu0 0.0
        %2574 = vmatprep.subr.mxu0 0.0
        %2575 = vmatpush1.msra.mxu0 0.0
        %2576 = vmatprep.subr.mxu0 0.0
        %2577 = vmatpush1.msra.mxu0 0.0
        %2578 = vmatprep.subr.mxu0 0.0
        %2579 = vmatpush1.msra.mxu0 0.0
        %2580 = vmatprep.subr.mxu0 0.0
        %2581 = vmatpush1.msra.mxu0 0.0
        %2582 = vmatprep.subr.mxu0 0.0
        %2583 = vmatpush1.msra.mxu0 0.0
        %2584 = vmatprep.subr.mxu0 0.0
        %2585 = vmatpush1.msra.mxu0 0.0
        %2586 = vmatprep.subr.mxu0 0.0
        %2587 = vmatpush1.msra.mxu0 0.0
        %2588 = vmatprep.subr.mxu0 0.0
        %2589 = vmatpush1.msra.mxu0 0.0
        %2590 = vmatprep.subr.mxu0 0.0
        %2591 = vmatpush1.msra.mxu0 0.0
        %2592 = vmatprep.subr.mxu0 0.0
        %2593 = vmatpush1.msra.mxu0 0.0
        %2594 = vmatprep.subr.mxu0 0.0
        %2595 = vmatpush1.msra.mxu0 0.0
        %2596 = vmatprep.subr.mxu0 0.0
        %2597 = vmatpush1.msra.mxu0 0.0
        %2598 = vmatprep.subr.mxu0 0.0
        %2599 = vmatpush1.msra.mxu0 0.0
        %2600 = vmatprep.mubr.f32.mxu0 0.0
        %2601 = vmatmul.mubr.f32.gmra.mrb[0].mxu0 %v2525
        %v2602 = vpop.f32.mrb[0].mxu0
        %v2603 = vadd.f32 0.0, %v2602
        %v2604 = vpop.f32.mrb[0].mxu0
        %v2605 = vadd.f32 0.0, %v2604
        %2606 = vmatprep.mubr.f32.mxu0 0.0
        %2607 = vmatmul.mubr.f32.gmra.mrb[0].mxu0 %v2528
        %v2608 = vpop.f32.mrb[0].mxu0
        %v2609 = vadd.f32 0.0, %v2608
        %v2610 = vpop.f32.mrb[0].mxu0
        %v2611 = vadd.f32 0.0, %v2610
        %2612 = vmatprep.mubr.f32.mxu0 0.0
        %2613 = vmatmul.mubr.f32.gmra.mrb[0].mxu0 %v2531
        %v2614 = vpop.f32.mrb[0].mxu0
        %v2615 = vadd.f32 0.0, %v2614
        %v2616 = vpop.f32.mrb[0].mxu0
        %v2617 = vadd.f32 0.0, %v2616
        %2618 = vmatprep.mubr.f32.mxu0 0.0
        %2619 = vmatmul.mubr.f32.gmra.mrb[0].mxu0 %v2534
        %v2620 = vpop.f32.mrb[0].mxu0
        %v2621 = vadd.f32 0.0, %v2620
        %v2622 = vpop.f32.mrb[0].mxu0
        %v2623 = vadd.f32 0.0, %v2622
        %2624 = vdwg.mxu0
        %v2625 = vadd.f32 %v2479, %v2603
        %v2626 = vadd.f32 %v2480, %v2605
        %v2627 = vadd.f32 %v2481, %v2609
        %v2628 = vadd.f32 %v2482, %v2611
        %v2629 = vadd.f32 %v2483, %v2615
        %v2630 = vadd.f32 %v2484, %v2617
        %v2631 = vadd.f32 %v2485, %v2621
        %v2632 = vadd.f32 %v2486, %v2623
        %2633 = vrot.lane.b32.xlu0 %v1651, 112
        %v2634 = vpop.permute.xlu0 %2633
        %2635 = vrot.lane.b32.xlu0 %v1653, 112
        %v2636 = vpop.permute.xlu0 %2635
        %2637 = vrot.lane.b32.xlu0 %v1655, 112
        %v2638 = vpop.permute.xlu0 %2637
        %2639 = vrot.lane.b32.xlu0 %v1657, 112
        %v2640 = vpop.permute.xlu0 %2639
        %2641 = vrot.lane.b32.xlu0 %v1652, 112
        %v2642 = vpop.permute.xlu0 %2641
        %2643 = vrot.lane.b32.xlu0 %v1654, 112
        %v2644 = vpop.permute.xlu0 %2643
        %2645 = vrot.lane.b32.xlu0 %v1656, 112
        %v2646 = vpop.permute.xlu0 %2645
        %2647 = vrot.lane.b32.xlu0 %v1658, 112
        %v2648 = vpop.permute.xlu0 %2647
        %v2649 = vsel %vm1359, %v2634, %v2642
        %v2650 = vsel %vm1359, %v2636, %v2644
        %v2651 = vsel %vm1359, %v2638, %v2646
        %v2652 = vsel %vm1359, %v2640, %v2648
        %v2653 = vsel %vm1359, %v2642, %v2634
        %v2654 = vsel %vm1359, %v2644, %v2636
        %v2655 = vsel %vm1359, %v2646, %v2638
        %v2656 = vsel %vm1359, %v2648, %v2640
        %v2657 = vmul.f32 %v2649, %v495
        %v2658 = vmul.f32 %v2653, %v499
        %v2659 = vmul.f32 %v2650, %v495
        %v2660 = vmul.f32 %v2654, %v499
        %v2661 = vmul.f32 %v2651, %v495
        %v2662 = vmul.f32 %v2655, %v499
        %v2663 = vmul.f32 %v2652, %v495
        %v2664 = vmul.f32 %v2656, %v499
        %s2665 = scalar_lea.vmem %s6, 224
        %v2666 = vld [vmem:[%s2665] sm:$0xff]
        %v2667 = vld [vmem:[%s2665 + $0x8] sm:$0xff]
        %v2668 = vld [vmem:[%s2665 + $0x10] sm:$0xff]
        %v2669 = vld [vmem:[%s2665 + $0x18] sm:$0xff]
        %v2671 = vsel %vm1732, %v2666, 0
        %v2674 = vsel %vm1732, %v2667, 0
        %v2677 = vsel %vm1732, %v2668, 0
        %v2680 = vsel %vm1732, %v2669, 0
        %2682 = vmatprep.subr.mxu0 %v2658
        %2683 = vmatpush1.msra.mxu0 %v2657
        %2684 = vmatprep.subr.mxu0 %v2660
        %2685 = vmatpush1.msra.mxu0 %v2659
        %2686 = vmatprep.subr.mxu0 %v2662
        %2687 = vmatpush1.msra.mxu0 %v2661
        %2688 = vmatprep.subr.mxu0 %v2664
        %2689 = vmatpush1.msra.mxu0 %v2663
        %2690 = vmatprep.subr.mxu0 0.0
        %2691 = vmatpush1.msra.mxu0 0.0
        %2692 = vmatprep.subr.mxu0 0.0
        %2693 = vmatpush1.msra.mxu0 0.0
        %2694 = vmatprep.subr.mxu0 0.0
        %2695 = vmatpush1.msra.mxu0 0.0
        %2696 = vmatprep.subr.mxu0 0.0
        %2697 = vmatpush1.msra.mxu0 0.0
        %2698 = vmatprep.subr.mxu0 0.0
        %2699 = vmatpush1.msra.mxu0 0.0
        %2700 = vmatprep.subr.mxu0 0.0
        %2701 = vmatpush1.msra.mxu0 0.0
        %2702 = vmatprep.subr.mxu0 0.0
        %2703 = vmatpush1.msra.mxu0 0.0
        %2704 = vmatprep.subr.mxu0 0.0
        %2705 = vmatpush1.msra.mxu0 0.0
        %2706 = vmatprep.subr.mxu0 0.0
        %2707 = vmatpush1.msra.mxu0 0.0
        %2708 = vmatprep.subr.mxu0 0.0
        %2709 = vmatpush1.msra.mxu0 0.0
        %2710 = vmatprep.subr.mxu0 0.0
        %2711 = vmatpush1.msra.mxu0 0.0
        %2712 = vmatprep.subr.mxu0 0.0
        %2713 = vmatpush1.msra.mxu0 0.0
        %2714 = vmatprep.subr.mxu0 0.0
        %2715 = vmatpush1.msra.mxu0 0.0
        %2716 = vmatprep.subr.mxu0 0.0
        %2717 = vmatpush1.msra.mxu0 0.0
        %2718 = vmatprep.subr.mxu0 0.0
        %2719 = vmatpush1.msra.mxu0 0.0
        %2720 = vmatprep.subr.mxu0 0.0
        %2721 = vmatpush1.msra.mxu0 0.0
        %2722 = vmatprep.subr.mxu0 0.0
        %2723 = vmatpush1.msra.mxu0 0.0
        %2724 = vmatprep.subr.mxu0 0.0
        %2725 = vmatpush1.msra.mxu0 0.0
        %2726 = vmatprep.subr.mxu0 0.0
        %2727 = vmatpush1.msra.mxu0 0.0
        %2728 = vmatprep.subr.mxu0 0.0
        %2729 = vmatpush1.msra.mxu0 0.0
        %2730 = vmatprep.subr.mxu0 0.0
        %2731 = vmatpush1.msra.mxu0 0.0
        %2732 = vmatprep.subr.mxu0 0.0
        %2733 = vmatpush1.msra.mxu0 0.0
        %2734 = vmatprep.subr.mxu0 0.0
        %2735 = vmatpush1.msra.mxu0 0.0
        %2736 = vmatprep.subr.mxu0 0.0
        %2737 = vmatpush1.msra.mxu0 0.0
        %2738 = vmatprep.subr.mxu0 0.0
        %2739 = vmatpush1.msra.mxu0 0.0
        %2740 = vmatprep.subr.mxu0 0.0
        %2741 = vmatpush1.msra.mxu0 0.0
        %2742 = vmatprep.subr.mxu0 0.0
        %2743 = vmatpush1.msra.mxu0 0.0
        %2744 = vmatprep.subr.mxu0 0.0
        %2745 = vmatpush1.msra.mxu0 0.0
        %2746 = vmatprep.mubr.f32.mxu0 0.0
        %2747 = vmatmul.mubr.f32.gmra.mrb[0].mxu0 %v2671
        %v2748 = vpop.f32.mrb[0].mxu0
        %v2749 = vadd.f32 0.0, %v2748
        %v2750 = vpop.f32.mrb[0].mxu0
        %v2751 = vadd.f32 0.0, %v2750
        %2752 = vmatprep.mubr.f32.mxu0 0.0
        %2753 = vmatmul.mubr.f32.gmra.mrb[0].mxu0 %v2674
        %v2754 = vpop.f32.mrb[0].mxu0
        %v2755 = vadd.f32 0.0, %v2754
        %v2756 = vpop.f32.mrb[0].mxu0
        %v2757 = vadd.f32 0.0, %v2756
        %2758 = vmatprep.mubr.f32.mxu0 0.0
        %2759 = vmatmul.mubr.f32.gmra.mrb[0].mxu0 %v2677
        %v2760 = vpop.f32.mrb[0].mxu0
        %v2761 = vadd.f32 0.0, %v2760
        %v2762 = vpop.f32.mrb[0].mxu0
        %v2763 = vadd.f32 0.0, %v2762
        %2764 = vmatprep.mubr.f32.mxu0 0.0
        %2765 = vmatmul.mubr.f32.gmra.mrb[0].mxu0 %v2680
        %v2766 = vpop.f32.mrb[0].mxu0
        %v2767 = vadd.f32 0.0, %v2766
        %v2768 = vpop.f32.mrb[0].mxu0
        %v2769 = vadd.f32 0.0, %v2768
        %2770 = vdwg.mxu0
        %v2771 = vadd.f32 %v2625, %v2749
        %v2772 = vadd.f32 %v2626, %v2751
        %v2773 = vadd.f32 %v2627, %v2755
        %v2774 = vadd.f32 %v2628, %v2757
        %v2775 = vadd.f32 %v2629, %v2761
        %v2776 = vadd.f32 %v2630, %v2763
        %v2777 = vadd.f32 %v2631, %v2767
        %v2778 = vadd.f32 %v2632, %v2769
        %2779 = vrot.lane.b32.xlu0 %v1651, 111
        %v2780 = vpop.permute.xlu0 %2779
        %2781 = vrot.lane.b32.xlu0 %v1653, 111
        %v2782 = vpop.permute.xlu0 %2781
        %2783 = vrot.lane.b32.xlu0 %v1655, 111
        %v2784 = vpop.permute.xlu0 %2783
        %2785 = vrot.lane.b32.xlu0 %v1657, 111
        %v2786 = vpop.permute.xlu0 %2785
        %2787 = vrot.lane.b32.xlu0 %v1652, 111
        %v2788 = vpop.permute.xlu0 %2787
        %2789 = vrot.lane.b32.xlu0 %v1654, 111
        %v2790 = vpop.permute.xlu0 %2789
        %2791 = vrot.lane.b32.xlu0 %v1656, 111
        %v2792 = vpop.permute.xlu0 %2791
        %2793 = vrot.lane.b32.xlu0 %v1658, 111
        %v2794 = vpop.permute.xlu0 %2793
        %v2795 = vsel %vm1482, %v2780, %v2788
        %v2796 = vsel %vm1482, %v2782, %v2790
        %v2797 = vsel %vm1482, %v2784, %v2792
        %v2798 = vsel %vm1482, %v2786, %v2794
        %v2799 = vsel %vm1482, %v2788, %v2780
        %v2800 = vsel %vm1482, %v2790, %v2782
        %v2801 = vsel %vm1482, %v2792, %v2784
        %v2802 = vsel %vm1482, %v2794, %v2786
        %v2803 = vmul.f32 %v2795, %v508
        %v2804 = vmul.f32 %v2799, %v512
        %v2805 = vmul.f32 %v2796, %v508
        %v2806 = vmul.f32 %v2800, %v512
        %v2807 = vmul.f32 %v2797, %v508
        %v2808 = vmul.f32 %v2801, %v512
        %v2809 = vmul.f32 %v2798, %v508
        %v2810 = vmul.f32 %v2802, %v512
        %s2811 = scalar_lea.vmem %s6, 256
        %v2812 = vld [vmem:[%s2811] sm:$0xff]
        %v2813 = vld [vmem:[%s2811 + $0x8] sm:$0xff]
        %v2814 = vld [vmem:[%s2811 + $0x10] sm:$0xff]
        %v2815 = vld [vmem:[%s2811 + $0x18] sm:$0xff]
        %v2817 = vsel %vm1732, %v2812, 0
        %v2820 = vsel %vm1732, %v2813, 0
        %v2823 = vsel %vm1732, %v2814, 0
        %v2826 = vsel %vm1732, %v2815, 0
        %2828 = vmatprep.subr.mxu0 %v2804
        %2829 = vmatpush1.msra.mxu0 %v2803
        %2830 = vmatprep.subr.mxu0 %v2806
        %2831 = vmatpush1.msra.mxu0 %v2805
        %2832 = vmatprep.subr.mxu0 %v2808
        %2833 = vmatpush1.msra.mxu0 %v2807
        %2834 = vmatprep.subr.mxu0 %v2810
        %2835 = vmatpush1.msra.mxu0 %v2809
        %2836 = vmatprep.subr.mxu0 0.0
        %2837 = vmatpush1.msra.mxu0 0.0
        %2838 = vmatprep.subr.mxu0 0.0
        %2839 = vmatpush1.msra.mxu0 0.0
        %2840 = vmatprep.subr.mxu0 0.0
        %2841 = vmatpush1.msra.mxu0 0.0
        %2842 = vmatprep.subr.mxu0 0.0
        %2843 = vmatpush1.msra.mxu0 0.0
        %2844 = vmatprep.subr.mxu0 0.0
        %2845 = vmatpush1.msra.mxu0 0.0
        %2846 = vmatprep.subr.mxu0 0.0
        %2847 = vmatpush1.msra.mxu0 0.0
        %2848 = vmatprep.subr.mxu0 0.0
        %2849 = vmatpush1.msra.mxu0 0.0
        %2850 = vmatprep.subr.mxu0 0.0
        %2851 = vmatpush1.msra.mxu0 0.0
        %2852 = vmatprep.subr.mxu0 0.0
        %2853 = vmatpush1.msra.mxu0 0.0
        %2854 = vmatprep.subr.mxu0 0.0
        %2855 = vmatpush1.msra.mxu0 0.0
        %2856 = vmatprep.subr.mxu0 0.0
        %2857 = vmatpush1.msra.mxu0 0.0
        %2858 = vmatprep.subr.mxu0 0.0
        %2859 = vmatpush1.msra.mxu0 0.0
        %2860 = vmatprep.subr.mxu0 0.0
        %2861 = vmatpush1.msra.mxu0 0.0
        %2862 = vmatprep.subr.mxu0 0.0
        %2863 = vmatpush1.msra.mxu0 0.0
        %2864 = vmatprep.subr.mxu0 0.0
        %2865 = vmatpush1.msra.mxu0 0.0
        %2866 = vmatprep.subr.mxu0 0.0
        %2867 = vmatpush1.msra.mxu0 0.0
        %2868 = vmatprep.subr.mxu0 0.0
        %2869 = vmatpush1.msra.mxu0 0.0
        %2870 = vmatprep.subr.mxu0 0.0
        %2871 = vmatpush1.msra.mxu0 0.0
        %2872 = vmatprep.subr.mxu0 0.0
        %2873 = vmatpush1.msra.mxu0 0.0
        %2874 = vmatprep.subr.mxu0 0.0
        %2875 = vmatpush1.msra.mxu0 0.0
        %2876 = vmatprep.subr.mxu0 0.0
        %2877 = vmatpush1.msra.mxu0 0.0
        %2878 = vmatprep.subr.mxu0 0.0
        %2879 = vmatpush1.msra.mxu0 0.0
        %2880 = vmatprep.subr.mxu0 0.0
        %2881 = vmatpush1.msra.mxu0 0.0
        %2882 = vmatprep.subr.mxu0 0.0
        %2883 = vmatpush1.msra.mxu0 0.0
        %2884 = vmatprep.subr.mxu0 0.0
        %2885 = vmatpush1.msra.mxu0 0.0
        %2886 = vmatprep.subr.mxu0 0.0
        %2887 = vmatpush1.msra.mxu0 0.0
        %2888 = vmatprep.subr.mxu0 0.0
        %2889 = vmatpush1.msra.mxu0 0.0
        %2890 = vmatprep.subr.mxu0 0.0
        %2891 = vmatpush1.msra.mxu0 0.0
        %2892 = vmatprep.mubr.f32.mxu0 0.0
        %2893 = vmatmul.mubr.f32.gmra.mrb[0].mxu0 %v2817
        %v2894 = vpop.f32.mrb[0].mxu0
        %v2895 = vadd.f32 0.0, %v2894
        %v2896 = vpop.f32.mrb[0].mxu0
        %v2897 = vadd.f32 0.0, %v2896
        %2898 = vmatprep.mubr.f32.mxu0 0.0
        %2899 = vmatmul.mubr.f32.gmra.mrb[0].mxu0 %v2820
        %v2900 = vpop.f32.mrb[0].mxu0
        %v2901 = vadd.f32 0.0, %v2900
        %v2902 = vpop.f32.mrb[0].mxu0
        %v2903 = vadd.f32 0.0, %v2902
        %2904 = vmatprep.mubr.f32.mxu0 0.0
        %2905 = vmatmul.mubr.f32.gmra.mrb[0].mxu0 %v2823
        %v2906 = vpop.f32.mrb[0].mxu0
        %v2907 = vadd.f32 0.0, %v2906
        %v2908 = vpop.f32.mrb[0].mxu0
        %v2909 = vadd.f32 0.0, %v2908
        %2910 = vmatprep.mubr.f32.mxu0 0.0
        %2911 = vmatmul.mubr.f32.gmra.mrb[0].mxu0 %v2826
        %v2912 = vpop.f32.mrb[0].mxu0
        %v2913 = vadd.f32 0.0, %v2912
        %v2914 = vpop.f32.mrb[0].mxu0
        %v2915 = vadd.f32 0.0, %v2914
        %2916 = vdwg.mxu0
        %v2917 = vadd.f32 %v2771, %v2895
        %v2918 = vadd.f32 %v2772, %v2897
        %v2919 = vadd.f32 %v2773, %v2901
        %v2920 = vadd.f32 %v2774, %v2903
        %v2921 = vadd.f32 %v2775, %v2907
        %v2922 = vadd.f32 %v2776, %v2909
        %v2923 = vadd.f32 %v2777, %v2913
        %v2924 = vadd.f32 %v2778, %v2915
        %v2925 = vld [vmem:[%s7] sm:$0xff]
        %v2926 = vld [vmem:[%s7 + $0x8] sm:$0xff]
        %v2927 = vld [vmem:[%s7 + $0x10] sm:$0xff]
        %v2928 = vld [vmem:[%s7 + $0x18] sm:$0xff]
        %2930 = vset.pattern.permute.xlu0 0
        %2931 = vperm.xlu0 %2930, %v2925
        %v2932 = vpop.permute.xlu0 %2931
        %2935 = vset.pattern.permute.xlu0 0
        %2936 = vperm.xlu0 %2935, %v2926
        %v2937 = vpop.permute.xlu0 %2936
        %2940 = vset.pattern.permute.xlu0 0
        %2941 = vperm.xlu0 %2940, %v2927
        %v2942 = vpop.permute.xlu0 %2941
        %2945 = vset.pattern.permute.xlu0 0
        %2946 = vperm.xlu0 %2945, %v2928
        %v2947 = vpop.permute.xlu0 %2946
        %v2949 = vadd.f32 %v2917, %v2932
        %v2950 = vadd.f32 %v2918, %v2932
        %v2951 = vadd.f32 %v2919, %v2937
        %v2952 = vadd.f32 %v2920, %v2937
        %v2953 = vadd.f32 %v2921, %v2942
        %v2954 = vadd.f32 %v2922, %v2942
        %v2955 = vadd.f32 %v2923, %v2947
        %v2956 = vadd.f32 %v2924, %v2947
        %s2957 = sld [smem:[#allocation3]]
        %vm2958 = vcmp.ge.f32.partialorder %v2949, 0.0
        %vm2959 = vcmp.ge.f32.partialorder %v2950, 0.0
        %vm2960 = vcmp.ge.f32.partialorder %v2951, 0.0
        %vm2961 = vcmp.ge.f32.partialorder %v2952, 0.0
        %vm2962 = vcmp.ge.f32.partialorder %v2953, 0.0
        %vm2963 = vcmp.ge.f32.partialorder %v2954, 0.0
        %vm2964 = vcmp.ge.f32.partialorder %v2955, 0.0
        %vm2965 = vcmp.ge.f32.partialorder %v2956, 0.0
        %v2966 = vstv %s2957
        %v2967 = vmul.f32 %v2966, %v2949
        %v2968 = vmul.f32 %v2966, %v2950
        %v2969 = vmul.f32 %v2966, %v2951
        %v2970 = vmul.f32 %v2966, %v2952
        %v2971 = vmul.f32 %v2966, %v2953
        %v2972 = vmul.f32 %v2966, %v2954
        %v2973 = vmul.f32 %v2966, %v2955
        %v2974 = vmul.f32 %v2966, %v2956
        %v2975 = vsel %vm2958, %v2949, %v2967
        %v2976 = vsel %vm2959, %v2950, %v2968
        %v2977 = vsel %vm2960, %v2951, %v2969
        %v2978 = vsel %vm2961, %v2952, %v2970
        %v2979 = vsel %vm2962, %v2953, %v2971
        %v2980 = vsel %vm2963, %v2954, %v2972
        %v2981 = vsel %vm2964, %v2955, %v2973
        %v2982 = vsel %vm2965, %v2956, %v2974
        %2983 = vrot.lane.b32.xlu0 %v2975, 17
        %v2984 = vpop.permute.xlu0 %2983
        %2985 = vrot.lane.b32.xlu0 %v2977, 17
        %v2986 = vpop.permute.xlu0 %2985
        %2987 = vrot.lane.b32.xlu0 %v2979, 17
        %v2988 = vpop.permute.xlu0 %2987
        %2989 = vrot.lane.b32.xlu0 %v2981, 17
        %v2990 = vpop.permute.xlu0 %2989
        %2991 = vrot.lane.b32.xlu0 %v2976, 17
        %v2992 = vpop.permute.xlu0 %2991
        %2993 = vrot.lane.b32.xlu0 %v2978, 17
        %v2994 = vpop.permute.xlu0 %2993
        %2995 = vrot.lane.b32.xlu0 %v2980, 17
        %v2996 = vpop.permute.xlu0 %2995
        %2997 = vrot.lane.b32.xlu0 %v2982, 17
        %v2998 = vpop.permute.xlu0 %2997
        %v2999 = vsel %vm523, %v2984, %v2992
        %v3000 = vsel %vm523, %v2986, %v2994
        %v3001 = vsel %vm523, %v2988, %v2996
        %v3002 = vsel %vm523, %v2990, %v2998
        %v3003 = vsel %vm523, %v2992, %v2984
        %v3004 = vsel %vm523, %v2994, %v2986
        %v3005 = vsel %vm523, %v2996, %v2988
        %v3006 = vsel %vm523, %v2998, %v2990
        %v3007 = vmul.f32 %v3003, %v417
        %v3008 = vmul.f32 %v2999, %v421
        %v3009 = vmul.f32 %v3004, %v417
        %v3010 = vmul.f32 %v3000, %v421
        %v3011 = vmul.f32 %v3005, %v417
        %v3012 = vmul.f32 %v3001, %v421
        %v3013 = vmul.f32 %v3006, %v417
        %v3014 = vmul.f32 %v3002, %v421
        %v3015 = vld [vmem:[%s9] sm:$0xf]
        %3016 = vrot.lane.b32.xlu0 %v2975, 16
        %v3017 = vpop.permute.xlu0 %3016
        %3018 = vrot.lane.b32.xlu0 %v2977, 16
        %v3019 = vpop.permute.xlu0 %3018
        %3020 = vrot.lane.b32.xlu0 %v2979, 16
        %v3021 = vpop.permute.xlu0 %3020
        %3022 = vrot.lane.b32.xlu0 %v2981, 16
        %v3023 = vpop.permute.xlu0 %3022
        %3024 = vrot.lane.b32.xlu0 %v2976, 16
        %v3025 = vpop.permute.xlu0 %3024
        %3026 = vrot.lane.b32.xlu0 %v2978, 16
        %v3027 = vpop.permute.xlu0 %3026
        %3028 = vrot.lane.b32.xlu0 %v2980, 16
        %v3029 = vpop.permute.xlu0 %3028
        %3030 = vrot.lane.b32.xlu0 %v2982, 16
        %v3031 = vpop.permute.xlu0 %3030
        %v3032 = vsel %vm536, %v3017, %v3025
        %v3033 = vsel %vm536, %v3019, %v3027
        %v3034 = vsel %vm536, %v3021, %v3029
        %v3035 = vsel %vm536, %v3023, %v3031
        %v3036 = vsel %vm536, %v3025, %v3017
        %v3037 = vsel %vm536, %v3027, %v3019
        %v3038 = vsel %vm536, %v3029, %v3021
        %v3039 = vsel %vm536, %v3031, %v3023
        %v3040 = vmul.f32 %v3036, %v430
        %v3041 = vmul.f32 %v3032, %v434
        %v3042 = vmul.f32 %v3037, %v430
        %v3043 = vmul.f32 %v3033, %v434
        %v3044 = vmul.f32 %v3038, %v430
        %v3045 = vmul.f32 %v3034, %v434
        %v3046 = vmul.f32 %v3039, %v430
        %v3047 = vmul.f32 %v3035, %v434
        %s3048 = scalar_lea.vmem %s9, 4
        %v3049 = vld [vmem:[%s3048] sm:$0xf]
        %v3051 = vsel %vm1732, %v3049, 0
        %3053 = vmatprep.subr.mxu0 %v3041
        %3054 = vmatpush1.msra.mxu0 %v3040
        %3055 = vmatprep.subr.mxu0 %v3043
        %3056 = vmatpush1.msra.mxu0 %v3042
        %3057 = vmatprep.subr.mxu0 %v3045
        %3058 = vmatpush1.msra.mxu0 %v3044
        %3059 = vmatprep.subr.mxu0 %v3047
        %3060 = vmatpush1.msra.mxu0 %v3046
        %3061 = vmatprep.subr.mxu0 0.0
        %3062 = vmatpush1.msra.mxu0 0.0
        %3063 = vmatprep.subr.mxu0 0.0
        %3064 = vmatpush1.msra.mxu0 0.0
        %3065 = vmatprep.subr.mxu0 0.0
        %3066 = vmatpush1.msra.mxu0 0.0
        %3067 = vmatprep.subr.mxu0 0.0
        %3068 = vmatpush1.msra.mxu0 0.0
        %3069 = vmatprep.subr.mxu0 0.0
        %3070 = vmatpush1.msra.mxu0 0.0
        %3071 = vmatprep.subr.mxu0 0.0
        %3072 = vmatpush1.msra.mxu0 0.0
        %3073 = vmatprep.subr.mxu0 0.0
        %3074 = vmatpush1.msra.mxu0 0.0
        %3075 = vmatprep.subr.mxu0 0.0
        %3076 = vmatpush1.msra.mxu0 0.0
        %3077 = vmatprep.subr.mxu0 0.0
        %3078 = vmatpush1.msra.mxu0 0.0
        %3079 = vmatprep.subr.mxu0 0.0
        %3080 = vmatpush1.msra.mxu0 0.0
        %3081 = vmatprep.subr.mxu0 0.0
        %3082 = vmatpush1.msra.mxu0 0.0
        %3083 = vmatprep.subr.mxu0 0.0
        %3084 = vmatpush1.msra.mxu0 0.0
        %3085 = vmatprep.subr.mxu0 0.0
        %3086 = vmatpush1.msra.mxu0 0.0
        %3087 = vmatprep.subr.mxu0 0.0
        %3088 = vmatpush1.msra.mxu0 0.0
        %3089 = vmatprep.subr.mxu0 0.0
        %3090 = vmatpush1.msra.mxu0 0.0
        %3091 = vmatprep.subr.mxu0 0.0
        %3092 = vmatpush1.msra.mxu0 0.0
        %3093 = vmatprep.subr.mxu0 0.0
        %3094 = vmatpush1.msra.mxu0 0.0
        %3095 = vmatprep.subr.mxu0 0.0
        %3096 = vmatpush1.msra.mxu0 0.0
        %3097 = vmatprep.subr.mxu0 0.0
        %3098 = vmatpush1.msra.mxu0 0.0
        %3099 = vmatprep.subr.mxu0 0.0
        %3100 = vmatpush1.msra.mxu0 0.0
        %3101 = vmatprep.subr.mxu0 0.0
        %3102 = vmatpush1.msra.mxu0 0.0
        %3103 = vmatprep.subr.mxu0 0.0
        %3104 = vmatpush1.msra.mxu0 0.0
        %3105 = vmatprep.subr.mxu0 0.0
        %3106 = vmatpush1.msra.mxu0 0.0
        %3107 = vmatprep.subr.mxu0 0.0
        %3108 = vmatpush1.msra.mxu0 0.0
        %3109 = vmatprep.subr.mxu0 0.0
        %3110 = vmatpush1.msra.mxu0 0.0
        %3111 = vmatprep.subr.mxu0 0.0
        %3112 = vmatpush1.msra.mxu0 0.0
        %3113 = vmatprep.subr.mxu0 0.0
        %3114 = vmatpush1.msra.mxu0 0.0
        %3115 = vmatprep.subr.mxu0 0.0
        %3116 = vmatpush1.msra.mxu0 0.0
        %3117 = vmatprep.mubr.f32.mxu0 0.0
        %3118 = vmatmul.mubr.f32.gmra.mrb[0].mxu0 %v3051
        %v3119 = vpop.f32.mrb[0].mxu0
        %v3120 = vadd.f32 0.0, %v3119
        %v3121 = vpop.f32.mrb[0].mxu0
        %v3122 = vadd.f32 0.0, %v3121
        %3123 = vdwg.mxu0
        %v3125 = vsel %vm1732, %v3015, 0
        %3127 = vmatprep.subr.mxu0 %v3008
        %3128 = vmatpush1.msra.mxu0 %v3007
        %3129 = vmatprep.subr.mxu0 %v3010
        %3130 = vmatpush1.msra.mxu0 %v3009
        %3131 = vmatprep.subr.mxu0 %v3012
        %3132 = vmatpush1.msra.mxu0 %v3011
        %3133 = vmatprep.subr.mxu0 %v3014
        %3134 = vmatpush1.msra.mxu0 %v3013
        %3135 = vmatprep.subr.mxu0 0.0
        %3136 = vmatpush1.msra.mxu0 0.0
        %3137 = vmatprep.subr.mxu0 0.0
        %3138 = vmatpush1.msra.mxu0 0.0
        %3139 = vmatprep.subr.mxu0 0.0
        %3140 = vmatpush1.msra.mxu0 0.0
        %3141 = vmatprep.subr.mxu0 0.0
        %3142 = vmatpush1.msra.mxu0 0.0
        %3143 = vmatprep.subr.mxu0 0.0
        %3144 = vmatpush1.msra.mxu0 0.0
        %3145 = vmatprep.subr.mxu0 0.0
        %3146 = vmatpush1.msra.mxu0 0.0
        %3147 = vmatprep.subr.mxu0 0.0
        %3148 = vmatpush1.msra.mxu0 0.0
        %3149 = vmatprep.subr.mxu0 0.0
        %3150 = vmatpush1.msra.mxu0 0.0
        %3151 = vmatprep.subr.mxu0 0.0
        %3152 = vmatpush1.msra.mxu0 0.0
        %3153 = vmatprep.subr.mxu0 0.0
        %3154 = vmatpush1.msra.mxu0 0.0
        %3155 = vmatprep.subr.mxu0 0.0
        %3156 = vmatpush1.msra.mxu0 0.0
        %3157 = vmatprep.subr.mxu0 0.0
        %3158 = vmatpush1.msra.mxu0 0.0
        %3159 = vmatprep.subr.mxu0 0.0
        %3160 = vmatpush1.msra.mxu0 0.0
        %3161 = vmatprep.subr.mxu0 0.0
        %3162 = vmatpush1.msra.mxu0 0.0
        %3163 = vmatprep.subr.mxu0 0.0
        %3164 = vmatpush1.msra.mxu0 0.0
        %3165 = vmatprep.subr.mxu0 0.0
        %3166 = vmatpush1.msra.mxu0 0.0
        %3167 = vmatprep.subr.mxu0 0.0
        %3168 = vmatpush1.msra.mxu0 0.0
        %3169 = vmatprep.subr.mxu0 0.0
        %3170 = vmatpush1.msra.mxu0 0.0
        %3171 = vmatprep.subr.mxu0 0.0
        %3172 = vmatpush1.msra.mxu0 0.0
        %3173 = vmatprep.subr.mxu0 0.0
        %3174 = vmatpush1.msra.mxu0 0.0
        %3175 = vmatprep.subr.mxu0 0.0
        %3176 = vmatpush1.msra.mxu0 0.0
        %3177 = vmatprep.subr.mxu0 0.0
        %3178 = vmatpush1.msra.mxu0 0.0
        %3179 = vmatprep.subr.mxu0 0.0
        %3180 = vmatpush1.msra.mxu0 0.0
        %3181 = vmatprep.subr.mxu0 0.0
        %3182 = vmatpush1.msra.mxu0 0.0
        %3183 = vmatprep.subr.mxu0 0.0
        %3184 = vmatpush1.msra.mxu0 0.0
        %3185 = vmatprep.subr.mxu0 0.0
        %3186 = vmatpush1.msra.mxu0 0.0
        %3187 = vmatprep.subr.mxu0 0.0
        %3188 = vmatpush1.msra.mxu0 0.0
        %3189 = vmatprep.subr.mxu0 0.0
        %3190 = vmatpush1.msra.mxu0 0.0
        %3191 = vmatprep.mubr.f32.mxu0 0.0
        %3192 = vmatmul.mubr.f32.gmra.mrb[0].mxu0 %v3125
        %v3193 = vpop.f32.mrb[0].mxu0
        %v3194 = vadd.f32 %v3120, %v3193
        %v3195 = vpop.f32.mrb[0].mxu0
        %v3196 = vadd.f32 %v3122, %v3195
        %3197 = vdwg.mxu0
        %3198 = vrot.lane.b32.xlu0 %v2975, 15
        %v3199 = vpop.permute.xlu0 %3198
        %3200 = vrot.lane.b32.xlu0 %v2977, 15
        %v3201 = vpop.permute.xlu0 %3200
        %3202 = vrot.lane.b32.xlu0 %v2979, 15
        %v3203 = vpop.permute.xlu0 %3202
        %3204 = vrot.lane.b32.xlu0 %v2981, 15
        %v3205 = vpop.permute.xlu0 %3204
        %3206 = vrot.lane.b32.xlu0 %v2976, 15
        %v3207 = vpop.permute.xlu0 %3206
        %3208 = vrot.lane.b32.xlu0 %v2978, 15
        %v3209 = vpop.permute.xlu0 %3208
        %3210 = vrot.lane.b32.xlu0 %v2980, 15
        %v3211 = vpop.permute.xlu0 %3210
        %3212 = vrot.lane.b32.xlu0 %v2982, 15
        %v3213 = vpop.permute.xlu0 %3212
        %v3214 = vsel %vm753, %v3199, %v3207
        %v3215 = vsel %vm753, %v3201, %v3209
        %v3216 = vsel %vm753, %v3203, %v3211
        %v3217 = vsel %vm753, %v3205, %v3213
        %v3218 = vsel %vm753, %v3207, %v3199
        %v3219 = vsel %vm753, %v3209, %v3201
        %v3220 = vsel %vm753, %v3211, %v3203
        %v3221 = vsel %vm753, %v3213, %v3205
        %v3222 = vmul.f32 %v3218, %v443
        %v3223 = vmul.f32 %v3214, %v447
        %v3224 = vmul.f32 %v3219, %v443
        %v3225 = vmul.f32 %v3215, %v447
        %v3226 = vmul.f32 %v3220, %v443
        %v3227 = vmul.f32 %v3216, %v447
        %v3228 = vmul.f32 %v3221, %v443
        %v3229 = vmul.f32 %v3217, %v447
        %s3230 = scalar_lea.vmem %s9, 8
        %v3231 = vld [vmem:[%s3230] sm:$0xf]
        %v3233 = vsel %vm1732, %v3231, 0
        %3235 = vmatprep.subr.mxu0 %v3223
        %3236 = vmatpush1.msra.mxu0 %v3222
        %3237 = vmatprep.subr.mxu0 %v3225
        %3238 = vmatpush1.msra.mxu0 %v3224
        %3239 = vmatprep.subr.mxu0 %v3227
        %3240 = vmatpush1.msra.mxu0 %v3226
        %3241 = vmatprep.subr.mxu0 %v3229
        %3242 = vmatpush1.msra.mxu0 %v3228
        %3243 = vmatprep.subr.mxu0 0.0
        %3244 = vmatpush1.msra.mxu0 0.0
        %3245 = vmatprep.subr.mxu0 0.0
        %3246 = vmatpush1.msra.mxu0 0.0
        %3247 = vmatprep.subr.mxu0 0.0
        %3248 = vmatpush1.msra.mxu0 0.0
        %3249 = vmatprep.subr.mxu0 0.0
        %3250 = vmatpush1.msra.mxu0 0.0
        %3251 = vmatprep.subr.mxu0 0.0
        %3252 = vmatpush1.msra.mxu0 0.0
        %3253 = vmatprep.subr.mxu0 0.0
        %3254 = vmatpush1.msra.mxu0 0.0
        %3255 = vmatprep.subr.mxu0 0.0
        %3256 = vmatpush1.msra.mxu0 0.0
        %3257 = vmatprep.subr.mxu0 0.0
        %3258 = vmatpush1.msra.mxu0 0.0
        %3259 = vmatprep.subr.mxu0 0.0
        %3260 = vmatpush1.msra.mxu0 0.0
        %3261 = vmatprep.subr.mxu0 0.0
        %3262 = vmatpush1.msra.mxu0 0.0
        %3263 = vmatprep.subr.mxu0 0.0
        %3264 = vmatpush1.msra.mxu0 0.0
        %3265 = vmatprep.subr.mxu0 0.0
        %3266 = vmatpush1.msra.mxu0 0.0
        %3267 = vmatprep.subr.mxu0 0.0
        %3268 = vmatpush1.msra.mxu0 0.0
        %3269 = vmatprep.subr.mxu0 0.0
        %3270 = vmatpush1.msra.mxu0 0.0
        %3271 = vmatprep.subr.mxu0 0.0
        %3272 = vmatpush1.msra.mxu0 0.0
        %3273 = vmatprep.subr.mxu0 0.0
        %3274 = vmatpush1.msra.mxu0 0.0
        %3275 = vmatprep.subr.mxu0 0.0
        %3276 = vmatpush1.msra.mxu0 0.0
        %3277 = vmatprep.subr.mxu0 0.0
        %3278 = vmatpush1.msra.mxu0 0.0
        %3279 = vmatprep.subr.mxu0 0.0
        %3280 = vmatpush1.msra.mxu0 0.0
        %3281 = vmatprep.subr.mxu0 0.0
        %3282 = vmatpush1.msra.mxu0 0.0
        %3283 = vmatprep.subr.mxu0 0.0
        %3284 = vmatpush1.msra.mxu0 0.0
        %3285 = vmatprep.subr.mxu0 0.0
        %3286 = vmatpush1.msra.mxu0 0.0
        %3287 = vmatprep.subr.mxu0 0.0
        %3288 = vmatpush1.msra.mxu0 0.0
        %3289 = vmatprep.subr.mxu0 0.0
        %3290 = vmatpush1.msra.mxu0 0.0
        %3291 = vmatprep.subr.mxu0 0.0
        %3292 = vmatpush1.msra.mxu0 0.0
        %3293 = vmatprep.subr.mxu0 0.0
        %3294 = vmatpush1.msra.mxu0 0.0
        %3295 = vmatprep.subr.mxu0 0.0
        %3296 = vmatpush1.msra.mxu0 0.0
        %3297 = vmatprep.subr.mxu0 0.0
        %3298 = vmatpush1.msra.mxu0 0.0
        %3299 = vmatprep.mubr.f32.mxu0 0.0
        %3300 = vmatmul.mubr.f32.gmra.mrb[0].mxu0 %v3233
        %v3301 = vpop.f32.mrb[0].mxu0
        %v3302 = vadd.f32 0.0, %v3301
        %v3303 = vpop.f32.mrb[0].mxu0
        %v3304 = vadd.f32 0.0, %v3303
        %3305 = vdwg.mxu0
        %v3306 = vadd.f32 %v3194, %v3302
        %v3307 = vadd.f32 %v3196, %v3304
        %3308 = vrot.lane.b32.xlu0 %v2975, 1
        %v3309 = vpop.permute.xlu0 %3308
        %3310 = vrot.lane.b32.xlu0 %v2977, 1
        %v3311 = vpop.permute.xlu0 %3310
        %3312 = vrot.lane.b32.xlu0 %v2979, 1
        %v3313 = vpop.permute.xlu0 %3312
        %3314 = vrot.lane.b32.xlu0 %v2981, 1
        %v3315 = vpop.permute.xlu0 %3314
        %3316 = vrot.lane.b32.xlu0 %v2976, 1
        %v3317 = vpop.permute.xlu0 %3316
        %3318 = vrot.lane.b32.xlu0 %v2978, 1
        %v3319 = vpop.permute.xlu0 %3318
        %3320 = vrot.lane.b32.xlu0 %v2980, 1
        %v3321 = vpop.permute.xlu0 %3320
        %3322 = vrot.lane.b32.xlu0 %v2982, 1
        %v3323 = vpop.permute.xlu0 %3322
        %v3324 = vsel %vm876, %v3309, %v3317
        %v3325 = vsel %vm876, %v3311, %v3319
        %v3326 = vsel %vm876, %v3313, %v3321
        %v3327 = vsel %vm876, %v3315, %v3323
        %v3328 = vsel %vm876, %v3317, %v3309
        %v3329 = vsel %vm876, %v3319, %v3311
        %v3330 = vsel %vm876, %v3321, %v3313
        %v3331 = vsel %vm876, %v3323, %v3315
        %v3332 = vmul.f32 %v3328, %v456
        %v3333 = vmul.f32 %v3324, %v460
        %v3334 = vmul.f32 %v3329, %v456
        %v3335 = vmul.f32 %v3325, %v460
        %v3336 = vmul.f32 %v3330, %v456
        %v3337 = vmul.f32 %v3326, %v460
        %v3338 = vmul.f32 %v3331, %v456
        %v3339 = vmul.f32 %v3327, %v460
        %s3340 = scalar_lea.vmem %s9, 12
        %v3341 = vld [vmem:[%s3340] sm:$0xf]
        %v3343 = vsel %vm1732, %v3341, 0
        %3345 = vmatprep.subr.mxu0 %v3333
        %3346 = vmatpush1.msra.mxu0 %v3332
        %3347 = vmatprep.subr.mxu0 %v3335
        %3348 = vmatpush1.msra.mxu0 %v3334
        %3349 = vmatprep.subr.mxu0 %v3337
        %3350 = vmatpush1.msra.mxu0 %v3336
        %3351 = vmatprep.subr.mxu0 %v3339
        %3352 = vmatpush1.msra.mxu0 %v3338
        %3353 = vmatprep.subr.mxu0 0.0
        %3354 = vmatpush1.msra.mxu0 0.0
        %3355 = vmatprep.subr.mxu0 0.0
        %3356 = vmatpush1.msra.mxu0 0.0
        %3357 = vmatprep.subr.mxu0 0.0
        %3358 = vmatpush1.msra.mxu0 0.0
        %3359 = vmatprep.subr.mxu0 0.0
        %3360 = vmatpush1.msra.mxu0 0.0
        %3361 = vmatprep.subr.mxu0 0.0
        %3362 = vmatpush1.msra.mxu0 0.0
        %3363 = vmatprep.subr.mxu0 0.0
        %3364 = vmatpush1.msra.mxu0 0.0
        %3365 = vmatprep.subr.mxu0 0.0
        %3366 = vmatpush1.msra.mxu0 0.0
        %3367 = vmatprep.subr.mxu0 0.0
        %3368 = vmatpush1.msra.mxu0 0.0
        %3369 = vmatprep.subr.mxu0 0.0
        %3370 = vmatpush1.msra.mxu0 0.0
        %3371 = vmatprep.subr.mxu0 0.0
        %3372 = vmatpush1.msra.mxu0 0.0
        %3373 = vmatprep.subr.mxu0 0.0
        %3374 = vmatpush1.msra.mxu0 0.0
        %3375 = vmatprep.subr.mxu0 0.0
        %3376 = vmatpush1.msra.mxu0 0.0
        %3377 = vmatprep.subr.mxu0 0.0
        %3378 = vmatpush1.msra.mxu0 0.0
        %3379 = vmatprep.subr.mxu0 0.0
        %3380 = vmatpush1.msra.mxu0 0.0
        %3381 = vmatprep.subr.mxu0 0.0
        %3382 = vmatpush1.msra.mxu0 0.0
        %3383 = vmatprep.subr.mxu0 0.0
        %3384 = vmatpush1.msra.mxu0 0.0
        %3385 = vmatprep.subr.mxu0 0.0
        %3386 = vmatpush1.msra.mxu0 0.0
        %3387 = vmatprep.subr.mxu0 0.0
        %3388 = vmatpush1.msra.mxu0 0.0
        %3389 = vmatprep.subr.mxu0 0.0
        %3390 = vmatpush1.msra.mxu0 0.0
        %3391 = vmatprep.subr.mxu0 0.0
        %3392 = vmatpush1.msra.mxu0 0.0
        %3393 = vmatprep.subr.mxu0 0.0
        %3394 = vmatpush1.msra.mxu0 0.0
        %3395 = vmatprep.subr.mxu0 0.0
        %3396 = vmatpush1.msra.mxu0 0.0
        %3397 = vmatprep.subr.mxu0 0.0
        %3398 = vmatpush1.msra.mxu0 0.0
        %3399 = vmatprep.subr.mxu0 0.0
        %3400 = vmatpush1.msra.mxu0 0.0
        %3401 = vmatprep.subr.mxu0 0.0
        %3402 = vmatpush1.msra.mxu0 0.0
        %3403 = vmatprep.subr.mxu0 0.0
        %3404 = vmatpush1.msra.mxu0 0.0
        %3405 = vmatprep.subr.mxu0 0.0
        %3406 = vmatpush1.msra.mxu0 0.0
        %3407 = vmatprep.subr.mxu0 0.0
        %3408 = vmatpush1.msra.mxu0 0.0
        %3409 = vmatprep.mubr.f32.mxu0 0.0
        %3410 = vmatmul.mubr.f32.gmra.mrb[0].mxu0 %v3343
        %v3411 = vpop.f32.mrb[0].mxu0
        %v3412 = vadd.f32 0.0, %v3411
        %v3413 = vpop.f32.mrb[0].mxu0
        %v3414 = vadd.f32 0.0, %v3413
        %3415 = vdwg.mxu0
        %v3416 = vadd.f32 %v3306, %v3412
        %v3417 = vadd.f32 %v3307, %v3414
        %s3418 = scalar_lea.vmem %s9, 16
        %v3419 = vld [vmem:[%s3418] sm:$0xf]
        %v3421 = vsel %vm1732, %v3419, 0
        %3423 = vmatprep.subr.mxu0 %v2976
        %3424 = vmatpush1.msra.mxu0 %v2975
        %3425 = vmatprep.subr.mxu0 %v2978
        %3426 = vmatpush1.msra.mxu0 %v2977
        %3427 = vmatprep.subr.mxu0 %v2980
        %3428 = vmatpush1.msra.mxu0 %v2979
        %3429 = vmatprep.subr.mxu0 %v2982
        %3430 = vmatpush1.msra.mxu0 %v2981
        %3431 = vmatprep.subr.mxu0 0.0
        %3432 = vmatpush1.msra.mxu0 0.0
        %3433 = vmatprep.subr.mxu0 0.0
        %3434 = vmatpush1.msra.mxu0 0.0
        %3435 = vmatprep.subr.mxu0 0.0
        %3436 = vmatpush1.msra.mxu0 0.0
        %3437 = vmatprep.subr.mxu0 0.0
        %3438 = vmatpush1.msra.mxu0 0.0
        %3439 = vmatprep.subr.mxu0 0.0
        %3440 = vmatpush1.msra.mxu0 0.0
        %3441 = vmatprep.subr.mxu0 0.0
        %3442 = vmatpush1.msra.mxu0 0.0
        %3443 = vmatprep.subr.mxu0 0.0
        %3444 = vmatpush1.msra.mxu0 0.0
        %3445 = vmatprep.subr.mxu0 0.0
        %3446 = vmatpush1.msra.mxu0 0.0
        %3447 = vmatprep.subr.mxu0 0.0
        %3448 = vmatpush1.msra.mxu0 0.0
        %3449 = vmatprep.subr.mxu0 0.0
        %3450 = vmatpush1.msra.mxu0 0.0
        %3451 = vmatprep.subr.mxu0 0.0
        %3452 = vmatpush1.msra.mxu0 0.0
        %3453 = vmatprep.subr.mxu0 0.0
        %3454 = vmatpush1.msra.mxu0 0.0
        %3455 = vmatprep.subr.mxu0 0.0
        %3456 = vmatpush1.msra.mxu0 0.0
        %3457 = vmatprep.subr.mxu0 0.0
        %3458 = vmatpush1.msra.mxu0 0.0
        %3459 = vmatprep.subr.mxu0 0.0
        %3460 = vmatpush1.msra.mxu0 0.0
        %3461 = vmatprep.subr.mxu0 0.0
        %3462 = vmatpush1.msra.mxu0 0.0
        %3463 = vmatprep.subr.mxu0 0.0
        %3464 = vmatpush1.msra.mxu0 0.0
        %3465 = vmatprep.subr.mxu0 0.0
        %3466 = vmatpush1.msra.mxu0 0.0
        %3467 = vmatprep.subr.mxu0 0.0
        %3468 = vmatpush1.msra.mxu0 0.0
        %3469 = vmatprep.subr.mxu0 0.0
        %3470 = vmatpush1.msra.mxu0 0.0
        %3471 = vmatprep.subr.mxu0 0.0
        %3472 = vmatpush1.msra.mxu0 0.0
        %3473 = vmatprep.subr.mxu0 0.0
        %3474 = vmatpush1.msra.mxu0 0.0
        %3475 = vmatprep.subr.mxu0 0.0
        %3476 = vmatpush1.msra.mxu0 0.0
        %3477 = vmatprep.subr.mxu0 0.0
        %3478 = vmatpush1.msra.mxu0 0.0
        %3479 = vmatprep.subr.mxu0 0.0
        %3480 = vmatpush1.msra.mxu0 0.0
        %3481 = vmatprep.subr.mxu0 0.0
        %3482 = vmatpush1.msra.mxu0 0.0
        %3483 = vmatprep.subr.mxu0 0.0
        %3484 = vmatpush1.msra.mxu0 0.0
        %3485 = vmatprep.subr.mxu0 0.0
        %3486 = vmatpush1.msra.mxu0 0.0
        %3487 = vmatprep.mubr.f32.mxu0 0.0
        %3488 = vmatmul.mubr.f32.gmra.mrb[0].mxu0 %v3421
        %v3489 = vpop.f32.mrb[0].mxu0
        %v3490 = vadd.f32 0.0, %v3489
        %v3491 = vpop.f32.mrb[0].mxu0
        %v3492 = vadd.f32 0.0, %v3491
        %3493 = vdwg.mxu0
        %v3494 = vadd.f32 %v3416, %v3490
        %v3495 = vadd.f32 %v3417, %v3492
        %3496 = vrot.lane.b32.xlu0 %v2975, 127
        %v3497 = vpop.permute.xlu0 %3496
        %3498 = vrot.lane.b32.xlu0 %v2977, 127
        %v3499 = vpop.permute.xlu0 %3498
        %3500 = vrot.lane.b32.xlu0 %v2979, 127
        %v3501 = vpop.permute.xlu0 %3500
        %3502 = vrot.lane.b32.xlu0 %v2981, 127
        %v3503 = vpop.permute.xlu0 %3502
        %3504 = vrot.lane.b32.xlu0 %v2976, 127
        %v3505 = vpop.permute.xlu0 %3504
        %3506 = vrot.lane.b32.xlu0 %v2978, 127
        %v3507 = vpop.permute.xlu0 %3506
        %3508 = vrot.lane.b32.xlu0 %v2980, 127
        %v3509 = vpop.permute.xlu0 %3508
        %3510 = vrot.lane.b32.xlu0 %v2982, 127
        %v3511 = vpop.permute.xlu0 %3510
        %v3512 = vsel %vm1113, %v3497, %v3505
        %v3513 = vsel %vm1113, %v3499, %v3507
        %v3514 = vsel %vm1113, %v3501, %v3509
        %v3515 = vsel %vm1113, %v3503, %v3511
        %v3516 = vsel %vm1113, %v3505, %v3497
        %v3517 = vsel %vm1113, %v3507, %v3499
        %v3518 = vsel %vm1113, %v3509, %v3501
        %v3519 = vsel %vm1113, %v3511, %v3503
        %v3520 = vmul.f32 %v3512, %v469
        %v3521 = vmul.f32 %v3516, %v473
        %v3522 = vmul.f32 %v3513, %v469
        %v3523 = vmul.f32 %v3517, %v473
        %v3524 = vmul.f32 %v3514, %v469
        %v3525 = vmul.f32 %v3518, %v473
        %v3526 = vmul.f32 %v3515, %v469
        %v3527 = vmul.f32 %v3519, %v473
        %s3528 = scalar_lea.vmem %s9, 20
        %v3529 = vld [vmem:[%s3528] sm:$0xf]
        %v3531 = vsel %vm1732, %v3529, 0
        %3533 = vmatprep.subr.mxu0 %v3521
        %3534 = vmatpush1.msra.mxu0 %v3520
        %3535 = vmatprep.subr.mxu0 %v3523
        %3536 = vmatpush1.msra.mxu0 %v3522
        %3537 = vmatprep.subr.mxu0 %v3525
        %3538 = vmatpush1.msra.mxu0 %v3524
        %3539 = vmatprep.subr.mxu0 %v3527
        %3540 = vmatpush1.msra.mxu0 %v3526
        %3541 = vmatprep.subr.mxu0 0.0
        %3542 = vmatpush1.msra.mxu0 0.0
        %3543 = vmatprep.subr.mxu0 0.0
        %3544 = vmatpush1.msra.mxu0 0.0
        %3545 = vmatprep.subr.mxu0 0.0
        %3546 = vmatpush1.msra.mxu0 0.0
        %3547 = vmatprep.subr.mxu0 0.0
        %3548 = vmatpush1.msra.mxu0 0.0
        %3549 = vmatprep.subr.mxu0 0.0
        %3550 = vmatpush1.msra.mxu0 0.0
        %3551 = vmatprep.subr.mxu0 0.0
        %3552 = vmatpush1.msra.mxu0 0.0
        %3553 = vmatprep.subr.mxu0 0.0
        %3554 = vmatpush1.msra.mxu0 0.0
        %3555 = vmatprep.subr.mxu0 0.0
        %3556 = vmatpush1.msra.mxu0 0.0
        %3557 = vmatprep.subr.mxu0 0.0
        %3558 = vmatpush1.msra.mxu0 0.0
        %3559 = vmatprep.subr.mxu0 0.0
        %3560 = vmatpush1.msra.mxu0 0.0
        %3561 = vmatprep.subr.mxu0 0.0
        %3562 = vmatpush1.msra.mxu0 0.0
        %3563 = vmatprep.subr.mxu0 0.0
        %3564 = vmatpush1.msra.mxu0 0.0
        %3565 = vmatprep.subr.mxu0 0.0
        %3566 = vmatpush1.msra.mxu0 0.0
        %3567 = vmatprep.subr.mxu0 0.0
        %3568 = vmatpush1.msra.mxu0 0.0
        %3569 = vmatprep.subr.mxu0 0.0
        %3570 = vmatpush1.msra.mxu0 0.0
        %3571 = vmatprep.subr.mxu0 0.0
        %3572 = vmatpush1.msra.mxu0 0.0
        %3573 = vmatprep.subr.mxu0 0.0
        %3574 = vmatpush1.msra.mxu0 0.0
        %3575 = vmatprep.subr.mxu0 0.0
        %3576 = vmatpush1.msra.mxu0 0.0
        %3577 = vmatprep.subr.mxu0 0.0
        %3578 = vmatpush1.msra.mxu0 0.0
        %3579 = vmatprep.subr.mxu0 0.0
        %3580 = vmatpush1.msra.mxu0 0.0
        %3581 = vmatprep.subr.mxu0 0.0
        %3582 = vmatpush1.msra.mxu0 0.0
        %3583 = vmatprep.subr.mxu0 0.0
        %3584 = vmatpush1.msra.mxu0 0.0
        %3585 = vmatprep.subr.mxu0 0.0
        %3586 = vmatpush1.msra.mxu0 0.0
        %3587 = vmatprep.subr.mxu0 0.0
        %3588 = vmatpush1.msra.mxu0 0.0
        %3589 = vmatprep.subr.mxu0 0.0
        %3590 = vmatpush1.msra.mxu0 0.0
        %3591 = vmatprep.subr.mxu0 0.0
        %3592 = vmatpush1.msra.mxu0 0.0
        %3593 = vmatprep.subr.mxu0 0.0
        %3594 = vmatpush1.msra.mxu0 0.0
        %3595 = vmatprep.subr.mxu0 0.0
        %3596 = vmatpush1.msra.mxu0 0.0
        %3597 = vmatprep.mubr.f32.mxu0 0.0
        %3598 = vmatmul.mubr.f32.gmra.mrb[0].mxu0 %v3531
        %v3599 = vpop.f32.mrb[0].mxu0
        %v3600 = vadd.f32 0.0, %v3599
        %v3601 = vpop.f32.mrb[0].mxu0
        %v3602 = vadd.f32 0.0, %v3601
        %3603 = vdwg.mxu0
        %v3604 = vadd.f32 %v3494, %v3600
        %v3605 = vadd.f32 %v3495, %v3602
        %3606 = vrot.lane.b32.xlu0 %v2975, 113
        %v3607 = vpop.permute.xlu0 %3606
        %3608 = vrot.lane.b32.xlu0 %v2977, 113
        %v3609 = vpop.permute.xlu0 %3608
        %3610 = vrot.lane.b32.xlu0 %v2979, 113
        %v3611 = vpop.permute.xlu0 %3610
        %3612 = vrot.lane.b32.xlu0 %v2981, 113
        %v3613 = vpop.permute.xlu0 %3612
        %3614 = vrot.lane.b32.xlu0 %v2976, 113
        %v3615 = vpop.permute.xlu0 %3614
        %3616 = vrot.lane.b32.xlu0 %v2978, 113
        %v3617 = vpop.permute.xlu0 %3616
        %3618 = vrot.lane.b32.xlu0 %v2980, 113
        %v3619 = vpop.permute.xlu0 %3618
        %3620 = vrot.lane.b32.xlu0 %v2982, 113
        %v3621 = vpop.permute.xlu0 %3620
        %v3622 = vsel %vm1236, %v3607, %v3615
        %v3623 = vsel %vm1236, %v3609, %v3617
        %v3624 = vsel %vm1236, %v3611, %v3619
        %v3625 = vsel %vm1236, %v3613, %v3621
        %v3626 = vsel %vm1236, %v3615, %v3607
        %v3627 = vsel %vm1236, %v3617, %v3609
        %v3628 = vsel %vm1236, %v3619, %v3611
        %v3629 = vsel %vm1236, %v3621, %v3613
        %v3630 = vmul.f32 %v3622, %v482
        %v3631 = vmul.f32 %v3626, %v486
        %v3632 = vmul.f32 %v3623, %v482
        %v3633 = vmul.f32 %v3627, %v486
        %v3634 = vmul.f32 %v3624, %v482
        %v3635 = vmul.f32 %v3628, %v486
        %v3636 = vmul.f32 %v3625, %v482
        %v3637 = vmul.f32 %v3629, %v486
        %s3638 = scalar_lea.vmem %s9, 24
        %v3639 = vld [vmem:[%s3638] sm:$0xf]
        %v3641 = vsel %vm1732, %v3639, 0
        %3643 = vmatprep.subr.mxu0 %v3631
        %3644 = vmatpush1.msra.mxu0 %v3630
        %3645 = vmatprep.subr.mxu0 %v3633
        %3646 = vmatpush1.msra.mxu0 %v3632
        %3647 = vmatprep.subr.mxu0 %v3635
        %3648 = vmatpush1.msra.mxu0 %v3634
        %3649 = vmatprep.subr.mxu0 %v3637
        %3650 = vmatpush1.msra.mxu0 %v3636
        %3651 = vmatprep.subr.mxu0 0.0
        %3652 = vmatpush1.msra.mxu0 0.0
        %3653 = vmatprep.subr.mxu0 0.0
        %3654 = vmatpush1.msra.mxu0 0.0
        %3655 = vmatprep.subr.mxu0 0.0
        %3656 = vmatpush1.msra.mxu0 0.0
        %3657 = vmatprep.subr.mxu0 0.0
        %3658 = vmatpush1.msra.mxu0 0.0
        %3659 = vmatprep.subr.mxu0 0.0
        %3660 = vmatpush1.msra.mxu0 0.0
        %3661 = vmatprep.subr.mxu0 0.0
        %3662 = vmatpush1.msra.mxu0 0.0
        %3663 = vmatprep.subr.mxu0 0.0
        %3664 = vmatpush1.msra.mxu0 0.0
        %3665 = vmatprep.subr.mxu0 0.0
        %3666 = vmatpush1.msra.mxu0 0.0
        %3667 = vmatprep.subr.mxu0 0.0
        %3668 = vmatpush1.msra.mxu0 0.0
        %3669 = vmatprep.subr.mxu0 0.0
        %3670 = vmatpush1.msra.mxu0 0.0
        %3671 = vmatprep.subr.mxu0 0.0
        %3672 = vmatpush1.msra.mxu0 0.0
        %3673 = vmatprep.subr.mxu0 0.0
        %3674 = vmatpush1.msra.mxu0 0.0
        %3675 = vmatprep.subr.mxu0 0.0
        %3676 = vmatpush1.msra.mxu0 0.0
        %3677 = vmatprep.subr.mxu0 0.0
        %3678 = vmatpush1.msra.mxu0 0.0
        %3679 = vmatprep.subr.mxu0 0.0
        %3680 = vmatpush1.msra.mxu0 0.0
        %3681 = vmatprep.subr.mxu0 0.0
        %3682 = vmatpush1.msra.mxu0 0.0
        %3683 = vmatprep.subr.mxu0 0.0
        %3684 = vmatpush1.msra.mxu0 0.0
        %3685 = vmatprep.subr.mxu0 0.0
        %3686 = vmatpush1.msra.mxu0 0.0
        %3687 = vmatprep.subr.mxu0 0.0
        %3688 = vmatpush1.msra.mxu0 0.0
        %3689 = vmatprep.subr.mxu0 0.0
        %3690 = vmatpush1.msra.mxu0 0.0
        %3691 = vmatprep.subr.mxu0 0.0
        %3692 = vmatpush1.msra.mxu0 0.0
        %3693 = vmatprep.subr.mxu0 0.0
        %3694 = vmatpush1.msra.mxu0 0.0
        %3695 = vmatprep.subr.mxu0 0.0
        %3696 = vmatpush1.msra.mxu0 0.0
        %3697 = vmatprep.subr.mxu0 0.0
        %3698 = vmatpush1.msra.mxu0 0.0
        %3699 = vmatprep.subr.mxu0 0.0
        %3700 = vmatpush1.msra.mxu0 0.0
        %3701 = vmatprep.subr.mxu0 0.0
        %3702 = vmatpush1.msra.mxu0 0.0
        %3703 = vmatprep.subr.mxu0 0.0
        %3704 = vmatpush1.msra.mxu0 0.0
        %3705 = vmatprep.subr.mxu0 0.0
        %3706 = vmatpush1.msra.mxu0 0.0
        %3707 = vmatprep.mubr.f32.mxu0 0.0
        %3708 = vmatmul.mubr.f32.gmra.mrb[0].mxu0 %v3641
        %v3709 = vpop.f32.mrb[0].mxu0
        %v3710 = vadd.f32 0.0, %v3709
        %v3711 = vpop.f32.mrb[0].mxu0
        %v3712 = vadd.f32 0.0, %v3711
        %3713 = vdwg.mxu0
        %v3714 = vadd.f32 %v3604, %v3710
        %v3715 = vadd.f32 %v3605, %v3712
        %3716 = vrot.lane.b32.xlu0 %v2975, 112
        %v3717 = vpop.permute.xlu0 %3716
        %3718 = vrot.lane.b32.xlu0 %v2977, 112
        %v3719 = vpop.permute.xlu0 %3718
        %3720 = vrot.lane.b32.xlu0 %v2979, 112
        %v3721 = vpop.permute.xlu0 %3720
        %3722 = vrot.lane.b32.xlu0 %v2981, 112
        %v3723 = vpop.permute.xlu0 %3722
        %3724 = vrot.lane.b32.xlu0 %v2976, 112
        %v3725 = vpop.permute.xlu0 %3724
        %3726 = vrot.lane.b32.xlu0 %v2978, 112
        %v3727 = vpop.permute.xlu0 %3726
        %3728 = vrot.lane.b32.xlu0 %v2980, 112
        %v3729 = vpop.permute.xlu0 %3728
        %3730 = vrot.lane.b32.xlu0 %v2982, 112
        %v3731 = vpop.permute.xlu0 %3730
        %v3732 = vsel %vm1359, %v3717, %v3725
        %v3733 = vsel %vm1359, %v3719, %v3727
        %v3734 = vsel %vm1359, %v3721, %v3729
        %v3735 = vsel %vm1359, %v3723, %v3731
        %v3736 = vsel %vm1359, %v3725, %v3717
        %v3737 = vsel %vm1359, %v3727, %v3719
        %v3738 = vsel %vm1359, %v3729, %v3721
        %v3739 = vsel %vm1359, %v3731, %v3723
        %v3740 = vmul.f32 %v3732, %v495
        %v3741 = vmul.f32 %v3736, %v499
        %v3742 = vmul.f32 %v3733, %v495
        %v3743 = vmul.f32 %v3737, %v499
        %v3744 = vmul.f32 %v3734, %v495
        %v3745 = vmul.f32 %v3738, %v499
        %v3746 = vmul.f32 %v3735, %v495
        %v3747 = vmul.f32 %v3739, %v499
        %s3748 = scalar_lea.vmem %s9, 28
        %v3749 = vld [vmem:[%s3748] sm:$0xf]
        %v3751 = vsel %vm1732, %v3749, 0
        %3753 = vmatprep.subr.mxu0 %v3741
        %3754 = vmatpush1.msra.mxu0 %v3740
        %3755 = vmatprep.subr.mxu0 %v3743
        %3756 = vmatpush1.msra.mxu0 %v3742
        %3757 = vmatprep.subr.mxu0 %v3745
        %3758 = vmatpush1.msra.mxu0 %v3744
        %3759 = vmatprep.subr.mxu0 %v3747
        %3760 = vmatpush1.msra.mxu0 %v3746
        %3761 = vmatprep.subr.mxu0 0.0
        %3762 = vmatpush1.msra.mxu0 0.0
        %3763 = vmatprep.subr.mxu0 0.0
        %3764 = vmatpush1.msra.mxu0 0.0
        %3765 = vmatprep.subr.mxu0 0.0
        %3766 = vmatpush1.msra.mxu0 0.0
        %3767 = vmatprep.subr.mxu0 0.0
        %3768 = vmatpush1.msra.mxu0 0.0
        %3769 = vmatprep.subr.mxu0 0.0
        %3770 = vmatpush1.msra.mxu0 0.0
        %3771 = vmatprep.subr.mxu0 0.0
        %3772 = vmatpush1.msra.mxu0 0.0
        %3773 = vmatprep.subr.mxu0 0.0
        %3774 = vmatpush1.msra.mxu0 0.0
        %3775 = vmatprep.subr.mxu0 0.0
        %3776 = vmatpush1.msra.mxu0 0.0
        %3777 = vmatprep.subr.mxu0 0.0
        %3778 = vmatpush1.msra.mxu0 0.0
        %3779 = vmatprep.subr.mxu0 0.0
        %3780 = vmatpush1.msra.mxu0 0.0
        %3781 = vmatprep.subr.mxu0 0.0
        %3782 = vmatpush1.msra.mxu0 0.0
        %3783 = vmatprep.subr.mxu0 0.0
        %3784 = vmatpush1.msra.mxu0 0.0
        %3785 = vmatprep.subr.mxu0 0.0
        %3786 = vmatpush1.msra.mxu0 0.0
        %3787 = vmatprep.subr.mxu0 0.0
        %3788 = vmatpush1.msra.mxu0 0.0
        %3789 = vmatprep.subr.mxu0 0.0
        %3790 = vmatpush1.msra.mxu0 0.0
        %3791 = vmatprep.subr.mxu0 0.0
        %3792 = vmatpush1.msra.mxu0 0.0
        %3793 = vmatprep.subr.mxu0 0.0
        %3794 = vmatpush1.msra.mxu0 0.0
        %3795 = vmatprep.subr.mxu0 0.0
        %3796 = vmatpush1.msra.mxu0 0.0
        %3797 = vmatprep.subr.mxu0 0.0
        %3798 = vmatpush1.msra.mxu0 0.0
        %3799 = vmatprep.subr.mxu0 0.0
        %3800 = vmatpush1.msra.mxu0 0.0
        %3801 = vmatprep.subr.mxu0 0.0
        %3802 = vmatpush1.msra.mxu0 0.0
        %3803 = vmatprep.subr.mxu0 0.0
        %3804 = vmatpush1.msra.mxu0 0.0
        %3805 = vmatprep.subr.mxu0 0.0
        %3806 = vmatpush1.msra.mxu0 0.0
        %3807 = vmatprep.subr.mxu0 0.0
        %3808 = vmatpush1.msra.mxu0 0.0
        %3809 = vmatprep.subr.mxu0 0.0
        %3810 = vmatpush1.msra.mxu0 0.0
        %3811 = vmatprep.subr.mxu0 0.0
        %3812 = vmatpush1.msra.mxu0 0.0
        %3813 = vmatprep.subr.mxu0 0.0
        %3814 = vmatpush1.msra.mxu0 0.0
        %3815 = vmatprep.subr.mxu0 0.0
        %3816 = vmatpush1.msra.mxu0 0.0
        %3817 = vmatprep.mubr.f32.mxu0 0.0
        %3818 = vmatmul.mubr.f32.gmra.mrb[0].mxu0 %v3751
        %v3819 = vpop.f32.mrb[0].mxu0
        %v3820 = vadd.f32 0.0, %v3819
        %v3821 = vpop.f32.mrb[0].mxu0
        %v3822 = vadd.f32 0.0, %v3821
        %3823 = vdwg.mxu0
        %v3824 = vadd.f32 %v3714, %v3820
        %v3825 = vadd.f32 %v3715, %v3822
        %3826 = vrot.lane.b32.xlu0 %v2975, 111
        %v3827 = vpop.permute.xlu0 %3826
        %3828 = vrot.lane.b32.xlu0 %v2977, 111
        %v3829 = vpop.permute.xlu0 %3828
        %3830 = vrot.lane.b32.xlu0 %v2979, 111
        %v3831 = vpop.permute.xlu0 %3830
        %3832 = vrot.lane.b32.xlu0 %v2981, 111
        %v3833 = vpop.permute.xlu0 %3832
        %3834 = vrot.lane.b32.xlu0 %v2976, 111
        %v3835 = vpop.permute.xlu0 %3834
        %3836 = vrot.lane.b32.xlu0 %v2978, 111
        %v3837 = vpop.permute.xlu0 %3836
        %3838 = vrot.lane.b32.xlu0 %v2980, 111
        %v3839 = vpop.permute.xlu0 %3838
        %3840 = vrot.lane.b32.xlu0 %v2982, 111
        %v3841 = vpop.permute.xlu0 %3840
        %v3842 = vsel %vm1482, %v3827, %v3835
        %v3843 = vsel %vm1482, %v3829, %v3837
        %v3844 = vsel %vm1482, %v3831, %v3839
        %v3845 = vsel %vm1482, %v3833, %v3841
        %v3846 = vsel %vm1482, %v3835, %v3827
        %v3847 = vsel %vm1482, %v3837, %v3829
        %v3848 = vsel %vm1482, %v3839, %v3831
        %v3849 = vsel %vm1482, %v3841, %v3833
        %v3850 = vmul.f32 %v3842, %v508
        %v3851 = vmul.f32 %v3846, %v512
        %v3852 = vmul.f32 %v3843, %v508
        %v3853 = vmul.f32 %v3847, %v512
        %v3854 = vmul.f32 %v3844, %v508
        %v3855 = vmul.f32 %v3848, %v512
        %v3856 = vmul.f32 %v3845, %v508
        %v3857 = vmul.f32 %v3849, %v512
        %s3858 = scalar_lea.vmem %s9, 32
        %v3859 = vld [vmem:[%s3858] sm:$0xf]
        %v3861 = vsel %vm1732, %v3859, 0
        %3863 = vmatprep.subr.mxu0 %v3851
        %3864 = vmatpush1.msra.mxu0 %v3850
        %3865 = vmatprep.subr.mxu0 %v3853
        %3866 = vmatpush1.msra.mxu0 %v3852
        %3867 = vmatprep.subr.mxu0 %v3855
        %3868 = vmatpush1.msra.mxu0 %v3854
        %3869 = vmatprep.subr.mxu0 %v3857
        %3870 = vmatpush1.msra.mxu0 %v3856
        %3871 = vmatprep.subr.mxu0 0.0
        %3872 = vmatpush1.msra.mxu0 0.0
        %3873 = vmatprep.subr.mxu0 0.0
        %3874 = vmatpush1.msra.mxu0 0.0
        %3875 = vmatprep.subr.mxu0 0.0
        %3876 = vmatpush1.msra.mxu0 0.0
        %3877 = vmatprep.subr.mxu0 0.0
        %3878 = vmatpush1.msra.mxu0 0.0
        %3879 = vmatprep.subr.mxu0 0.0
        %3880 = vmatpush1.msra.mxu0 0.0
        %3881 = vmatprep.subr.mxu0 0.0
        %3882 = vmatpush1.msra.mxu0 0.0
        %3883 = vmatprep.subr.mxu0 0.0
        %3884 = vmatpush1.msra.mxu0 0.0
        %3885 = vmatprep.subr.mxu0 0.0
        %3886 = vmatpush1.msra.mxu0 0.0
        %3887 = vmatprep.subr.mxu0 0.0
        %3888 = vmatpush1.msra.mxu0 0.0
        %3889 = vmatprep.subr.mxu0 0.0
        %3890 = vmatpush1.msra.mxu0 0.0
        %3891 = vmatprep.subr.mxu0 0.0
        %3892 = vmatpush1.msra.mxu0 0.0
        %3893 = vmatprep.subr.mxu0 0.0
        %3894 = vmatpush1.msra.mxu0 0.0
        %3895 = vmatprep.subr.mxu0 0.0
        %3896 = vmatpush1.msra.mxu0 0.0
        %3897 = vmatprep.subr.mxu0 0.0
        %3898 = vmatpush1.msra.mxu0 0.0
        %3899 = vmatprep.subr.mxu0 0.0
        %3900 = vmatpush1.msra.mxu0 0.0
        %3901 = vmatprep.subr.mxu0 0.0
        %3902 = vmatpush1.msra.mxu0 0.0
        %3903 = vmatprep.subr.mxu0 0.0
        %3904 = vmatpush1.msra.mxu0 0.0
        %3905 = vmatprep.subr.mxu0 0.0
        %3906 = vmatpush1.msra.mxu0 0.0
        %3907 = vmatprep.subr.mxu0 0.0
        %3908 = vmatpush1.msra.mxu0 0.0
        %3909 = vmatprep.subr.mxu0 0.0
        %3910 = vmatpush1.msra.mxu0 0.0
        %3911 = vmatprep.subr.mxu0 0.0
        %3912 = vmatpush1.msra.mxu0 0.0
        %3913 = vmatprep.subr.mxu0 0.0
        %3914 = vmatpush1.msra.mxu0 0.0
        %3915 = vmatprep.subr.mxu0 0.0
        %3916 = vmatpush1.msra.mxu0 0.0
        %3917 = vmatprep.subr.mxu0 0.0
        %3918 = vmatpush1.msra.mxu0 0.0
        %3919 = vmatprep.subr.mxu0 0.0
        %3920 = vmatpush1.msra.mxu0 0.0
        %3921 = vmatprep.subr.mxu0 0.0
        %3922 = vmatpush1.msra.mxu0 0.0
        %3923 = vmatprep.subr.mxu0 0.0
        %3924 = vmatpush1.msra.mxu0 0.0
        %3925 = vmatprep.subr.mxu0 0.0
        %3926 = vmatpush1.msra.mxu0 0.0
        %3927 = vmatprep.mubr.f32.mxu0 0.0
        %3928 = vmatmul.mubr.f32.gmra.mrb[0].mxu0 %v3861
        %v3929 = vpop.f32.mrb[0].mxu0
        %v3930 = vadd.f32 0.0, %v3929
        %v3931 = vpop.f32.mrb[0].mxu0
        %v3932 = vadd.f32 0.0, %v3931
        %3933 = vdwg.mxu0
        %v3934 = vadd.f32 %v3824, %v3930
        %v3935 = vadd.f32 %v3825, %v3932
        %v3936 = vld [vmem:[%s10] sm:$0xf]
        %3938 = vset.pattern.permute.xlu0 0
        %3939 = vperm.xlu0 %3938, %v3936
        %v3940 = vpop.permute.xlu0 %3939
        %v3942 = vadd.f32 %v3934, %v3940
        %v3943 = vadd.f32 %v3935, %v3940
        %v3944 = vld [vmem:[%s409] sm:$0xff]
        %v3947 = vcombine.low %v3942, %v3943
        %v3949 = vadd.f32 %v3944, %v3947
        %3950 = vst [vmem:[%s398] sm:$0xff] %v3949
        %s3951 = sand.u32 %s276, 1
        %s3952 = scalar_lea.sflag [#allocation5], %s3951
        %s3953 = sand.u32 %s276, 1
        %s3954 = smul.addr %s3953, 8
        %s3955 = scalar_lea.vmem [#allocation4], %s3954
        // Predicated region
        $region65: #{tpu_custom_call.1} parent=63 // pred_check
          %p3956 = pneg %p286
        $region66: #{tpu_custom_call.1} parent=63 // pred_check_branch
          %3958 = sbr.rel (%p3956) target = $region68
        $region67: #{tpu_custom_call.1} parent=63 // pred_region
          %s3959 = smul.u32 2, %s27
          %s3961 = ssub.s32 128, 128
          %3962 = vsyncadd %s3952, %s3961
          %s3963 = smul.addr %s3959, 64
          %s3964 = scalar_lea.hbm %s11, %s3963
          %s3966 = sshll.u32 %s3955, 4
          %s3967 = int_to_ptr.vmem [resolvable:$true] %s3966
          %3969 = dma.vmem_to_hbm [thread:$0]  %s3967, 128, %s3964, %s3952
        $region68: #{tpu_custom_call.1} parent=63 // pred_fallthru
          _
      $region64: #{tpu_custom_call.1} parent=5 // pred_fallthru
        _
      %p3970 = scmp.le.s32.totalorder 2, %s22
      // Predicated region
      $region69: #{tpu_custom_call.1} parent=5 // pred_check
        %p3971 = pneg %p3970
      $region70: #{tpu_custom_call.1} parent=5 // pred_check_branch
        %3973 = sbr.rel (%p3971) target = $region72
      $region71: #{tpu_custom_call.1} parent=5 // pred_region
        %s3974 = ssub.s32 %s22, 2
        // Predicated region
        $region73: #{tpu_custom_call.1} parent=71 // pred_check
          %p3975 = pneg %p292
        $region74: #{tpu_custom_call.1} parent=71 // pred_check_branch
          %3977 = sbr.rel (%p3975) target = $region76
        $region75: #{tpu_custom_call.1} parent=71 // pred_region
          %s3978 = sand.u32 %s277, 1
          %s3979 = scalar_lea.sflag [#allocation5], %s3978
          %s3980 = sand.u32 %s277, 1
          %s3981 = smul.addr %s3980, 8
          %s3982 = scalar_lea.vmem [#allocation4], %s3981
          %3983 = dma.done %s3979, 128
        $region76: #{tpu_custom_call.1} parent=71 // pred_fallthru
          _
      $region72: #{tpu_custom_call.1} parent=5 // pred_fallthru
        _
    $region6: #{tpu_custom_call.1} parent=1 // loop_footer
      %s26 = sadd.s32 1, %s22
    $region7: #{tpu_custom_call.1} parent=1 // loop_footer_branch
      %21 = sbr.rel target = $region3
    $region8: #{tpu_custom_call.1} parent=1 // loop_exit
      _
    %3984 = vsyncpa [#allocation5], 1
    %s3985 = scalar_lea.sflag [#allocation5], 1
    %3986 = vsyncpa %s3985, 1

</llo_original>
